<compile_context>
chip_gen: v6e
topology: v6e:2x2x1
jax: 0.10.0
libtpu: 0.0.40
codegen_flags: <defaults>
</compile_context>

<pallas_src>
import jax
import jax.numpy as jnp
from jax import lax
from jax.experimental import pallas as pl
from jax.experimental.pallas import tpu as pltpu

LANE = 128


def _round_up(x, m):
    return (x + m - 1) // m * m


# ----------------------------------------------------------------------------
# Kernel: one (batch element, row strip) per grid step.
# ----------------------------------------------------------------------------
def up_double_conv_kernel(x2_ref, x1u_ref, w1_ref, s1_ref, t1_ref,
                          w2_ref, s2_ref, t2_ref, out_ref,
                          p1_ref, mid_ref, p2_ref):
    """Fused concat + DoubleConv for one row strip of one batch element.

    x2_ref : (H+4, W+2, C2)       skip connection, zero halo (2 rows / 1 col)
    x1u_ref: (H+4, W+2, C1)       upsampled features, same halo
    w1_ref : (9*Cin_p, Cmid_p)    conv1 weights, im2col layout, lane padded
    s1/t1  : (1, Cmid_p)          folded BN1 scale / shift (f32, zero padded)
    w2_ref : (9*Cmid_p, Cout_p)   conv2 weights, im2col layout, lane padded
    s2/t2  : (1, Cout_p)          folded BN2 scale / shift (f32, zero padded)
    out_ref: (S, W, Cout_p)       output strip (padded channels are zero)
    p1_ref : (S+2, W, 9*Cin_p)    VMEM scratch: conv1 im2col slab
    mid_ref: (S+2, W+2, Cmid_p)   VMEM scratch: conv1 acts + conv2 zero halo
    p2_ref : (S,   W, 9*Cmid_p)   VMEM scratch: conv2 im2col slab
    """
    s = pl.program_id(1)
    n_strips = pl.num_programs(1)

    S, W, Cout_p = out_ref.shape
    C2 = x2_ref.shape[-1]
    C1 = x1u_ref.shape[-1]
    Cin = C2 + C1
    Cin_p = p1_ref.shape[-1] // 9
    Cmid_p = mid_ref.shape[-1]
    cdt = p1_ref.dtype

    # top padded-input row of this strip (original row a maps to padded row a+2;
    # conv1 output row a-1, tap dy reads padded row a + dy).
    r0 = s * S

    # ---- conv1 im2col slab (taps read straight from the haloed inputs) ------
    # Padded channel tails inside each 128-aligned tap block only need to be
    # finite (their weight rows are zero); this loop is statically removed when
    # Cin is already a lane multiple (production channel counts).
    if Cin_p > Cin:
        ztail = jnp.zeros((S + 2, W, Cin_p - Cin), cdt)
        for t in range(9):
            p1_ref[:, :, pl.ds(t * Cin_p + Cin, Cin_p - Cin)] = ztail
    for t in range(9):
        dy, dx = divmod(t, 3)
        # TODO(synk): hoist the dx shift into one pltpu.roll per dy (XLU slot)
        # instead of three sublane-offset reads per source.
        p1_ref[:, :, pl.ds(t * Cin_p, C2)] = (
            x2_ref[pl.ds(r0 + dy, S + 2), pl.ds(dx, W), :])
        p1_ref[:, :, pl.ds(t * Cin_p + C2, C1)] = (
            x1u_ref[pl.ds(r0 + dy, S + 2), pl.ds(dx, W), :])

    # ---- conv1: ONE MXU matmul (K, N are 128 multiples) + f32 BN/ReLU -------
    acc1 = jnp.dot(p1_ref[...].reshape((S + 2) * W, 9 * Cin_p), w1_ref[...],
                   preferred_element_type=jnp.float32)
    y1 = jnp.maximum(acc1 * s1_ref[...] + t1_ref[...], 0.0)

    # ---- stage conv1 activations; add conv2's 1-pixel ZERO halo -------------
    zcol = jnp.zeros((S + 2, 1, Cmid_p), cdt)
    mid_ref[:, pl.ds(0, 1), :] = zcol
    mid_ref[:, pl.ds(W + 1, 1), :] = zcol
    mid_ref[:, pl.ds(1, W), :] = y1.reshape(S + 2, W, Cmid_p).astype(cdt)

    zrow = jnp.zeros((1, W + 2, Cmid_p), cdt)

    @pl.when(s == 0)
    def _():
        mid_ref[pl.ds(0, 1), :, :] = zrow        # image top: conv2 halo is zero

    @pl.when(s == n_strips - 1)
    def _():
        mid_ref[pl.ds(S + 1, 1), :, :] = zrow    # image bottom

    # ---- conv2 im2col slab + ONE MXU matmul + f32 BN/ReLU --------------------
    for t in range(9):
        dy, dx = divmod(t, 3)
        p2_ref[:, :, pl.ds(t * Cmid_p, Cmid_p)] = (
            mid_ref[pl.ds(dy, S), pl.ds(dx, W), :])
    acc2 = jnp.dot(p2_ref[...].reshape(S * W, 9 * Cmid_p), w2_ref[...],
                   preferred_element_type=jnp.float32)
    # TODO(synk): for very large strips, chunk this epilogue over M with
    # lax.fori_loop(unroll=True) to bound the f32 accumulator live range.
    y2 = jnp.maximum(acc2 * s2_ref[...] + t2_ref[...], 0.0)
    out_ref[...] = y2.reshape(S, W, Cout_p).astype(out_ref.dtype)


# ----------------------------------------------------------------------------
# Wrapper
# ----------------------------------------------------------------------------
def _choose_strip_rows(H, W, C2, C1, Cin_p, Cmid_p, Cout_p, cbytes, budget):
    """Largest strip (divisor of H) whose VMEM footprint fits the budget,
    preferring S*W to be a 256 multiple (v6e/v7x MXU tile)."""
    def vmem_need(S):
        io = 2 * ((H + 4) * (W + 2) * (C2 + C1) * cbytes            # x2 + x1u
                  + (9 * Cin_p * Cmid_p + 9 * Cmid_p * Cout_p) * cbytes  # weights
                  + S * W * Cout_p * 4)                              # f32 out block
        scratch = ((S + 2) * W * 9 * Cin_p
                   + (S + 2) * (W + 2) * Cmid_p
                   + S * W * 9 * Cmid_p) * cbytes
        acc = ((S + 2) * W * Cmid_p + S * W * Cout_p) * 4            # f32 accs
        return io + scratch + acc

    fits = [d for d in range(1, H + 1) if H % d == 0 and vmem_need(d) <= budget]
    if not fits:
        return 1
    mxu = [d for d in fits if (d * W) % 256 == 0]
    return max(mxu) if mxu else max(fits)


def double_conv_pallas(x2_nhwc, x1u_nhwc, w1_hwio, s1, t1, w2_hwio, s2, t2,
                       *, compute_dtype=jnp.bfloat16, strip_rows=None):
    """Fused concat + pad + DoubleConv.  bf16 operands by default (f32
    accumulation + f32 BN/ReLU epilogue either way)."""
    N, H, W, C2 = x2_nhwc.shape
    C1 = x1u_nhwc.shape[-1]
    Cin = C1 + C2
    Cmid = w1_hwio.shape[-1]
    Cout = w2_hwio.shape[-1]
    cdt = compute_dtype
    cbytes = jnp.dtype(cdt).itemsize

    # lane-aligned channel counts (tap offsets, matmul K/N, lane-dense output)
    Cin_p = _round_up(Cin, LANE)
    Cmid_p = _round_up(Cmid, LANE)
    Cout_p = _round_up(Cout, LANE)

    # per-generation VMEM budgeting (v5e/v6e 128 MiB, v7x 64 MiB per TC)
    try:
        vmem_cap = int(pltpu.get_tpu_info().vmem_capacity_bytes)
        if not vmem_cap:
            vmem_cap = 64 * 1024 * 1024
    except Exception:
        vmem_cap = 64 * 1024 * 1024
    vmem_limit = int(vmem_cap * 3 // 4)
    budget = int(vmem_cap * 11 // 20)

    if strip_rows is None:
        strip_rows = _choose_strip_rows(H, W, C2, C1, Cin_p, Cmid_p, Cout_p,
                                        cbytes, budget)
    assert H % strip_rows == 0, "strip_rows must divide H"
    S = strip_rows
    n_strips = H // S

    # zero-haloed (2 rows / 1 col per side), compute-dtype inputs; no HBM concat.
    x2p = jnp.pad(x2_nhwc, ((0, 0), (2, 2), (1, 1), (0, 0))).astype(cdt)
    x1p = jnp.pad(x1u_nhwc, ((0, 0), (2, 2), (1, 1), (0, 0))).astype(cdt)

    # lane-padded im2col weight packing; padded columns/rows are zero so padded
    # output channels are exactly zero after the (zero-padded) BN shift.
    def pack_w(w, cip, cop):
        kh, kw, ci, co = w.shape
        wp = jnp.zeros((kh * kw, cip, cop), jnp.float32)
        wp = wp.at[:, :ci, :co].set(w.reshape(kh * kw, ci, co).astype(jnp.float32))
        return wp.reshape(kh * kw * cip, cop).astype(cdt)

    def pad_vec(v, cp):
        return jnp.zeros((1, cp), jnp.float32).at[0, :v.shape[0]].set(
            v.astype(jnp.float32))

    w1p = pack_w(w1_hwio, Cin_p, Cmid_p)
    w2p = pack_w(w2_hwio, Cmid_p, Cout_p)
    s1p, t1p = pad_vec(s1, Cmid_p), pad_vec(t1, Cmid_p)
    s2p, t2p = pad_vec(s2, Cout_p), pad_vec(t2, Cout_p)

    out = pl.pallas_call(
        up_double_conv_kernel,
        out_shape=jax.ShapeDtypeStruct((N, H, W, Cout_p), jnp.float32),
        grid_spec=pltpu.PrefetchScalarGridSpec(
            num_scalar_prefetch=0,
            grid=(N, n_strips),
            in_specs=[
                pl.BlockSpec((None, H + 4, W + 2, C2), lambda n, s: (n, 0, 0, 0)),
                pl.BlockSpec((None, H + 4, W + 2, C1), lambda n, s: (n, 0, 0, 0)),
                pl.BlockSpec((9 * Cin_p, Cmid_p), lambda n, s: (0, 0)),
                pl.BlockSpec((1, Cmid_p), lambda n, s: (0, 0)),
                pl.BlockSpec((1, Cmid_p), lambda n, s: (0, 0)),
                pl.BlockSpec((9 * Cmid_p, Cout_p), lambda n, s: (0, 0)),
                pl.BlockSpec((1, Cout_p), lambda n, s: (0, 0)),
                pl.BlockSpec((1, Cout_p), lambda n, s: (0, 0)),
            ],
            out_specs=pl.BlockSpec((None, S, W, Cout_p), lambda n, s: (n, s, 0, 0)),
            scratch_shapes=[
                pltpu.VMEM((S + 2, W, 9 * Cin_p), cdt),      # conv1 im2col slab
                pltpu.VMEM((S + 2, W + 2, Cmid_p), cdt),     # conv1 acts + halo
                pltpu.VMEM((S, W, 9 * Cmid_p), cdt),         # conv2 im2col slab
            ],
        ),
        compiler_params=pltpu.CompilerParams(
            dimension_semantics=("parallel", "parallel"),     # v7x megacore
            vmem_limit_bytes=vmem_limit,
        ),
    )(x2p, x1p, w1p, s1p, t1p, w2p, s2p, t2p)
    return out[..., :Cout]


def bilinear_matrix(n_in, n_out, dtype=jnp.float32):
    """Interpolation matrix for 1-D bilinear resize with align_corners=True."""
    dst = jnp.arange(n_out, dtype=dtype)
    src = dst * (n_in - 1) / (n_out - 1)
    i0 = jnp.clip(jnp.floor(src).astype(jnp.int32), 0, n_in - 2)
    frac = src - i0.astype(dtype)
    r = jnp.arange(n_out)
    M = jnp.zeros((n_out, n_in), dtype)
    M = M.at[r, i0].add(1.0 - frac)
    M = M.at[r, i0 + 1].add(frac)
    return M


def up_forward(x1_nchw, x2_nchw, p, *, compute_dtype=jnp.bfloat16, strip_rows=None):
    """Up.forward: bilinear 2x upsample x1, concat [x2, x1], DoubleConv."""
    x1 = jnp.transpose(x1_nchw, (0, 2, 3, 1))
    x2 = jnp.transpose(x2_nchw, (0, 2, 3, 1))
    H1, W1 = x1.shape[1], x1.shape[2]
    H, W = x2.shape[1], x2.shape[2]
    Mh = bilinear_matrix(H1, H)
    Mw = bilinear_matrix(W1, W)
    x1u = jnp.einsum('oh,nhwc->nowc', Mh, x1)
    x1u = jnp.einsum('pw,nowc->nopc', Mw, x1u)
    y = double_conv_pallas(x2, x1u, p['w1_hwio'], p['s1'], p['t1'],
                           p['w2_hwio'], p['s2'], p['t2'],
                           compute_dtype=compute_dtype, strip_rows=strip_rows)
    return jnp.transpose(y, (0, 3, 1, 2))


def init_params(key, in_channels, out_channels):
    """Deterministic synthetic params; eval-mode BN folded (with the conv bias)
    into per-channel scale/shift."""
    cmid = in_channels // 2
    ks = jax.random.split(key, 12)
    w1 = 0.1 * jax.random.normal(ks[0], (3, 3, in_channels, cmid), jnp.float32)
    b1 = 0.1 * jax.random.normal(ks[1], (cmid,), jnp.float32)
    g1 = 1.0 + 0.1 * jax.random.normal(ks[2], (cmid,), jnp.float32)
    be1 = 0.1 * jax.random.normal(ks[3], (cmid,), jnp.float32)
    m1 = 0.1 * jax.random.normal(ks[4], (cmid,), jnp.float32)
    v1 = 1.0 + 0.1 * jnp.abs(jax.random.normal(ks[5], (cmid,), jnp.float32))
    w2 = 0.1 * jax.random.normal(ks[6], (3, 3, cmid, out_channels), jnp.float32)
    b2 = 0.1 * jax.random.normal(ks[7], (out_channels,), jnp.float32)
    g2 = 1.0 + 0.1 * jax.random.normal(ks[8], (out_channels,), jnp.float32)
    be2 = 0.1 * jax.random.normal(ks[9], (out_channels,), jnp.float32)
    m2 = 0.1 * jax.random.normal(ks[10], (out_channels,), jnp.float32)
    v2 = 1.0 + 0.1 * jnp.abs(jax.random.normal(ks[11], (out_channels,), jnp.float32))
    eps = 1e-5
    s1 = g1 / jnp.sqrt(v1 + eps)
    t1 = be1 + s1 * (b1 - m1)
    s2 = g2 / jnp.sqrt(v2 + eps)
    t2 = be2 + s2 * (b2 - m2)
    return dict(w1_hwio=w1, s1=s1, t1=t1, w2_hwio=w2, s2=s2, t2=t2)


def reference(x1_nchw, x2_nchw, p):
    """Pure-JAX f32 reference of the same forward pass."""
    x1 = jnp.transpose(x1_nchw, (0, 2, 3, 1))
    x2 = jnp.transpose(x2_nchw, (0, 2, 3, 1))
    Mh = bilinear_matrix(x1.shape[1], 2 * x1.shape[1])
    Mw = bilinear_matrix(x1.shape[2], 2 * x1.shape[2])
    x1u = jnp.einsum('oh,nhwc->nowc', Mh, x1)
    x1u = jnp.einsum('pw,nowc->nopc', Mw, x1u)
    x = jnp.concatenate([x2, x1u], axis=-1)
    dn = ('NHWC', 'HWIO', 'NHWC')
    y = lax.conv_general_dilated(x, p['w1_hwio'], (1, 1), 'SAME',
                                 dimension_numbers=dn)
    y = jnp.maximum(y * p['s1'] + p['t1'], 0.0)
    y = lax.conv_general_dilated(y, p['w2_hwio'], (1, 1), 'SAME',
                                 dimension_numbers=dn)
    y = jnp.maximum(y * p['s2'] + p['t2'], 0.0)
    return jnp.transpose(y, (0, 3, 1, 2))


if __name__ == "__main__":
    key = jax.random.PRNGKey(0)
    k1, k2, kp = jax.random.split(key, 3)

    N = 2
    C1, C2 = 4, 4                 # x1 channels (low-res), x2 channels (skip)
    in_channels = C1 + C2         # channels after concat = 8
    out_channels = 4
    H1 = W1 = 8                   # x1 spatial (upsampled 2x -> 16)
    H2 = W2 = 16                  # x2 spatial

    # PyTorch-convention NCHW inputs
    x1 = jax.random.normal(k1, (N, C1, H1, W1), jnp.float32)
    x2 = jax.random.normal(k2, (N, C2, H2, W2), jnp.float32)

    params = init_params(kp, in_channels, out_channels)
    ref = reference(x1, x2, params)

    # Default bf16 operands; 4-row strips so top / interior / bottom strip
    # boundary handling is all exercised.
    out_bf16 = jax.block_until_ready(up_forward(x1, x2, params, strip_rows=4))
    assert out_bf16.shape == (N, out_channels, H2, W2)
    assert bool(jnp.allclose(out_bf16, ref, rtol=5e-2, atol=5e-2)), \
        "bf16 mismatch vs reference"

    # f32 operands, auto-chosen strip height: tight check against the reference.
    out_f32 = jax.block_until_ready(
        up_forward(x1, x2, params, compute_dtype=jnp.float32))
    assert out_f32.shape == (N, out_channels, H2, W2)
    assert bool(jnp.allclose(out_f32, ref, rtol=1e-4, atol=1e-4)), \
        "f32 mismatch vs reference"

    print("KERNEL_OK")
</pallas_src>

<mosaic_0001>
module attributes {stable_mosaic.version = 11 : i64} {
  func.func @up_double_conv_kernel(%arg0: i32, %arg1: i32, %arg2: memref<1x20x18x4xbf16, #tpu.memory_space<vmem>>, %arg3: memref<1x20x18x4xbf16, #tpu.memory_space<vmem>>, %arg4: memref<1152x128xbf16, #tpu.memory_space<vmem>>, %arg5: memref<1x128xf32, #tpu.memory_space<vmem>>, %arg6: memref<1x128xf32, #tpu.memory_space<vmem>>, %arg7: memref<1152x128xbf16, #tpu.memory_space<vmem>>, %arg8: memref<1x128xf32, #tpu.memory_space<vmem>>, %arg9: memref<1x128xf32, #tpu.memory_space<vmem>>, %arg10: memref<1x4x16x128xf32, #tpu.memory_space<vmem>>, %arg11: memref<6x16x1152xbf16, #tpu.memory_space<vmem>>, %arg12: memref<6x18x128xbf16, #tpu.memory_space<vmem>>, %arg13: memref<4x16x1152xbf16, #tpu.memory_space<vmem>>) attributes {dimension_semantics = [#tpu.dimension_semantics<parallel>, #tpu.dimension_semantics<parallel>], iteration_bounds = array<i64: 2, 4>, scalar_prefetch = 0 : i64, scratch_operands = 3 : i64, tpu.core_type = #tpu.core_type<tc>, window_params = [{transform_indices = @transform_0, window_bounds = array<i64: 1, 20, 18, 4>}, {transform_indices = @transform_1, window_bounds = array<i64: 1, 20, 18, 4>}, {pipeline_mode = #tpu.pipeline_mode<synchronous>, transform_indices = @transform_2, window_bounds = array<i64: 1152, 128>}, {pipeline_mode = #tpu.pipeline_mode<synchronous>, transform_indices = @transform_3, window_bounds = array<i64: 1, 128>}, {pipeline_mode = #tpu.pipeline_mode<synchronous>, transform_indices = @transform_4, window_bounds = array<i64: 1, 128>}, {pipeline_mode = #tpu.pipeline_mode<synchronous>, transform_indices = @transform_5, window_bounds = array<i64: 1152, 128>}, {pipeline_mode = #tpu.pipeline_mode<synchronous>, transform_indices = @transform_6, window_bounds = array<i64: 1, 128>}, {pipeline_mode = #tpu.pipeline_mode<synchronous>, transform_indices = @transform_7, window_bounds = array<i64: 1, 128>}, {transform_indices = @transform_8, window_bounds = array<i64: 1, 4, 16, 128>}]} {
    %c4_i32 = arith.constant 4 : i32
    %0 = arith.muli %arg1, %c4_i32 : i32
    %cst = arith.constant 0.000000e+00 : bf16
    %1 = vector.broadcast %cst : bf16 to vector<6x16x120xbf16>
    %c0 = arith.constant 0 : index
    %c0_0 = arith.constant 0 : index
    %c8 = arith.constant 8 : index
    %2 = vector.load %arg11[%c0, %c0_0, %c8] : memref<6x16x1152xbf16, #tpu.memory_space<vmem>>, vector<6x16x120xbf16>
    tpu.vector_store %arg11[%c0, %c0_0, %c8], %1 {strides = array<i32>} : memref<6x16x1152xbf16, #tpu.memory_space<vmem>>, vector<6x16x120xbf16>,
    %c0_1 = arith.constant 0 : index
    %c0_2 = arith.constant 0 : index
    %c136 = arith.constant 136 : index
    %3 = vector.load %arg11[%c0_1, %c0_2, %c136] : memref<6x16x1152xbf16, #tpu.memory_space<vmem>>, vector<6x16x120xbf16>
    tpu.vector_store %arg11[%c0_1, %c0_2, %c136], %1 {strides = array<i32>} : memref<6x16x1152xbf16, #tpu.memory_space<vmem>>, vector<6x16x120xbf16>,
    %c0_3 = arith.constant 0 : index
    %c0_4 = arith.constant 0 : index
    %c264 = arith.constant 264 : index
    %4 = vector.load %arg11[%c0_3, %c0_4, %c264] : memref<6x16x1152xbf16, #tpu.memory_space<vmem>>, vector<6x16x120xbf16>
    tpu.vector_store %arg11[%c0_3, %c0_4, %c264], %1 {strides = array<i32>} : memref<6x16x1152xbf16, #tpu.memory_space<vmem>>, vector<6x16x120xbf16>,
    %c0_5 = arith.constant 0 : index
    %c0_6 = arith.constant 0 : index
    %c392 = arith.constant 392 : index
    %5 = vector.load %arg11[%c0_5, %c0_6, %c392] : memref<6x16x1152xbf16, #tpu.memory_space<vmem>>, vector<6x16x120xbf16>
    tpu.vector_store %arg11[%c0_5, %c0_6, %c392], %1 {strides = array<i32>} : memref<6x16x1152xbf16, #tpu.memory_space<vmem>>, vector<6x16x120xbf16>,
    %c0_7 = arith.constant 0 : index
    %c0_8 = arith.constant 0 : index
    %c520 = arith.constant 520 : index
    %6 = vector.load %arg11[%c0_7, %c0_8, %c520] : memref<6x16x1152xbf16, #tpu.memory_space<vmem>>, vector<6x16x120xbf16>
    tpu.vector_store %arg11[%c0_7, %c0_8, %c520], %1 {strides = array<i32>} : memref<6x16x1152xbf16, #tpu.memory_space<vmem>>, vector<6x16x120xbf16>,
    %c0_9 = arith.constant 0 : index
    %c0_10 = arith.constant 0 : index
    %c648 = arith.constant 648 : index
    %7 = vector.load %arg11[%c0_9, %c0_10, %c648] : memref<6x16x1152xbf16, #tpu.memory_space<vmem>>, vector<6x16x120xbf16>
    tpu.vector_store %arg11[%c0_9, %c0_10, %c648], %1 {strides = array<i32>} : memref<6x16x1152xbf16, #tpu.memory_space<vmem>>, vector<6x16x120xbf16>,
    %c0_11 = arith.constant 0 : index
    %c0_12 = arith.constant 0 : index
    %c776 = arith.constant 776 : index
    %8 = vector.load %arg11[%c0_11, %c0_12, %c776] : memref<6x16x1152xbf16, #tpu.memory_space<vmem>>, vector<6x16x120xbf16>
    tpu.vector_store %arg11[%c0_11, %c0_12, %c776], %1 {strides = array<i32>} : memref<6x16x1152xbf16, #tpu.memory_space<vmem>>, vector<6x16x120xbf16>,
    %c0_13 = arith.constant 0 : index
    %c0_14 = arith.constant 0 : index
    %c904 = arith.constant 904 : index
    %9 = vector.load %arg11[%c0_13, %c0_14, %c904] : memref<6x16x1152xbf16, #tpu.memory_space<vmem>>, vector<6x16x120xbf16>
    tpu.vector_store %arg11[%c0_13, %c0_14, %c904], %1 {strides = array<i32>} : memref<6x16x1152xbf16, #tpu.memory_space<vmem>>, vector<6x16x120xbf16>,
    %c0_15 = arith.constant 0 : index
    %c0_16 = arith.constant 0 : index
    %c1032 = arith.constant 1032 : index
    %10 = vector.load %arg11[%c0_15, %c0_16, %c1032] : memref<6x16x1152xbf16, #tpu.memory_space<vmem>>, vector<6x16x120xbf16>
    tpu.vector_store %arg11[%c0_15, %c0_16, %c1032], %1 {strides = array<i32>} : memref<6x16x1152xbf16, #tpu.memory_space<vmem>>, vector<6x16x120xbf16>,
    %c0_i32 = arith.constant 0 : i32
    %11 = arith.addi %0, %c0_i32 : i32
    %c0_17 = arith.constant 0 : index
    %12 = arith.index_cast %11 : i32 to index
    %c0_18 = arith.constant 0 : index
    %c0_19 = arith.constant 0 : index
    %13 = vector.load %arg2[%c0_17, %12, %c0_18, %c0_19] : memref<1x20x18x4xbf16, #tpu.memory_space<vmem>>, vector<1x6x16x4xbf16>
    %14 = vector.shape_cast %13 : vector<1x6x16x4xbf16> to vector<6x16x4xbf16>
    %c0_20 = arith.constant 0 : index
    %c0_21 = arith.constant 0 : index
    %c0_22 = arith.constant 0 : index
    %15 = vector.load %arg11[%c0_20, %c0_21, %c0_22] : memref<6x16x1152xbf16, #tpu.memory_space<vmem>>, vector<6x16x4xbf16>
    tpu.vector_store %arg11[%c0_20, %c0_21, %c0_22], %14 {strides = array<i32>} : memref<6x16x1152xbf16, #tpu.memory_space<vmem>>, vector<6x16x4xbf16>,
    %c0_i32_23 = arith.constant 0 : i32
    %16 = arith.addi %0, %c0_i32_23 : i32
    %c0_24 = arith.constant 0 : index
    %17 = arith.index_cast %16 : i32 to index
    %c0_25 = arith.constant 0 : index
    %c0_26 = arith.constant 0 : index
    %18 = vector.load %arg3[%c0_24, %17, %c0_25, %c0_26] : memref<1x20x18x4xbf16, #tpu.memory_space<vmem>>, vector<1x6x16x4xbf16>
    %19 = vector.shape_cast %18 : vector<1x6x16x4xbf16> to vector<6x16x4xbf16>
    %c0_27 = arith.constant 0 : index
    %c0_28 = arith.constant 0 : index
    %c4 = arith.constant 4 : index
    %20 = vector.load %arg11[%c0_27, %c0_28, %c4] : memref<6x16x1152xbf16, #tpu.memory_space<vmem>>, vector<6x16x4xbf16>
    tpu.vector_store %arg11[%c0_27, %c0_28, %c4], %19 {strides = array<i32>} : memref<6x16x1152xbf16, #tpu.memory_space<vmem>>, vector<6x16x4xbf16>,
    %c0_i32_29 = arith.constant 0 : i32
    %21 = arith.addi %0, %c0_i32_29 : i32
    %c0_30 = arith.constant 0 : index
    %22 = arith.index_cast %21 : i32 to index
    %c1 = arith.constant 1 : index
    %c0_31 = arith.constant 0 : index
    %23 = vector.load %arg2[%c0_30, %22, %c1, %c0_31] : memref<1x20x18x4xbf16, #tpu.memory_space<vmem>>, vector<1x6x16x4xbf16>
    %24 = vector.shape_cast %23 : vector<1x6x16x4xbf16> to vector<6x16x4xbf16>
    %c0_32 = arith.constant 0 : index
    %c0_33 = arith.constant 0 : index
    %c128 = arith.constant 128 : index
    %25 = vector.load %arg11[%c0_32, %c0_33, %c128] : memref<6x16x1152xbf16, #tpu.memory_space<vmem>>, vector<6x16x4xbf16>
    tpu.vector_store %arg11[%c0_32, %c0_33, %c128], %24 {strides = array<i32>} : memref<6x16x1152xbf16, #tpu.memory_space<vmem>>, vector<6x16x4xbf16>,
    %c0_i32_34 = arith.constant 0 : i32
    %26 = arith.addi %0, %c0_i32_34 : i32
    %c0_35 = arith.constant 0 : index
    %27 = arith.index_cast %26 : i32 to index
    %c1_36 = arith.constant 1 : index
    %c0_37 = arith.constant 0 : index
    %28 = vector.load %arg3[%c0_35, %27, %c1_36, %c0_37] : memref<1x20x18x4xbf16, #tpu.memory_space<vmem>>, vector<1x6x16x4xbf16>
    %29 = vector.shape_cast %28 : vector<1x6x16x4xbf16> to vector<6x16x4xbf16>
    %c0_38 = arith.constant 0 : index
    %c0_39 = arith.constant 0 : index
    %c132 = arith.constant 132 : index
    %30 = vector.load %arg11[%c0_38, %c0_39, %c132] : memref<6x16x1152xbf16, #tpu.memory_space<vmem>>, vector<6x16x4xbf16>
    tpu.vector_store %arg11[%c0_38, %c0_39, %c132], %29 {strides = array<i32>} : memref<6x16x1152xbf16, #tpu.memory_space<vmem>>, vector<6x16x4xbf16>,
    %c0_i32_40 = arith.constant 0 : i32
    %31 = arith.addi %0, %c0_i32_40 : i32
    %c0_41 = arith.constant 0 : index
    %32 = arith.index_cast %31 : i32 to index
    %c2 = arith.constant 2 : index
    %c0_42 = arith.constant 0 : index
    %33 = vector.load %arg2[%c0_41, %32, %c2, %c0_42] : memref<1x20x18x4xbf16, #tpu.memory_space<vmem>>, vector<1x6x16x4xbf16>
    %34 = vector.shape_cast %33 : vector<1x6x16x4xbf16> to vector<6x16x4xbf16>
    %c0_43 = arith.constant 0 : index
    %c0_44 = arith.constant 0 : index
    %c256 = arith.constant 256 : index
    %35 = vector.load %arg11[%c0_43, %c0_44, %c256] : memref<6x16x1152xbf16, #tpu.memory_space<vmem>>, vector<6x16x4xbf16>
    tpu.vector_store %arg11[%c0_43, %c0_44, %c256], %34 {strides = array<i32>} : memref<6x16x1152xbf16, #tpu.memory_space<vmem>>, vector<6x16x4xbf16>,
    %c0_i32_45 = arith.constant 0 : i32
    %36 = arith.addi %0, %c0_i32_45 : i32
    %c0_46 = arith.constant 0 : index
    %37 = arith.index_cast %36 : i32 to index
    %c2_47 = arith.constant 2 : index
    %c0_48 = arith.constant 0 : index
    %38 = vector.load %arg3[%c0_46, %37, %c2_47, %c0_48] : memref<1x20x18x4xbf16, #tpu.memory_space<vmem>>, vector<1x6x16x4xbf16>
    %39 = vector.shape_cast %38 : vector<1x6x16x4xbf16> to vector<6x16x4xbf16>
    %c0_49 = arith.constant 0 : index
    %c0_50 = arith.constant 0 : index
    %c260 = arith.constant 260 : index
    %40 = vector.load %arg11[%c0_49, %c0_50, %c260] : memref<6x16x1152xbf16, #tpu.memory_space<vmem>>, vector<6x16x4xbf16>
    tpu.vector_store %arg11[%c0_49, %c0_50, %c260], %39 {strides = array<i32>} : memref<6x16x1152xbf16, #tpu.memory_space<vmem>>, vector<6x16x4xbf16>,
    %c1_i32 = arith.constant 1 : i32
    %41 = arith.addi %0, %c1_i32 : i32
    %c0_51 = arith.constant 0 : index
    %42 = arith.index_cast %41 : i32 to index
    %c0_52 = arith.constant 0 : index
    %c0_53 = arith.constant 0 : index
    %43 = vector.load %arg2[%c0_51, %42, %c0_52, %c0_53] : memref<1x20x18x4xbf16, #tpu.memory_space<vmem>>, vector<1x6x16x4xbf16>
    %44 = vector.shape_cast %43 : vector<1x6x16x4xbf16> to vector<6x16x4xbf16>
    %c0_54 = arith.constant 0 : index
    %c0_55 = arith.constant 0 : index
    %c384 = arith.constant 384 : index
    %45 = vector.load %arg11[%c0_54, %c0_55, %c384] : memref<6x16x1152xbf16, #tpu.memory_space<vmem>>, vector<6x16x4xbf16>
    tpu.vector_store %arg11[%c0_54, %c0_55, %c384], %44 {strides = array<i32>} : memref<6x16x1152xbf16, #tpu.memory_space<vmem>>, vector<6x16x4xbf16>,
    %c1_i32_56 = arith.constant 1 : i32
    %46 = arith.addi %0, %c1_i32_56 : i32
    %c0_57 = arith.constant 0 : index
    %47 = arith.index_cast %46 : i32 to index
    %c0_58 = arith.constant 0 : index
    %c0_59 = arith.constant 0 : index
    %48 = vector.load %arg3[%c0_57, %47, %c0_58, %c0_59] : memref<1x20x18x4xbf16, #tpu.memory_space<vmem>>, vector<1x6x16x4xbf16>
    %49 = vector.shape_cast %48 : vector<1x6x16x4xbf16> to vector<6x16x4xbf16>
    %c0_60 = arith.constant 0 : index
    %c0_61 = arith.constant 0 : index
    %c388 = arith.constant 388 : index
    %50 = vector.load %arg11[%c0_60, %c0_61, %c388] : memref<6x16x1152xbf16, #tpu.memory_space<vmem>>, vector<6x16x4xbf16>
    tpu.vector_store %arg11[%c0_60, %c0_61, %c388], %49 {strides = array<i32>} : memref<6x16x1152xbf16, #tpu.memory_space<vmem>>, vector<6x16x4xbf16>,
    %c1_i32_62 = arith.constant 1 : i32
    %51 = arith.addi %0, %c1_i32_62 : i32
    %c0_63 = arith.constant 0 : index
    %52 = arith.index_cast %51 : i32 to index
    %c1_64 = arith.constant 1 : index
    %c0_65 = arith.constant 0 : index
    %53 = vector.load %arg2[%c0_63, %52, %c1_64, %c0_65] : memref<1x20x18x4xbf16, #tpu.memory_space<vmem>>, vector<1x6x16x4xbf16>
    %54 = vector.shape_cast %53 : vector<1x6x16x4xbf16> to vector<6x16x4xbf16>
    %c0_66 = arith.constant 0 : index
    %c0_67 = arith.constant 0 : index
    %c512 = arith.constant 512 : index
    %55 = vector.load %arg11[%c0_66, %c0_67, %c512] : memref<6x16x1152xbf16, #tpu.memory_space<vmem>>, vector<6x16x4xbf16>
    tpu.vector_store %arg11[%c0_66, %c0_67, %c512], %54 {strides = array<i32>} : memref<6x16x1152xbf16, #tpu.memory_space<vmem>>, vector<6x16x4xbf16>,
    %c1_i32_68 = arith.constant 1 : i32
    %56 = arith.addi %0, %c1_i32_68 : i32
    %c0_69 = arith.constant 0 : index
    %57 = arith.index_cast %56 : i32 to index
    %c1_70 = arith.constant 1 : index
    %c0_71 = arith.constant 0 : index
    %58 = vector.load %arg3[%c0_69, %57, %c1_70, %c0_71] : memref<1x20x18x4xbf16, #tpu.memory_space<vmem>>, vector<1x6x16x4xbf16>
    %59 = vector.shape_cast %58 : vector<1x6x16x4xbf16> to vector<6x16x4xbf16>
    %c0_72 = arith.constant 0 : index
    %c0_73 = arith.constant 0 : index
    %c516 = arith.constant 516 : index
    %60 = vector.load %arg11[%c0_72, %c0_73, %c516] : memref<6x16x1152xbf16, #tpu.memory_space<vmem>>, vector<6x16x4xbf16>
    tpu.vector_store %arg11[%c0_72, %c0_73, %c516], %59 {strides = array<i32>} : memref<6x16x1152xbf16, #tpu.memory_space<vmem>>, vector<6x16x4xbf16>,
    %c1_i32_74 = arith.constant 1 : i32
    %61 = arith.addi %0, %c1_i32_74 : i32
    %c0_75 = arith.constant 0 : index
    %62 = arith.index_cast %61 : i32 to index
    %c2_76 = arith.constant 2 : index
    %c0_77 = arith.constant 0 : index
    %63 = vector.load %arg2[%c0_75, %62, %c2_76, %c0_77] : memref<1x20x18x4xbf16, #tpu.memory_space<vmem>>, vector<1x6x16x4xbf16>
    %64 = vector.shape_cast %63 : vector<1x6x16x4xbf16> to vector<6x16x4xbf16>
    %c0_78 = arith.constant 0 : index
    %c0_79 = arith.constant 0 : index
    %c640 = arith.constant 640 : index
    %65 = vector.load %arg11[%c0_78, %c0_79, %c640] : memref<6x16x1152xbf16, #tpu.memory_space<vmem>>, vector<6x16x4xbf16>
    tpu.vector_store %arg11[%c0_78, %c0_79, %c640], %64 {strides = array<i32>} : memref<6x16x1152xbf16, #tpu.memory_space<vmem>>, vector<6x16x4xbf16>,
    %c1_i32_80 = arith.constant 1 : i32
    %66 = arith.addi %0, %c1_i32_80 : i32
    %c0_81 = arith.constant 0 : index
    %67 = arith.index_cast %66 : i32 to index
    %c2_82 = arith.constant 2 : index
    %c0_83 = arith.constant 0 : index
    %68 = vector.load %arg3[%c0_81, %67, %c2_82, %c0_83] : memref<1x20x18x4xbf16, #tpu.memory_space<vmem>>, vector<1x6x16x4xbf16>
    %69 = vector.shape_cast %68 : vector<1x6x16x4xbf16> to vector<6x16x4xbf16>
    %c0_84 = arith.constant 0 : index
    %c0_85 = arith.constant 0 : index
    %c644 = arith.constant 644 : index
    %70 = vector.load %arg11[%c0_84, %c0_85, %c644] : memref<6x16x1152xbf16, #tpu.memory_space<vmem>>, vector<6x16x4xbf16>
    tpu.vector_store %arg11[%c0_84, %c0_85, %c644], %69 {strides = array<i32>} : memref<6x16x1152xbf16, #tpu.memory_space<vmem>>, vector<6x16x4xbf16>,
    %c2_i32 = arith.constant 2 : i32
    %71 = arith.addi %0, %c2_i32 : i32
    %c0_86 = arith.constant 0 : index
    %72 = arith.index_cast %71 : i32 to index
    %c0_87 = arith.constant 0 : index
    %c0_88 = arith.constant 0 : index
    %73 = vector.load %arg2[%c0_86, %72, %c0_87, %c0_88] : memref<1x20x18x4xbf16, #tpu.memory_space<vmem>>, vector<1x6x16x4xbf16>
    %74 = vector.shape_cast %73 : vector<1x6x16x4xbf16> to vector<6x16x4xbf16>
    %c0_89 = arith.constant 0 : index
    %c0_90 = arith.constant 0 : index
    %c768 = arith.constant 768 : index
    %75 = vector.load %arg11[%c0_89, %c0_90, %c768] : memref<6x16x1152xbf16, #tpu.memory_space<vmem>>, vector<6x16x4xbf16>
    tpu.vector_store %arg11[%c0_89, %c0_90, %c768], %74 {strides = array<i32>} : memref<6x16x1152xbf16, #tpu.memory_space<vmem>>, vector<6x16x4xbf16>,
    %c2_i32_91 = arith.constant 2 : i32
    %76 = arith.addi %0, %c2_i32_91 : i32
    %c0_92 = arith.constant 0 : index
    %77 = arith.index_cast %76 : i32 to index
    %c0_93 = arith.constant 0 : index
    %c0_94 = arith.constant 0 : index
    %78 = vector.load %arg3[%c0_92, %77, %c0_93, %c0_94] : memref<1x20x18x4xbf16, #tpu.memory_space<vmem>>, vector<1x6x16x4xbf16>
    %79 = vector.shape_cast %78 : vector<1x6x16x4xbf16> to vector<6x16x4xbf16>
    %c0_95 = arith.constant 0 : index
    %c0_96 = arith.constant 0 : index
    %c772 = arith.constant 772 : index
    %80 = vector.load %arg11[%c0_95, %c0_96, %c772] : memref<6x16x1152xbf16, #tpu.memory_space<vmem>>, vector<6x16x4xbf16>
    tpu.vector_store %arg11[%c0_95, %c0_96, %c772], %79 {strides = array<i32>} : memref<6x16x1152xbf16, #tpu.memory_space<vmem>>, vector<6x16x4xbf16>,
    %c2_i32_97 = arith.constant 2 : i32
    %81 = arith.addi %0, %c2_i32_97 : i32
    %c0_98 = arith.constant 0 : index
    %82 = arith.index_cast %81 : i32 to index
    %c1_99 = arith.constant 1 : index
    %c0_100 = arith.constant 0 : index
    %83 = vector.load %arg2[%c0_98, %82, %c1_99, %c0_100] : memref<1x20x18x4xbf16, #tpu.memory_space<vmem>>, vector<1x6x16x4xbf16>
    %84 = vector.shape_cast %83 : vector<1x6x16x4xbf16> to vector<6x16x4xbf16>
    %c0_101 = arith.constant 0 : index
    %c0_102 = arith.constant 0 : index
    %c896 = arith.constant 896 : index
    %85 = vector.load %arg11[%c0_101, %c0_102, %c896] : memref<6x16x1152xbf16, #tpu.memory_space<vmem>>, vector<6x16x4xbf16>
    tpu.vector_store %arg11[%c0_101, %c0_102, %c896], %84 {strides = array<i32>} : memref<6x16x1152xbf16, #tpu.memory_space<vmem>>, vector<6x16x4xbf16>,
    %c2_i32_103 = arith.constant 2 : i32
    %86 = arith.addi %0, %c2_i32_103 : i32
    %c0_104 = arith.constant 0 : index
    %87 = arith.index_cast %86 : i32 to index
    %c1_105 = arith.constant 1 : index
    %c0_106 = arith.constant 0 : index
    %88 = vector.load %arg3[%c0_104, %87, %c1_105, %c0_106] : memref<1x20x18x4xbf16, #tpu.memory_space<vmem>>, vector<1x6x16x4xbf16>
    %89 = vector.shape_cast %88 : vector<1x6x16x4xbf16> to vector<6x16x4xbf16>
    %c0_107 = arith.constant 0 : index
    %c0_108 = arith.constant 0 : index
    %c900 = arith.constant 900 : index
    %90 = vector.load %arg11[%c0_107, %c0_108, %c900] : memref<6x16x1152xbf16, #tpu.memory_space<vmem>>, vector<6x16x4xbf16>
    tpu.vector_store %arg11[%c0_107, %c0_108, %c900], %89 {strides = array<i32>} : memref<6x16x1152xbf16, #tpu.memory_space<vmem>>, vector<6x16x4xbf16>,
    %c2_i32_109 = arith.constant 2 : i32
    %91 = arith.addi %0, %c2_i32_109 : i32
    %c0_110 = arith.constant 0 : index
    %92 = arith.index_cast %91 : i32 to index
    %c2_111 = arith.constant 2 : index
    %c0_112 = arith.constant 0 : index
    %93 = vector.load %arg2[%c0_110, %92, %c2_111, %c0_112] : memref<1x20x18x4xbf16, #tpu.memory_space<vmem>>, vector<1x6x16x4xbf16>
    %94 = vector.shape_cast %93 : vector<1x6x16x4xbf16> to vector<6x16x4xbf16>
    %c0_113 = arith.constant 0 : index
    %c0_114 = arith.constant 0 : index
    %c1024 = arith.constant 1024 : index
    %95 = vector.load %arg11[%c0_113, %c0_114, %c1024] : memref<6x16x1152xbf16, #tpu.memory_space<vmem>>, vector<6x16x4xbf16>
    tpu.vector_store %arg11[%c0_113, %c0_114, %c1024], %94 {strides = array<i32>} : memref<6x16x1152xbf16, #tpu.memory_space<vmem>>, vector<6x16x4xbf16>,
    %c2_i32_115 = arith.constant 2 : i32
    %96 = arith.addi %0, %c2_i32_115 : i32
    %c0_116 = arith.constant 0 : index
    %97 = arith.index_cast %96 : i32 to index
    %c2_117 = arith.constant 2 : index
    %c0_118 = arith.constant 0 : index
    %98 = vector.load %arg3[%c0_116, %97, %c2_117, %c0_118] : memref<1x20x18x4xbf16, #tpu.memory_space<vmem>>, vector<1x6x16x4xbf16>
    %99 = vector.shape_cast %98 : vector<1x6x16x4xbf16> to vector<6x16x4xbf16>
    %c0_119 = arith.constant 0 : index
    %c0_120 = arith.constant 0 : index
    %c1028 = arith.constant 1028 : index
    %100 = vector.load %arg11[%c0_119, %c0_120, %c1028] : memref<6x16x1152xbf16, #tpu.memory_space<vmem>>, vector<6x16x4xbf16>
    tpu.vector_store %arg11[%c0_119, %c0_120, %c1028], %99 {strides = array<i32>} : memref<6x16x1152xbf16, #tpu.memory_space<vmem>>, vector<6x16x4xbf16>,
    %c0_121 = arith.constant 0 : index
    %c0_122 = arith.constant 0 : index
    %c0_123 = arith.constant 0 : index
    %101 = vector.load %arg11[%c0_121, %c0_122, %c0_123] : memref<6x16x1152xbf16, #tpu.memory_space<vmem>>, vector<6x16x1152xbf16>
    %102 = vector.shape_cast %101 : vector<6x16x1152xbf16> to vector<96x1152xbf16>
    %c0_124 = arith.constant 0 : index
    %c0_125 = arith.constant 0 : index
    %103 = vector.load %arg4[%c0_124, %c0_125] : memref<1152x128xbf16, #tpu.memory_space<vmem>>, vector<1152x128xbf16>
    %cst_126 = arith.constant dense<0.000000e+00> : vector<96x128xf32>
    %104 = tpu.matmul %102, %103, %cst_126 {dimension_numbers = #tpu.dot_dimension_numbers<[1], [0], [0], [1], [0, 0, 1, 1], [], []>} : vector<96x1152xbf16>, vector<1152x128xbf16>, vector<96x128xf32> -> vector<96x128xf32>
    %c0_127 = arith.constant 0 : index
    %c0_128 = arith.constant 0 : index
    %105 = vector.load %arg5[%c0_127, %c0_128] : memref<1x128xf32, #tpu.memory_space<vmem>>, vector<1x128xf32>
    %106 = vector.broadcast %105 : vector<1x128xf32> to vector<96x128xf32>
    %107 = arith.mulf %104, %106 : vector<96x128xf32>
    %c0_129 = arith.constant 0 : index
    %c0_130 = arith.constant 0 : index
    %108 = vector.load %arg6[%c0_129, %c0_130] : memref<1x128xf32, #tpu.memory_space<vmem>>, vector<1x128xf32>
    %109 = vector.broadcast %108 : vector<1x128xf32> to vector<96x128xf32>
    %110 = arith.addf %107, %109 : vector<96x128xf32>
    %cst_131 = arith.constant 0.000000e+00 : f32
    %111 = vector.broadcast %cst_131 : f32 to vector<96x128xf32>
    %112 = arith.maximumf %110, %111 : vector<96x128xf32>
    %cst_132 = arith.constant 0.000000e+00 : bf16
    %113 = vector.broadcast %cst_132 : bf16 to vector<6x1x128xbf16>
    %c0_133 = arith.constant 0 : index
    %c0_134 = arith.constant 0 : index
    %c0_135 = arith.constant 0 : index
    %114 = vector.load %arg12[%c0_133, %c0_134, %c0_135] : memref<6x18x128xbf16, #tpu.memory_space<vmem>>, vector<6x1x128xbf16>
    tpu.vector_store %arg12[%c0_133, %c0_134, %c0_135], %113 {strides = array<i32>} : memref<6x18x128xbf16, #tpu.memory_space<vmem>>, vector<6x1x128xbf16>,
    %c0_136 = arith.constant 0 : index
    %c17 = arith.constant 17 : index
    %c0_137 = arith.constant 0 : index
    %115 = vector.load %arg12[%c0_136, %c17, %c0_137] : memref<6x18x128xbf16, #tpu.memory_space<vmem>>, vector<6x1x128xbf16>
    tpu.vector_store %arg12[%c0_136, %c17, %c0_137], %113 {strides = array<i32>} : memref<6x18x128xbf16, #tpu.memory_space<vmem>>, vector<6x1x128xbf16>,
    %116 = vector.shape_cast %112 : vector<96x128xf32> to vector<6x16x128xf32>
    %117 = arith.truncf %116 : vector<6x16x128xf32> to vector<6x16x128xbf16>
    %c0_138 = arith.constant 0 : index
    %c1_139 = arith.constant 1 : index
    %c0_140 = arith.constant 0 : index
    %118 = vector.load %arg12[%c0_138, %c1_139, %c0_140] : memref<6x18x128xbf16, #tpu.memory_space<vmem>>, vector<6x16x128xbf16>
    tpu.vector_store %arg12[%c0_138, %c1_139, %c0_140], %117 {strides = array<i32>} : memref<6x18x128xbf16, #tpu.memory_space<vmem>>, vector<6x16x128xbf16>,
    %cst_141 = arith.constant 0.000000e+00 : bf16
    %119 = vector.broadcast %cst_141 : bf16 to vector<1x18x128xbf16>
    %c0_i32_142 = arith.constant 0 : i32
    %120 = arith.cmpi eq, %arg1, %c0_i32_142 : i32
    %121 = arith.extui %120 : i1 to i32
    %c0_i32_143 = arith.constant 0 : i32
    %122 = arith.cmpi ne, %121, %c0_i32_143 : i32
    scf.if %122 {
      %c0_214 = arith.constant 0 : index
      %c0_215 = arith.constant 0 : index
      %c0_216 = arith.constant 0 : index
      %160 = vector.load %arg12[%c0_214, %c0_215, %c0_216] : memref<6x18x128xbf16, #tpu.memory_space<vmem>>, vector<1x18x128xbf16>
      tpu.vector_store %arg12[%c0_214, %c0_215, %c0_216], %119 {strides = array<i32>} : memref<6x18x128xbf16, #tpu.memory_space<vmem>>, vector<1x18x128xbf16>,
    } else {
    }
    %c3_i32 = arith.constant 3 : i32
    %123 = arith.cmpi eq, %arg1, %c3_i32 : i32
    %124 = arith.extui %123 : i1 to i32
    %c0_i32_144 = arith.constant 0 : i32
    %125 = arith.cmpi ne, %124, %c0_i32_144 : i32
    scf.if %125 {
      %c5 = arith.constant 5 : index
      %c0_214 = arith.constant 0 : index
      %c0_215 = arith.constant 0 : index
      %160 = vector.load %arg12[%c5, %c0_214, %c0_215] : memref<6x18x128xbf16, #tpu.memory_space<vmem>>, vector<1x18x128xbf16>
      tpu.vector_store %arg12[%c5, %c0_214, %c0_215], %119 {strides = array<i32>} : memref<6x18x128xbf16, #tpu.memory_space<vmem>>, vector<1x18x128xbf16>,
    } else {
    }
    %c0_145 = arith.constant 0 : index
    %c0_146 = arith.constant 0 : index
    %c0_147 = arith.constant 0 : index
    %126 = vector.load %arg12[%c0_145, %c0_146, %c0_147] : memref<6x18x128xbf16, #tpu.memory_space<vmem>>, vector<4x16x128xbf16>
    %c0_148 = arith.constant 0 : index
    %c0_149 = arith.constant 0 : index
    %c0_150 = arith.constant 0 : index
    %127 = vector.load %arg13[%c0_148, %c0_149, %c0_150] : memref<4x16x1152xbf16, #tpu.memory_space<vmem>>, vector<4x16x128xbf16>
    tpu.vector_store %arg13[%c0_148, %c0_149, %c0_150], %126 {strides = array<i32>} : memref<4x16x1152xbf16, #tpu.memory_space<vmem>>, vector<4x16x128xbf16>,
    %c0_151 = arith.constant 0 : index
    %c1_152 = arith.constant 1 : index
    %c0_153 = arith.constant 0 : index
    %128 = vector.load %arg12[%c0_151, %c1_152, %c0_153] : memref<6x18x128xbf16, #tpu.memory_space<vmem>>, vector<4x16x128xbf16>
    %c0_154 = arith.constant 0 : index
    %c0_155 = arith.constant 0 : index
    %c128_156 = arith.constant 128 : index
    %129 = vector.load %arg13[%c0_154, %c0_155, %c128_156] : memref<4x16x1152xbf16, #tpu.memory_space<vmem>>, vector<4x16x128xbf16>
    tpu.vector_store %arg13[%c0_154, %c0_155, %c128_156], %128 {strides = array<i32>} : memref<4x16x1152xbf16, #tpu.memory_space<vmem>>, vector<4x16x128xbf16>,
    %c0_157 = arith.constant 0 : index
    %c2_158 = arith.constant 2 : index
    %c0_159 = arith.constant 0 : index
    %130 = vector.load %arg12[%c0_157, %c2_158, %c0_159] : memref<6x18x128xbf16, #tpu.memory_space<vmem>>, vector<4x16x128xbf16>
    %c0_160 = arith.constant 0 : index
    %c0_161 = arith.constant 0 : index
    %c256_162 = arith.constant 256 : index
    %131 = vector.load %arg13[%c0_160, %c0_161, %c256_162] : memref<4x16x1152xbf16, #tpu.memory_space<vmem>>, vector<4x16x128xbf16>
    tpu.vector_store %arg13[%c0_160, %c0_161, %c256_162], %130 {strides = array<i32>} : memref<4x16x1152xbf16, #tpu.memory_space<vmem>>, vector<4x16x128xbf16>,
    %c1_163 = arith.constant 1 : index
    %c0_164 = arith.constant 0 : index
    %c0_165 = arith.constant 0 : index
    %132 = vector.load %arg12[%c1_163, %c0_164, %c0_165] : memref<6x18x128xbf16, #tpu.memory_space<vmem>>, vector<4x16x128xbf16>
    %c0_166 = arith.constant 0 : index
    %c0_167 = arith.constant 0 : index
    %c384_168 = arith.constant 384 : index
    %133 = vector.load %arg13[%c0_166, %c0_167, %c384_168] : memref<4x16x1152xbf16, #tpu.memory_space<vmem>>, vector<4x16x128xbf16>
    tpu.vector_store %arg13[%c0_166, %c0_167, %c384_168], %132 {strides = array<i32>} : memref<4x16x1152xbf16, #tpu.memory_space<vmem>>, vector<4x16x128xbf16>,
    %c1_169 = arith.constant 1 : index
    %c1_170 = arith.constant 1 : index
    %c0_171 = arith.constant 0 : index
    %134 = vector.load %arg12[%c1_169, %c1_170, %c0_171] : memref<6x18x128xbf16, #tpu.memory_space<vmem>>, vector<4x16x128xbf16>
    %c0_172 = arith.constant 0 : index
    %c0_173 = arith.constant 0 : index
    %c512_174 = arith.constant 512 : index
    %135 = vector.load %arg13[%c0_172, %c0_173, %c512_174] : memref<4x16x1152xbf16, #tpu.memory_space<vmem>>, vector<4x16x128xbf16>
    tpu.vector_store %arg13[%c0_172, %c0_173, %c512_174], %134 {strides = array<i32>} : memref<4x16x1152xbf16, #tpu.memory_space<vmem>>, vector<4x16x128xbf16>,
    %c1_175 = arith.constant 1 : index
    %c2_176 = arith.constant 2 : index
    %c0_177 = arith.constant 0 : index
    %136 = vector.load %arg12[%c1_175, %c2_176, %c0_177] : memref<6x18x128xbf16, #tpu.memory_space<vmem>>, vector<4x16x128xbf16>
    %c0_178 = arith.constant 0 : index
    %c0_179 = arith.constant 0 : index
    %c640_180 = arith.constant 640 : index
    %137 = vector.load %arg13[%c0_178, %c0_179, %c640_180] : memref<4x16x1152xbf16, #tpu.memory_space<vmem>>, vector<4x16x128xbf16>
    tpu.vector_store %arg13[%c0_178, %c0_179, %c640_180], %136 {strides = array<i32>} : memref<4x16x1152xbf16, #tpu.memory_space<vmem>>, vector<4x16x128xbf16>,
    %c2_181 = arith.constant 2 : index
    %c0_182 = arith.constant 0 : index
    %c0_183 = arith.constant 0 : index
    %138 = vector.load %arg12[%c2_181, %c0_182, %c0_183] : memref<6x18x128xbf16, #tpu.memory_space<vmem>>, vector<4x16x128xbf16>
    %c0_184 = arith.constant 0 : index
    %c0_185 = arith.constant 0 : index
    %c768_186 = arith.constant 768 : index
    %139 = vector.load %arg13[%c0_184, %c0_185, %c768_186] : memref<4x16x1152xbf16, #tpu.memory_space<vmem>>, vector<4x16x128xbf16>
    tpu.vector_store %arg13[%c0_184, %c0_185, %c768_186], %138 {strides = array<i32>} : memref<4x16x1152xbf16, #tpu.memory_space<vmem>>, vector<4x16x128xbf16>,
    %c2_187 = arith.constant 2 : index
    %c1_188 = arith.constant 1 : index
    %c0_189 = arith.constant 0 : index
    %140 = vector.load %arg12[%c2_187, %c1_188, %c0_189] : memref<6x18x128xbf16, #tpu.memory_space<vmem>>, vector<4x16x128xbf16>
    %c0_190 = arith.constant 0 : index
    %c0_191 = arith.constant 0 : index
    %c896_192 = arith.constant 896 : index
    %141 = vector.load %arg13[%c0_190, %c0_191, %c896_192] : memref<4x16x1152xbf16, #tpu.memory_space<vmem>>, vector<4x16x128xbf16>
    tpu.vector_store %arg13[%c0_190, %c0_191, %c896_192], %140 {strides = array<i32>} : memref<4x16x1152xbf16, #tpu.memory_space<vmem>>, vector<4x16x128xbf16>,
    %c2_193 = arith.constant 2 : index
    %c2_194 = arith.constant 2 : index
    %c0_195 = arith.constant 0 : index
    %142 = vector.load %arg12[%c2_193, %c2_194, %c0_195] : memref<6x18x128xbf16, #tpu.memory_space<vmem>>, vector<4x16x128xbf16>
    %c0_196 = arith.constant 0 : index
    %c0_197 = arith.constant 0 : index
    %c1024_198 = arith.constant 1024 : index
    %143 = vector.load %arg13[%c0_196, %c0_197, %c1024_198] : memref<4x16x1152xbf16, #tpu.memory_space<vmem>>, vector<4x16x128xbf16>
    tpu.vector_store %arg13[%c0_196, %c0_197, %c1024_198], %142 {strides = array<i32>} : memref<4x16x1152xbf16, #tpu.memory_space<vmem>>, vector<4x16x128xbf16>,
    %c0_199 = arith.constant 0 : index
    %c0_200 = arith.constant 0 : index
    %c0_201 = arith.constant 0 : index
    %144 = vector.load %arg13[%c0_199, %c0_200, %c0_201] : memref<4x16x1152xbf16, #tpu.memory_space<vmem>>, vector<4x16x1152xbf16>
    %145 = vector.shape_cast %144 : vector<4x16x1152xbf16> to vector<64x1152xbf16>
    %c0_202 = arith.constant 0 : index
    %c0_203 = arith.constant 0 : index
    %146 = vector.load %arg7[%c0_202, %c0_203] : memref<1152x128xbf16, #tpu.memory_space<vmem>>, vector<1152x128xbf16>
    %cst_204 = arith.constant dense<0.000000e+00> : vector<64x128xf32>
    %147 = tpu.matmul %145, %146, %cst_204 {dimension_numbers = #tpu.dot_dimension_numbers<[1], [0], [0], [1], [0, 0, 1, 1], [], []>} : vector<64x1152xbf16>, vector<1152x128xbf16>, vector<64x128xf32> -> vector<64x128xf32>
    %c0_205 = arith.constant 0 : index
    %c0_206 = arith.constant 0 : index
    %148 = vector.load %arg8[%c0_205, %c0_206] : memref<1x128xf32, #tpu.memory_space<vmem>>, vector<1x128xf32>
    %149 = vector.broadcast %148 : vector<1x128xf32> to vector<64x128xf32>
    %150 = arith.mulf %147, %149 : vector<64x128xf32>
    %c0_207 = arith.constant 0 : index
    %c0_208 = arith.constant 0 : index
    %151 = vector.load %arg9[%c0_207, %c0_208] : memref<1x128xf32, #tpu.memory_space<vmem>>, vector<1x128xf32>
    %152 = vector.broadcast %151 : vector<1x128xf32> to vector<64x128xf32>
    %153 = arith.addf %150, %152 : vector<64x128xf32>
    %cst_209 = arith.constant 0.000000e+00 : f32
    %154 = vector.broadcast %cst_209 : f32 to vector<64x128xf32>
    %155 = arith.maximumf %153, %154 : vector<64x128xf32>
    %156 = vector.shape_cast %155 : vector<64x128xf32> to vector<4x16x128xf32>
    %c0_210 = arith.constant 0 : index
    %c0_211 = arith.constant 0 : index
    %c0_212 = arith.constant 0 : index
    %c0_213 = arith.constant 0 : index
    %157 = vector.load %arg10[%c0_210, %c0_211, %c0_212, %c0_213] : memref<1x4x16x128xf32, #tpu.memory_space<vmem>>, vector<1x4x16x128xf32>
    %158 = vector.shape_cast %157 : vector<1x4x16x128xf32> to vector<4x16x128xf32>
    %159 = vector.shape_cast %156 : vector<4x16x128xf32> to vector<1x4x16x128xf32>
    tpu.vector_store %arg10[%c0_210, %c0_211, %c0_212, %c0_213], %159 {strides = array<i32>} : memref<1x4x16x128xf32, #tpu.memory_space<vmem>>, vector<1x4x16x128xf32>,
    return
  }
  func.func @transform_0(%arg0: i32, %arg1: i32) -> (i32, i32, i32, i32) {
    %c0_i32 = arith.constant 0 : i32
    %c0_i32_0 = arith.constant 0 : i32
    %c0_i32_1 = arith.constant 0 : i32
    %c0_i32_2 = arith.constant 0 : i32
    return %arg0, %c0_i32, %c0_i32_0, %c0_i32_1 : i32, i32, i32, i32
  }
  func.func @transform_1(%arg0: i32, %arg1: i32) -> (i32, i32, i32, i32) {
    %c0_i32 = arith.constant 0 : i32
    %c0_i32_0 = arith.constant 0 : i32
    %c0_i32_1 = arith.constant 0 : i32
    %c0_i32_2 = arith.constant 0 : i32
    return %arg0, %c0_i32, %c0_i32_0, %c0_i32_1 : i32, i32, i32, i32
  }
  func.func @transform_2(%arg0: i32, %arg1: i32) -> (i32, i32) {
    %c0_i32 = arith.constant 0 : i32
    %c0_i32_0 = arith.constant 0 : i32
    %c0_i32_1 = arith.constant 0 : i32
    return %c0_i32, %c0_i32_0 : i32, i32
  }
  func.func @transform_3(%arg0: i32, %arg1: i32) -> (i32, i32) {
    %c0_i32 = arith.constant 0 : i32
    %c0_i32_0 = arith.constant 0 : i32
    %c0_i32_1 = arith.constant 0 : i32
    return %c0_i32, %c0_i32_0 : i32, i32
  }
  func.func @transform_4(%arg0: i32, %arg1: i32) -> (i32, i32) {
    %c0_i32 = arith.constant 0 : i32
    %c0_i32_0 = arith.constant 0 : i32
    %c0_i32_1 = arith.constant 0 : i32
    return %c0_i32, %c0_i32_0 : i32, i32
  }
  func.func @transform_5(%arg0: i32, %arg1: i32) -> (i32, i32) {
    %c0_i32 = arith.constant 0 : i32
    %c0_i32_0 = arith.constant 0 : i32
    %c0_i32_1 = arith.constant 0 : i32
    return %c0_i32, %c0_i32_0 : i32, i32
  }
  func.func @transform_6(%arg0: i32, %arg1: i32) -> (i32, i32) {
    %c0_i32 = arith.constant 0 : i32
    %c0_i32_0 = arith.constant 0 : i32
    %c0_i32_1 = arith.constant 0 : i32
    return %c0_i32, %c0_i32_0 : i32, i32
  }
  func.func @transform_7(%arg0: i32, %arg1: i32) -> (i32, i32) {
    %c0_i32 = arith.constant 0 : i32
    %c0_i32_0 = arith.constant 0 : i32
    %c0_i32_1 = arith.constant 0 : i32
    return %c0_i32, %c0_i32_0 : i32, i32
  }
  func.func @transform_8(%arg0: i32, %arg1: i32) -> (i32, i32, i32, i32) {
    %c0_i32 = arith.constant 0 : i32
    %c0_i32_0 = arith.constant 0 : i32
    %c0_i32_1 = arith.constant 0 : i32
    return %arg0, %arg1, %c0_i32, %c0_i32_0 : i32, i32, i32, i32
  }
}

</mosaic_0001>

<llo_original>
// kernel: tpu_custom_call.1
$region0: #{tpu_custom_call.1}
  #allocation0 [shape = 'u32[]', space=smem, size = 0x4, offset = 0x4, fixed_abs, tag = 'smem constant byte address 0x4 - core index']
  #allocation1 [shape = 'u32[144,128]{1,0:T(1,128)}', space=vmem, size = 0x12000, scoped, tag = 'internal scratch']
  #allocation2 [shape = 'bf16[6,16,1152]{2,1,0:T(8,128)(2,1)}', space=vmem, size = 0x36000, scoped, tag = 'scratch operand']
  #allocation3 [shape = 'bf16[6,18,128]{2,1,0:T(8,128)(2,1)}', space=vmem, size = 0x9000, scoped, tag = 'scratch operand']
  #allocation4 [shape = 'bf16[4,16,1152]{2,1,0:T(8,128)(2,1)}', space=vmem, size = 0x24000, scoped, tag = 'scratch operand']
  %s0 = inlined_call_operand.vmem [shape: bf16[2,20,18,4], index: 0, kind: input, shape index: {}]
  %s1 = inlined_call_operand.vmem [shape: bf16[2,20,18,4], index: 1, kind: input, shape index: {}]
  %s2 = inlined_call_operand.vmem [shape: bf16[1152,128], index: 2, kind: input, shape index: {}]
  %s3 = inlined_call_operand.vmem [shape: f32[1,128], index: 3, kind: input, shape index: {}]
  %s4 = inlined_call_operand.vmem [shape: f32[1,128], index: 4, kind: input, shape index: {}]
  %s5 = inlined_call_operand.hbm [shape: bf16[1152,128], index: 5, kind: input, shape index: {}]
  %s6 = inlined_call_operand.vmem [shape: f32[1,128], index: 6, kind: input, shape index: {}]
  %s7 = inlined_call_operand.vmem [shape: f32[1,128], index: 7, kind: input, shape index: {}]
  %s8 = inlined_call_operand.hbm [shape: f32[2,16,16,128], index: 8, kind: output, shape index: {}]
  %s9 = sld [smem:[#allocation0]]
  $region77: #{tpu_custom_call.1} parent=0
    _
  %s11 = ssub.s32 1, %s9
  %s12 = scalar_select 0, %s11, %s9
  $region1: #{tpu_custom_call.1} parent=0
    #allocation5 [shape = 'u8[294912]{0}', space=vmem, size = 0x48000, scoped, tag = 'input window, operand 5, single buffered']
    #allocation6 [shape = 's32[2]{0}', space=sflag, size = 0x8, scoped, tag = 'scoped memory for tpu_custom_call.1']
    #allocation7 [shape = 's32[2]{0}', space=sflag, size = 0x8, scoped, tag = 'scoped memory for tpu_custom_call.1']
    #allocation8 [shape = 'u8[65536]{0}', space=vmem, size = 0x10000, scoped, tag = 'output window, operand 0']
    %13 = vsyncpa [#allocation6], 0
    %14 = vsyncpa [#allocation7], 0
    %s15 = scalar_lea.sflag [#allocation7], 1
    %16 = vsyncpa %s15, 0
    loop: start=0, step=1, limit=10
    $region2: #{tpu_custom_call.1} parent=1 // loop_pre_header
      _
    $region3: #{tpu_custom_call.1} parent=1 // loop_header
      %s18 = sphi 0, %s22
      %p19 = scmp.ge.s32.totalorder %s18, 10
      %s25 = sphi 0, %s37
      %s26 = sphi 0, %s33
      %s27 = sphi 0, %s25
      %s28 = sphi 0, %s26
      %s29 = sphi 0, %s27
      %s30 = sphi 0, %s28
      %s40 = sphi 0, %s42
      %s43 = sphi 0, %s40
      %s44 = sphi 0, %s43
      %s60 = sphi 0, %s44
      %s66 = sphi 0, %s68
      %s69 = sphi 0, %s66
      %s70 = sphi 0, %s69
      %s86 = sphi 0, %s70
      %s90 = sphi 0, %s90
      %s92 = sphi 0, %s90
      %s93 = sphi 0, %s92
      %s107 = sphi 0, %s93
      %s111 = sphi 0, %s111
      %s113 = sphi 0, %s111
      %s114 = sphi 0, %s113
      %s128 = sphi 0, %s114
      %s132 = sphi 0, %s132
      %s134 = sphi 0, %s132
      %s135 = sphi 0, %s134
      %s149 = sphi 0, %s135
      %s153 = sphi 0, %s153
      %s155 = sphi 0, %s153
      %s156 = sphi 0, %s155
      %s170 = sphi 0, %s156
      %s174 = sphi 0, %s174
      %s176 = sphi 0, %s174
      %s177 = sphi 0, %s176
      %s191 = sphi 0, %s177
      %s195 = sphi 0, %s195
      %s197 = sphi 0, %s195
      %s198 = sphi 0, %s197
      %s212 = sphi 0, %s198
      %s220 = sphi 0, %s222
      %s223 = sphi 0, %s220
      %s224 = sphi 0, %s223
      %s240 = sphi 0, %s224
    $region4: #{tpu_custom_call.1} parent=1 // loop_header_branch
      %21 = sbr.rel (%p19) target = $region8
    $region5: #{tpu_custom_call.1} parent=1 // loop_body
      %s23 = ssub.s32 %s18, 1
      %s24 = ssub.s32 %s18, 2
      %s31 = sadd.s32 1, %s26
      %p32 = scmp.ge.s32.totalorder %s31, 4
      %s33 = scalar_select %p32, 0, %s31
      %s34 = sadd.s32 1, %s25
      %s35 = scalar_select %p32, %s34, %s25
      %p36 = scmp.ge.s32.totalorder %s35, 2
      %s37 = scalar_select %p36, 0, %s35
      %s38 = ssub.s32 %s25, %s37
      %p39 = scmp.eq.s32.totalorder %s38, 0
      %s41 = sadd.s32 %s40, 1
      %s42 = scalar_select %p39, %s40, %s41
      %p45 = pneg %p39
      %p46 = scmp.eq.s32.totalorder %s18, 7
      %p47 = por %p45, %p46
      %p48 = scmp.ne.s32.totalorder %s40, %s43
      %p49 = scmp.eq.s32.totalorder %s18, 0
      %p50 = por %p48, %p49
      %p51 = scmp.ne.s32.totalorder %s40, %s43
      %p52 = scmp.eq.s32.totalorder %s23, 7
      %p53 = por %p51, %p52
      %p54 = scmp.ne.s32.totalorder %s43, %s44
      %p55 = scmp.eq.s32.totalorder %s23, 0
      %p56 = por %p54, %p55
      %p57 = scmp.ne.s32.totalorder %s43, %s44
      %p58 = scmp.eq.s32.totalorder %s24, 7
      %p59 = por %p57, %p58
      %p61 = scmp.ne.s32.totalorder %s44, %s60
      %p62 = scmp.eq.s32.totalorder %s24, 0
      %p63 = por %p61, %p62
      %s64 = ssub.s32 %s25, %s37
      %p65 = scmp.eq.s32.totalorder %s64, 0
      %s67 = sadd.s32 %s66, 1
      %s68 = scalar_select %p65, %s66, %s67
      %p71 = pneg %p65
      %p72 = scmp.eq.s32.totalorder %s18, 7
      %p73 = por %p71, %p72
      %p74 = scmp.ne.s32.totalorder %s66, %s69
      %p75 = scmp.eq.s32.totalorder %s18, 0
      %p76 = por %p74, %p75
      %p77 = scmp.ne.s32.totalorder %s66, %s69
      %p78 = scmp.eq.s32.totalorder %s23, 7
      %p79 = por %p77, %p78
      %p80 = scmp.ne.s32.totalorder %s69, %s70
      %p81 = scmp.eq.s32.totalorder %s23, 0
      %p82 = por %p80, %p81
      %p83 = scmp.ne.s32.totalorder %s69, %s70
      %p84 = scmp.eq.s32.totalorder %s24, 7
      %p85 = por %p83, %p84
      %p87 = scmp.ne.s32.totalorder %s70, %s86
      %p88 = scmp.eq.s32.totalorder %s24, 0
      %p89 = por %p87, %p88
      %s91 = sadd.s32 %s90, 1
      %p94 = scmp.eq.s32.totalorder %s18, 7
      %p95 = scmp.ne.s32.totalorder %s90, %s92
      %p96 = scmp.eq.s32.totalorder %s18, 0
      %p97 = por %p95, %p96
      %p98 = scmp.ne.s32.totalorder %s90, %s92
      %p99 = scmp.eq.s32.totalorder %s23, 7
      %p100 = por %p98, %p99
      %p101 = scmp.ne.s32.totalorder %s92, %s93
      %p102 = scmp.eq.s32.totalorder %s23, 0
      %p103 = por %p101, %p102
      %p104 = scmp.ne.s32.totalorder %s92, %s93
      %p105 = scmp.eq.s32.totalorder %s24, 7
      %p106 = por %p104, %p105
      %p108 = scmp.ne.s32.totalorder %s93, %s107
      %p109 = scmp.eq.s32.totalorder %s24, 0
      %p110 = por %p108, %p109
      %s112 = sadd.s32 %s111, 1
      %p115 = scmp.eq.s32.totalorder %s18, 7
      %p116 = scmp.ne.s32.totalorder %s111, %s113
      %p117 = scmp.eq.s32.totalorder %s18, 0
      %p118 = por %p116, %p117
      %p119 = scmp.ne.s32.totalorder %s111, %s113
      %p120 = scmp.eq.s32.totalorder %s23, 7
      %p121 = por %p119, %p120
      %p122 = scmp.ne.s32.totalorder %s113, %s114
      %p123 = scmp.eq.s32.totalorder %s23, 0
      %p124 = por %p122, %p123
      %p125 = scmp.ne.s32.totalorder %s113, %s114
      %p126 = scmp.eq.s32.totalorder %s24, 7
      %p127 = por %p125, %p126
      %p129 = scmp.ne.s32.totalorder %s114, %s128
      %p130 = scmp.eq.s32.totalorder %s24, 0
      %p131 = por %p129, %p130
      %s133 = sadd.s32 %s132, 1
      %p136 = scmp.eq.s32.totalorder %s18, 7
      %p137 = scmp.ne.s32.totalorder %s132, %s134
      %p138 = scmp.eq.s32.totalorder %s18, 0
      %p139 = por %p137, %p138
      %p140 = scmp.ne.s32.totalorder %s132, %s134
      %p141 = scmp.eq.s32.totalorder %s23, 7
      %p142 = por %p140, %p141
      %p143 = scmp.ne.s32.totalorder %s134, %s135
      %p144 = scmp.eq.s32.totalorder %s23, 0
      %p145 = por %p143, %p144
      %p146 = scmp.ne.s32.totalorder %s134, %s135
      %p147 = scmp.eq.s32.totalorder %s24, 7
      %p148 = por %p146, %p147
      %p150 = scmp.ne.s32.totalorder %s135, %s149
      %p151 = scmp.eq.s32.totalorder %s24, 0
      %p152 = por %p150, %p151
      %s154 = sadd.s32 %s153, 1
      %p157 = scmp.eq.s32.totalorder %s18, 7
      %p158 = scmp.ne.s32.totalorder %s153, %s155
      %p159 = scmp.eq.s32.totalorder %s18, 0
      %p160 = por %p158, %p159
      %p161 = scmp.ne.s32.totalorder %s153, %s155
      %p162 = scmp.eq.s32.totalorder %s23, 7
      %p163 = por %p161, %p162
      %p164 = scmp.ne.s32.totalorder %s155, %s156
      %p165 = scmp.eq.s32.totalorder %s23, 0
      %p166 = por %p164, %p165
      %p167 = scmp.ne.s32.totalorder %s155, %s156
      %p168 = scmp.eq.s32.totalorder %s24, 7
      %p169 = por %p167, %p168
      %p171 = scmp.ne.s32.totalorder %s156, %s170
      %p172 = scmp.eq.s32.totalorder %s24, 0
      %p173 = por %p171, %p172
      %s175 = sadd.s32 %s174, 1
      %p178 = scmp.eq.s32.totalorder %s18, 7
      %p179 = scmp.ne.s32.totalorder %s174, %s176
      %p180 = scmp.eq.s32.totalorder %s18, 0
      %p181 = por %p179, %p180
      %p182 = scmp.ne.s32.totalorder %s174, %s176
      %p183 = scmp.eq.s32.totalorder %s23, 7
      %p184 = por %p182, %p183
      %p185 = scmp.ne.s32.totalorder %s176, %s177
      %p186 = scmp.eq.s32.totalorder %s23, 0
      %p187 = por %p185, %p186
      %p188 = scmp.ne.s32.totalorder %s176, %s177
      %p189 = scmp.eq.s32.totalorder %s24, 7
      %p190 = por %p188, %p189
      %p192 = scmp.ne.s32.totalorder %s177, %s191
      %p193 = scmp.eq.s32.totalorder %s24, 0
      %p194 = por %p192, %p193
      %s196 = sadd.s32 %s195, 1
      %p199 = scmp.eq.s32.totalorder %s18, 7
      %p200 = scmp.ne.s32.totalorder %s195, %s197
      %p201 = scmp.eq.s32.totalorder %s18, 0
      %p202 = por %p200, %p201
      %p203 = scmp.ne.s32.totalorder %s195, %s197
      %p204 = scmp.eq.s32.totalorder %s23, 7
      %p205 = por %p203, %p204
      %p206 = scmp.ne.s32.totalorder %s197, %s198
      %p207 = scmp.eq.s32.totalorder %s23, 0
      %p208 = por %p206, %p207
      %p209 = scmp.ne.s32.totalorder %s197, %s198
      %p210 = scmp.eq.s32.totalorder %s24, 7
      %p211 = por %p209, %p210
      %p213 = scmp.ne.s32.totalorder %s198, %s212
      %p214 = scmp.eq.s32.totalorder %s24, 0
      %p215 = por %p213, %p214
      %s216 = ssub.s32 %s25, %s37
      %s217 = ssub.s32 %s26, %s33
      %s218 = sor.u32 %s216, %s217
      %p219 = scmp.eq.s32.totalorder %s218, 0
      %s221 = sadd.s32 %s220, 1
      %s222 = scalar_select %p219, %s220, %s221
      %p225 = pneg %p219
      %p226 = scmp.eq.s32.totalorder %s18, 7
      %p227 = por %p225, %p226
      %p228 = scmp.ne.s32.totalorder %s220, %s223
      %p229 = scmp.eq.s32.totalorder %s18, 0
      %p230 = por %p228, %p229
      %p231 = scmp.ne.s32.totalorder %s220, %s223
      %p232 = scmp.eq.s32.totalorder %s23, 7
      %p233 = por %p231, %p232
      %p234 = scmp.ne.s32.totalorder %s223, %s224
      %p235 = scmp.eq.s32.totalorder %s23, 0
      %p236 = por %p234, %p235
      %p237 = scmp.ne.s32.totalorder %s223, %s224
      %p238 = scmp.eq.s32.totalorder %s24, 7
      %p239 = por %p237, %p238
      %p241 = scmp.ne.s32.totalorder %s224, %s240
      %p242 = scmp.eq.s32.totalorder %s24, 0
      %p243 = por %p241, %p242
      %p244 = scmp.le.s32.totalorder 1, %s18
      %p245 = scmp.lt.s32.totalorder %s18, 9
      %p246 = pnand %p244, %p245
      %p247 = pneg %p246
      // Predicated region
      $region9: #{tpu_custom_call.1} parent=5 // pred_check
        _
      $region10: #{tpu_custom_call.1} parent=5 // pred_check_branch
        %249 = sbr.rel (%p246) target = $region12
      $region11: #{tpu_custom_call.1} parent=5 // pred_region
        %s250 = ssub.s32 %s18, 1
        // Predicated region
        $region13: #{tpu_custom_call.1} parent=11 // pred_check
          %p251 = pneg %p103
        $region14: #{tpu_custom_call.1} parent=11 // pred_check_branch
          %253 = sbr.rel (%p251) target = $region16
        $region15: #{tpu_custom_call.1} parent=11 // pred_region
          _
        $region16: #{tpu_custom_call.1} parent=11 // pred_fallthru
          _
        // Predicated region
        $region17: #{tpu_custom_call.1} parent=11 // pred_check
          %p254 = pneg %p124
        $region18: #{tpu_custom_call.1} parent=11 // pred_check_branch
          %256 = sbr.rel (%p254) target = $region20
        $region19: #{tpu_custom_call.1} parent=11 // pred_region
          _
        $region20: #{tpu_custom_call.1} parent=11 // pred_fallthru
          _
        // Predicated region
        $region21: #{tpu_custom_call.1} parent=11 // pred_check
          %p257 = pneg %p145
        $region22: #{tpu_custom_call.1} parent=11 // pred_check_branch
          %259 = sbr.rel (%p257) target = $region24
        $region23: #{tpu_custom_call.1} parent=11 // pred_region
          _
        $region24: #{tpu_custom_call.1} parent=11 // pred_fallthru
          _
        // Predicated region
        $region25: #{tpu_custom_call.1} parent=11 // pred_check
          %p260 = pneg %p166
        $region26: #{tpu_custom_call.1} parent=11 // pred_check_branch
          %262 = sbr.rel (%p260) target = $region28
        $region27: #{tpu_custom_call.1} parent=11 // pred_region
          %s264 = ssub.s32 9216, 9216
          %265 = vsyncadd [#allocation6], %s264
          %s266 = sshll.u32 [#allocation5], 4
          %s267 = int_to_ptr.vmem [resolvable:$true] %s266
          %272 = dma.hbm_to_vmem [thread:$0]  %s5, 9216, %s267, [#allocation6], 64, 64, 4
        $region28: #{tpu_custom_call.1} parent=11 // pred_fallthru
          _
        // Predicated region
        $region29: #{tpu_custom_call.1} parent=11 // pred_check
          %p273 = pneg %p187
        $region30: #{tpu_custom_call.1} parent=11 // pred_check_branch
          %275 = sbr.rel (%p273) target = $region32
        $region31: #{tpu_custom_call.1} parent=11 // pred_region
          _
        $region32: #{tpu_custom_call.1} parent=11 // pred_fallthru
          _
        // Predicated region
        $region33: #{tpu_custom_call.1} parent=11 // pred_check
          %p276 = pneg %p208
        $region34: #{tpu_custom_call.1} parent=11 // pred_check_branch
          %278 = sbr.rel (%p276) target = $region36
        $region35: #{tpu_custom_call.1} parent=11 // pred_region
          _
        $region36: #{tpu_custom_call.1} parent=11 // pred_fallthru
          _
      $region12: #{tpu_custom_call.1} parent=5 // pred_fallthru
        _
      %p279 = scmp.lt.s32.totalorder %s18, 8
      // Predicated region
      $region37: #{tpu_custom_call.1} parent=5 // pred_check
        %p280 = pneg %p279
      $region38: #{tpu_custom_call.1} parent=5 // pred_check_branch
        %282 = sbr.rel (%p280) target = $region40
      $region39: #{tpu_custom_call.1} parent=5 // pred_region
        // Predicated region
        $region41: #{tpu_custom_call.1} parent=39 // pred_check
          %p283 = pneg %p50
        $region42: #{tpu_custom_call.1} parent=39 // pred_check_branch
          %285 = sbr.rel (%p283) target = $region44
        $region43: #{tpu_custom_call.1} parent=39 // pred_region
          %p286 = scmp.lt.s32.totalorder %s25, 1
          %s287 = scalar_select %p286, %s25, 1
          %s288 = smul.addr %s287, 60
          %s289 = smul.addr %s288, 4
          %s290 = scalar_lea.vmem %s0, %s289
        $region44: #{tpu_custom_call.1} parent=39 // pred_fallthru
          _
        // Predicated region
        $region45: #{tpu_custom_call.1} parent=39 // pred_check
          %p291 = pneg %p76
        $region46: #{tpu_custom_call.1} parent=39 // pred_check_branch
          %293 = sbr.rel (%p291) target = $region48
        $region47: #{tpu_custom_call.1} parent=39 // pred_region
          %p294 = scmp.lt.s32.totalorder %s25, 1
          %s295 = scalar_select %p294, %s25, 1
          %s296 = smul.addr %s295, 60
          %s297 = smul.addr %s296, 4
          %s298 = scalar_lea.vmem %s1, %s297
        $region48: #{tpu_custom_call.1} parent=39 // pred_fallthru
          _
      $region40: #{tpu_custom_call.1} parent=5 // pred_fallthru
        _
      %p299 = scmp.le.s32.totalorder 1, %s18
      %p300 = scmp.lt.s32.totalorder %s18, 9
      %p301 = pnand %p299, %p300
      %p302 = pneg %p301
      // Predicated region
      $region49: #{tpu_custom_call.1} parent=5 // pred_check
        _
      $region50: #{tpu_custom_call.1} parent=5 // pred_check_branch
        %304 = sbr.rel (%p301) target = $region52
      $region51: #{tpu_custom_call.1} parent=5 // pred_region
        %s305 = ssub.s32 %s18, 1
        // Predicated region
        $region53: #{tpu_custom_call.1} parent=51 // pred_check
          %p306 = pneg %p166
        $region54: #{tpu_custom_call.1} parent=51 // pred_check_branch
          %308 = sbr.rel (%p306) target = $region56
        $region55: #{tpu_custom_call.1} parent=51 // pred_region
          %309 = dma.done [#allocation6], 9216
        $region56: #{tpu_custom_call.1} parent=51 // pred_fallthru
          _
        %p310 = scmp.lt.s32.totalorder %s27, 1
        %s311 = scalar_select %p310, %s27, 1
        %s312 = smul.addr %s311, 60
        %s313 = smul.addr %s312, 4
        %s314 = scalar_lea.vmem %s0, %s313
        %p315 = pneg %p56
        %p316 = pneg %p53
        %p317 = scmp.lt.s32.totalorder %s27, 1
        %s318 = scalar_select %p317, %s27, 1
        %s319 = smul.addr %s318, 60
        %s320 = smul.addr %s319, 4
        %s321 = scalar_lea.vmem %s1, %s320
        %p322 = pneg %p82
        %p323 = pneg %p79
        %p324 = pneg %p103
        %p325 = pneg %p100
        %p326 = pneg %p124
        %p327 = pneg %p121
        %p328 = pneg %p145
        %p329 = pneg %p142
        %p330 = pneg %p166
        %p331 = pneg %p163
        %p332 = pneg %p187
        %p333 = pneg %p184
        %p334 = pneg %p208
        %p335 = pneg %p205
        %p336 = pneg %p236
        %p337 = pneg %p233
        %s338 = sand.u32 %s223, 1
        %s339 = scalar_lea.sflag [#allocation7], %s338
        %s340 = sand.u32 %s223, 1
        %s341 = smul.addr %s340, 64
        %s342 = scalar_lea.vmem [#allocation8], %s341
        %p343 = scmp.lt.s32.totalorder %s27, 1
        %s344 = scalar_select %p343, %s27, 1
        %s345 = smul.addr %s344, 60
        %s346 = smul.addr %s345, 4
        %s347 = scalar_lea.vmem %s0, %s346
        %p348 = scmp.lt.s32.totalorder %s27, 1
        %s349 = scalar_select %p348, %s27, 1
        %s350 = smul.addr %s349, 60
        %s351 = smul.addr %s350, 4
        %s352 = scalar_lea.vmem %s1, %s351
        %s353 = smul.u32 4, %s28
        %s355 = smul.u32 %s28, 4
        %vm356 = vcmask 1043520
        %357 = vst.msk [vmem:[#allocation2] sm:$0xf] %vm356, 0
        %358 = vst.msk [vmem:[#allocation2 + $0x24] sm:$0xf] %vm356, 0
        %359 = vst.msk [vmem:[#allocation2 + $0x48] sm:$0xf] %vm356, 0
        %360 = vst.msk [vmem:[#allocation2 + $0x6c] sm:$0xf] %vm356, 0
        %361 = vst.msk [vmem:[#allocation2 + $0x90] sm:$0xf] %vm356, 0
        %362 = vst.msk [vmem:[#allocation2 + $0xb4] sm:$0xf] %vm356, 0
        %363 = vst.msk [vmem:[#allocation2 + $0xd8] sm:$0xf] %vm356, 0
        %364 = vst.msk [vmem:[#allocation2 + $0xfc] sm:$0xf] %vm356, 0
        %365 = vst.msk [vmem:[#allocation2 + $0x120] sm:$0xf] %vm356, 0
        %366 = vst.msk [vmem:[#allocation2 + $0x144] sm:$0xf] %vm356, 0
        %367 = vst.msk [vmem:[#allocation2 + $0x168] sm:$0xf] %vm356, 0
        %368 = vst.msk [vmem:[#allocation2 + $0x18c] sm:$0xf] %vm356, 0
        %369 = vst.msk [vmem:[#allocation2 + $0x4] sm:$0xf] %vm356, 0
        %370 = vst.msk [vmem:[#allocation2 + $0x28] sm:$0xf] %vm356, 0
        %371 = vst.msk [vmem:[#allocation2 + $0x4c] sm:$0xf] %vm356, 0
        %372 = vst.msk [vmem:[#allocation2 + $0x70] sm:$0xf] %vm356, 0
        %373 = vst.msk [vmem:[#allocation2 + $0x94] sm:$0xf] %vm356, 0
        %374 = vst.msk [vmem:[#allocation2 + $0xb8] sm:$0xf] %vm356, 0
        %375 = vst.msk [vmem:[#allocation2 + $0xdc] sm:$0xf] %vm356, 0
        %376 = vst.msk [vmem:[#allocation2 + $0x100] sm:$0xf] %vm356, 0
        %377 = vst.msk [vmem:[#allocation2 + $0x124] sm:$0xf] %vm356, 0
        %378 = vst.msk [vmem:[#allocation2 + $0x148] sm:$0xf] %vm356, 0
        %379 = vst.msk [vmem:[#allocation2 + $0x16c] sm:$0xf] %vm356, 0
        %380 = vst.msk [vmem:[#allocation2 + $0x190] sm:$0xf] %vm356, 0
        %381 = vst.msk [vmem:[#allocation2 + $0x8] sm:$0xf] %vm356, 0
        %382 = vst.msk [vmem:[#allocation2 + $0x2c] sm:$0xf] %vm356, 0
        %383 = vst.msk [vmem:[#allocation2 + $0x50] sm:$0xf] %vm356, 0
        %384 = vst.msk [vmem:[#allocation2 + $0x74] sm:$0xf] %vm356, 0
        %385 = vst.msk [vmem:[#allocation2 + $0x98] sm:$0xf] %vm356, 0
        %386 = vst.msk [vmem:[#allocation2 + $0xbc] sm:$0xf] %vm356, 0
        %387 = vst.msk [vmem:[#allocation2 + $0xe0] sm:$0xf] %vm356, 0
        %388 = vst.msk [vmem:[#allocation2 + $0x104] sm:$0xf] %vm356, 0
        %389 = vst.msk [vmem:[#allocation2 + $0x128] sm:$0xf] %vm356, 0
        %390 = vst.msk [vmem:[#allocation2 + $0x14c] sm:$0xf] %vm356, 0
        %391 = vst.msk [vmem:[#allocation2 + $0x170] sm:$0xf] %vm356, 0
        %392 = vst.msk [vmem:[#allocation2 + $0x194] sm:$0xf] %vm356, 0
        %393 = vst.msk [vmem:[#allocation2 + $0xc] sm:$0xf] %vm356, 0
        %394 = vst.msk [vmem:[#allocation2 + $0x30] sm:$0xf] %vm356, 0
        %395 = vst.msk [vmem:[#allocation2 + $0x54] sm:$0xf] %vm356, 0
        %396 = vst.msk [vmem:[#allocation2 + $0x78] sm:$0xf] %vm356, 0
        %397 = vst.msk [vmem:[#allocation2 + $0x9c] sm:$0xf] %vm356, 0
        %398 = vst.msk [vmem:[#allocation2 + $0xc0] sm:$0xf] %vm356, 0
        %399 = vst.msk [vmem:[#allocation2 + $0xe4] sm:$0xf] %vm356, 0
        %400 = vst.msk [vmem:[#allocation2 + $0x108] sm:$0xf] %vm356, 0
        %401 = vst.msk [vmem:[#allocation2 + $0x12c] sm:$0xf] %vm356, 0
        %402 = vst.msk [vmem:[#allocation2 + $0x150] sm:$0xf] %vm356, 0
        %403 = vst.msk [vmem:[#allocation2 + $0x174] sm:$0xf] %vm356, 0
        %404 = vst.msk [vmem:[#allocation2 + $0x198] sm:$0xf] %vm356, 0
        %405 = vst.msk [vmem:[#allocation2 + $0x10] sm:$0xf] %vm356, 0
        %406 = vst.msk [vmem:[#allocation2 + $0x34] sm:$0xf] %vm356, 0
        %407 = vst.msk [vmem:[#allocation2 + $0x58] sm:$0xf] %vm356, 0
        %408 = vst.msk [vmem:[#allocation2 + $0x7c] sm:$0xf] %vm356, 0
        %409 = vst.msk [vmem:[#allocation2 + $0xa0] sm:$0xf] %vm356, 0
        %410 = vst.msk [vmem:[#allocation2 + $0xc4] sm:$0xf] %vm356, 0
        %411 = vst.msk [vmem:[#allocation2 + $0xe8] sm:$0xf] %vm356, 0
        %412 = vst.msk [vmem:[#allocation2 + $0x10c] sm:$0xf] %vm356, 0
        %413 = vst.msk [vmem:[#allocation2 + $0x130] sm:$0xf] %vm356, 0
        %414 = vst.msk [vmem:[#allocation2 + $0x154] sm:$0xf] %vm356, 0
        %415 = vst.msk [vmem:[#allocation2 + $0x178] sm:$0xf] %vm356, 0
        %416 = vst.msk [vmem:[#allocation2 + $0x19c] sm:$0xf] %vm356, 0
        %417 = vst.msk [vmem:[#allocation2 + $0x14] sm:$0xf] %vm356, 0
        %418 = vst.msk [vmem:[#allocation2 + $0x38] sm:$0xf] %vm356, 0
        %419 = vst.msk [vmem:[#allocation2 + $0x5c] sm:$0xf] %vm356, 0
        %420 = vst.msk [vmem:[#allocation2 + $0x80] sm:$0xf] %vm356, 0
        %421 = vst.msk [vmem:[#allocation2 + $0xa4] sm:$0xf] %vm356, 0
        %422 = vst.msk [vmem:[#allocation2 + $0xc8] sm:$0xf] %vm356, 0
        %423 = vst.msk [vmem:[#allocation2 + $0xec] sm:$0xf] %vm356, 0
        %424 = vst.msk [vmem:[#allocation2 + $0x110] sm:$0xf] %vm356, 0
        %425 = vst.msk [vmem:[#allocation2 + $0x134] sm:$0xf] %vm356, 0
        %426 = vst.msk [vmem:[#allocation2 + $0x158] sm:$0xf] %vm356, 0
        %427 = vst.msk [vmem:[#allocation2 + $0x17c] sm:$0xf] %vm356, 0
        %428 = vst.msk [vmem:[#allocation2 + $0x1a0] sm:$0xf] %vm356, 0
        %429 = vst.msk [vmem:[#allocation2 + $0x18] sm:$0xf] %vm356, 0
        %430 = vst.msk [vmem:[#allocation2 + $0x3c] sm:$0xf] %vm356, 0
        %431 = vst.msk [vmem:[#allocation2 + $0x60] sm:$0xf] %vm356, 0
        %432 = vst.msk [vmem:[#allocation2 + $0x84] sm:$0xf] %vm356, 0
        %433 = vst.msk [vmem:[#allocation2 + $0xa8] sm:$0xf] %vm356, 0
        %434 = vst.msk [vmem:[#allocation2 + $0xcc] sm:$0xf] %vm356, 0
        %435 = vst.msk [vmem:[#allocation2 + $0xf0] sm:$0xf] %vm356, 0
        %436 = vst.msk [vmem:[#allocation2 + $0x114] sm:$0xf] %vm356, 0
        %437 = vst.msk [vmem:[#allocation2 + $0x138] sm:$0xf] %vm356, 0
        %438 = vst.msk [vmem:[#allocation2 + $0x15c] sm:$0xf] %vm356, 0
        %439 = vst.msk [vmem:[#allocation2 + $0x180] sm:$0xf] %vm356, 0
        %440 = vst.msk [vmem:[#allocation2 + $0x1a4] sm:$0xf] %vm356, 0
        %441 = vst.msk [vmem:[#allocation2 + $0x1c] sm:$0xf] %vm356, 0
        %442 = vst.msk [vmem:[#allocation2 + $0x40] sm:$0xf] %vm356, 0
        %443 = vst.msk [vmem:[#allocation2 + $0x64] sm:$0xf] %vm356, 0
        %444 = vst.msk [vmem:[#allocation2 + $0x88] sm:$0xf] %vm356, 0
        %445 = vst.msk [vmem:[#allocation2 + $0xac] sm:$0xf] %vm356, 0
        %446 = vst.msk [vmem:[#allocation2 + $0xd0] sm:$0xf] %vm356, 0
        %447 = vst.msk [vmem:[#allocation2 + $0xf4] sm:$0xf] %vm356, 0
        %448 = vst.msk [vmem:[#allocation2 + $0x118] sm:$0xf] %vm356, 0
        %449 = vst.msk [vmem:[#allocation2 + $0x13c] sm:$0xf] %vm356, 0
        %450 = vst.msk [vmem:[#allocation2 + $0x160] sm:$0xf] %vm356, 0
        %451 = vst.msk [vmem:[#allocation2 + $0x184] sm:$0xf] %vm356, 0
        %452 = vst.msk [vmem:[#allocation2 + $0x1a8] sm:$0xf] %vm356, 0
        %453 = vst.msk [vmem:[#allocation2 + $0x20] sm:$0xf] %vm356, 0
        %454 = vst.msk [vmem:[#allocation2 + $0x44] sm:$0xf] %vm356, 0
        %455 = vst.msk [vmem:[#allocation2 + $0x68] sm:$0xf] %vm356, 0
        %456 = vst.msk [vmem:[#allocation2 + $0x8c] sm:$0xf] %vm356, 0
        %457 = vst.msk [vmem:[#allocation2 + $0xb0] sm:$0xf] %vm356, 0
        %458 = vst.msk [vmem:[#allocation2 + $0xd4] sm:$0xf] %vm356, 0
        %459 = vst.msk [vmem:[#allocation2 + $0xf8] sm:$0xf] %vm356, 0
        %460 = vst.msk [vmem:[#allocation2 + $0x11c] sm:$0xf] %vm356, 0
        %461 = vst.msk [vmem:[#allocation2 + $0x140] sm:$0xf] %vm356, 0
        %462 = vst.msk [vmem:[#allocation2 + $0x164] sm:$0xf] %vm356, 0
        %463 = vst.msk [vmem:[#allocation2 + $0x188] sm:$0xf] %vm356, 0
        %464 = vst.msk [vmem:[#allocation2 + $0x1ac] sm:$0xf] %vm356, 0
        %s465 = smul.u32 %s355, 3
        %s466 = smul.addr %s465, 4
        %s467 = scalar_lea.vmem %s347, %s466
        %v468 = vld [vmem:[%s467] sm:$0xf]
        %v469 = vld [vmem:[%s467 + $0x4] sm:$0xf]
        %v470 = vld [vmem:[%s467 + $0xc] sm:$0xf]
        %v471 = vld [vmem:[%s467 + $0x10] sm:$0xf]
        %v472 = vld [vmem:[%s467 + $0x18] sm:$0xf]
        %v473 = vld [vmem:[%s467 + $0x1c] sm:$0xf]
        %v474 = vld [vmem:[%s467 + $0x24] sm:$0xf]
        %v475 = vld [vmem:[%s467 + $0x28] sm:$0xf]
        %v476 = vld [vmem:[%s467 + $0x30] sm:$0xf]
        %v477 = vld [vmem:[%s467 + $0x34] sm:$0xf]
        %v478 = vld [vmem:[%s467 + $0x3c] sm:$0xf]
        %v479 = vld [vmem:[%s467 + $0x40] sm:$0xf]
        %vm480 = vcmask 27648
        %481 = vst.msk [vmem:[#allocation2] sm:$0xf] %vm480, %v468
        %482 = vst.msk [vmem:[#allocation2 + $0x24] sm:$0xf] %vm480, %v469
        %483 = vst.msk [vmem:[#allocation2 + $0x48] sm:$0xf] %vm480, %v470
        %484 = vst.msk [vmem:[#allocation2 + $0x6c] sm:$0xf] %vm480, %v471
        %485 = vst.msk [vmem:[#allocation2 + $0x90] sm:$0xf] %vm480, %v472
        %486 = vst.msk [vmem:[#allocation2 + $0xb4] sm:$0xf] %vm480, %v473
        %487 = vst.msk [vmem:[#allocation2 + $0xd8] sm:$0xf] %vm480, %v474
        %488 = vst.msk [vmem:[#allocation2 + $0xfc] sm:$0xf] %vm480, %v475
        %489 = vst.msk [vmem:[#allocation2 + $0x120] sm:$0xf] %vm480, %v476
        %490 = vst.msk [vmem:[#allocation2 + $0x144] sm:$0xf] %vm480, %v477
        %491 = vst.msk [vmem:[#allocation2 + $0x168] sm:$0xf] %vm480, %v478
        %492 = vst.msk [vmem:[#allocation2 + $0x18c] sm:$0xf] %vm480, %v479
        %s493 = smul.addr %s465, 4
        %s494 = scalar_lea.vmem %s352, %s493
        %v495 = vld [vmem:[%s494] sm:$0xf]
        %v496 = vld [vmem:[%s494 + $0x4] sm:$0xf]
        %v497 = vld [vmem:[%s494 + $0xc] sm:$0xf]
        %v498 = vld [vmem:[%s494 + $0x10] sm:$0xf]
        %v499 = vld [vmem:[%s494 + $0x18] sm:$0xf]
        %v500 = vld [vmem:[%s494 + $0x1c] sm:$0xf]
        %v501 = vld [vmem:[%s494 + $0x24] sm:$0xf]
        %v502 = vld [vmem:[%s494 + $0x28] sm:$0xf]
        %v503 = vld [vmem:[%s494 + $0x30] sm:$0xf]
        %v504 = vld [vmem:[%s494 + $0x34] sm:$0xf]
        %v505 = vld [vmem:[%s494 + $0x3c] sm:$0xf]
        %v506 = vld [vmem:[%s494 + $0x40] sm:$0xf]
        %519 = vrot.lane.b32.xlu0 %v495, 4
        %v520 = vpop.permute.xlu0 %519
        %521 = vrot.lane.b32.xlu0 %v496, 4
        %v522 = vpop.permute.xlu0 %521
        %523 = vrot.lane.b32.xlu0 %v497, 4
        %v524 = vpop.permute.xlu0 %523
        %525 = vrot.lane.b32.xlu0 %v498, 4
        %v526 = vpop.permute.xlu0 %525
        %527 = vrot.lane.b32.xlu0 %v499, 4
        %v528 = vpop.permute.xlu0 %527
        %529 = vrot.lane.b32.xlu0 %v500, 4
        %v530 = vpop.permute.xlu0 %529
        %531 = vrot.lane.b32.xlu0 %v501, 4
        %v532 = vpop.permute.xlu0 %531
        %533 = vrot.lane.b32.xlu0 %v502, 4
        %v534 = vpop.permute.xlu0 %533
        %535 = vrot.lane.b32.xlu0 %v503, 4
        %v536 = vpop.permute.xlu0 %535
        %537 = vrot.lane.b32.xlu0 %v504, 4
        %v538 = vpop.permute.xlu0 %537
        %539 = vrot.lane.b32.xlu0 %v505, 4
        %v540 = vpop.permute.xlu0 %539
        %541 = vrot.lane.b32.xlu0 %v506, 4
        %v542 = vpop.permute.xlu0 %541
        %vm555 = vcmask 60448
        %556 = vst.msk [vmem:[#allocation2] sm:$0xf] %vm555, %v520
        %557 = vst.msk [vmem:[#allocation2 + $0x24] sm:$0xf] %vm555, %v522
        %558 = vst.msk [vmem:[#allocation2 + $0x48] sm:$0xf] %vm555, %v524
        %559 = vst.msk [vmem:[#allocation2 + $0x6c] sm:$0xf] %vm555, %v526
        %560 = vst.msk [vmem:[#allocation2 + $0x90] sm:$0xf] %vm555, %v528
        %561 = vst.msk [vmem:[#allocation2 + $0xb4] sm:$0xf] %vm555, %v530
        %562 = vst.msk [vmem:[#allocation2 + $0xd8] sm:$0xf] %vm555, %v532
        %563 = vst.msk [vmem:[#allocation2 + $0xfc] sm:$0xf] %vm555, %v534
        %564 = vst.msk [vmem:[#allocation2 + $0x120] sm:$0xf] %vm555, %v536
        %565 = vst.msk [vmem:[#allocation2 + $0x144] sm:$0xf] %vm555, %v538
        %566 = vst.msk [vmem:[#allocation2 + $0x168] sm:$0xf] %vm555, %v540
        %567 = vst.msk [vmem:[#allocation2 + $0x18c] sm:$0xf] %vm555, %v542
        %v568 = vld [vmem:[%s467] sm:$0xf]
        %v569 = vld [vmem:[%s467 + $0x4] sm:$0xf]
        %v570 = vld [vmem:[%s467 + $0x8] sm:$0x1]
        %v571 = vld [vmem:[%s467 + $0xc] sm:$0xf]
        %v572 = vld [vmem:[%s467 + $0x10] sm:$0xf]
        %v573 = vld [vmem:[%s467 + $0x14] sm:$0x1]
        %v574 = vld [vmem:[%s467 + $0x18] sm:$0xf]
        %v575 = vld [vmem:[%s467 + $0x1c] sm:$0xf]
        %v576 = vld [vmem:[%s467 + $0x20] sm:$0x1]
        %v577 = vld [vmem:[%s467 + $0x24] sm:$0xf]
        %v578 = vld [vmem:[%s467 + $0x28] sm:$0xf]
        %v579 = vld [vmem:[%s467 + $0x2c] sm:$0x1]
        %v580 = vld [vmem:[%s467 + $0x30] sm:$0xf]
        %v581 = vld [vmem:[%s467 + $0x34] sm:$0xf]
        %v582 = vld [vmem:[%s467 + $0x38] sm:$0x1]
        %v583 = vld [vmem:[%s467 + $0x3c] sm:$0xf]
        %v584 = vld [vmem:[%s467 + $0x40] sm:$0xf]
        %v585 = vld [vmem:[%s467 + $0x44] sm:$0x1]
        %vm586 = vsmask.f32 3328
        %vm587 = vsmask.f32 7440
        %vm588 = vmor %vm586, %vm587
        %v590 = vshrl.u32 %v568, 16
        %v592 = vrot.slane %v590, 4
        %v593 = vshll.u32 %v568, 16
        %v595 = vrot.slane %v593, 5
        %v596 = vor.u32 %v592, %v595
        %v597 = vrot.slane %v596, 4
        %v599 = vshll.u32 %v569, 16
        %v601 = vrot.slane %v599, 5
        %v602 = vsel %vm588, %v597, %v601
        %v603 = vshrl.u32 %v569, 16
        %v605 = vrot.slane %v603, 4
        %v606 = vor.u32 %v605, %v601
        %v607 = vrot.slane %v606, 4
        %v609 = vshll.u32 %v570, 16
        %v611 = vrot.slane %v609, 5
        %v612 = vsel %vm588, %v607, %v611
        %v614 = vshrl.u32 %v571, 16
        %v616 = vrot.slane %v614, 4
        %v617 = vshll.u32 %v571, 16
        %v619 = vrot.slane %v617, 5
        %v620 = vor.u32 %v616, %v619
        %v621 = vrot.slane %v620, 4
        %v623 = vshll.u32 %v572, 16
        %v625 = vrot.slane %v623, 5
        %v626 = vsel %vm588, %v621, %v625
        %v627 = vshrl.u32 %v572, 16
        %v629 = vrot.slane %v627, 4
        %v630 = vor.u32 %v629, %v625
        %v631 = vrot.slane %v630, 4
        %v633 = vshll.u32 %v573, 16
        %v635 = vrot.slane %v633, 5
        %v636 = vsel %vm588, %v631, %v635
        %v638 = vshrl.u32 %v574, 16
        %v640 = vrot.slane %v638, 4
        %v641 = vshll.u32 %v574, 16
        %v643 = vrot.slane %v641, 5
        %v644 = vor.u32 %v640, %v643
        %v645 = vrot.slane %v644, 4
        %v647 = vshll.u32 %v575, 16
        %v649 = vrot.slane %v647, 5
        %v650 = vsel %vm588, %v645, %v649
        %v651 = vshrl.u32 %v575, 16
        %v653 = vrot.slane %v651, 4
        %v654 = vor.u32 %v653, %v649
        %v655 = vrot.slane %v654, 4
        %v657 = vshll.u32 %v576, 16
        %v659 = vrot.slane %v657, 5
        %v660 = vsel %vm588, %v655, %v659
        %v662 = vshrl.u32 %v577, 16
        %v664 = vrot.slane %v662, 4
        %v665 = vshll.u32 %v577, 16
        %v667 = vrot.slane %v665, 5
        %v668 = vor.u32 %v664, %v667
        %v669 = vrot.slane %v668, 4
        %v671 = vshll.u32 %v578, 16
        %v673 = vrot.slane %v671, 5
        %v674 = vsel %vm588, %v669, %v673
        %v675 = vshrl.u32 %v578, 16
        %v677 = vrot.slane %v675, 4
        %v678 = vor.u32 %v677, %v673
        %v679 = vrot.slane %v678, 4
        %v681 = vshll.u32 %v579, 16
        %v683 = vrot.slane %v681, 5
        %v684 = vsel %vm588, %v679, %v683
        %v686 = vshrl.u32 %v580, 16
        %v688 = vrot.slane %v686, 4
        %v689 = vshll.u32 %v580, 16
        %v691 = vrot.slane %v689, 5
        %v692 = vor.u32 %v688, %v691
        %v693 = vrot.slane %v692, 4
        %v695 = vshll.u32 %v581, 16
        %v697 = vrot.slane %v695, 5
        %v698 = vsel %vm588, %v693, %v697
        %v699 = vshrl.u32 %v581, 16
        %v701 = vrot.slane %v699, 4
        %v702 = vor.u32 %v701, %v697
        %v703 = vrot.slane %v702, 4
        %v705 = vshll.u32 %v582, 16
        %v707 = vrot.slane %v705, 5
        %v708 = vsel %vm588, %v703, %v707
        %v710 = vshrl.u32 %v583, 16
        %v712 = vrot.slane %v710, 4
        %v713 = vshll.u32 %v583, 16
        %v715 = vrot.slane %v713, 5
        %v716 = vor.u32 %v712, %v715
        %v717 = vrot.slane %v716, 4
        %v719 = vshll.u32 %v584, 16
        %v721 = vrot.slane %v719, 5
        %v722 = vsel %vm588, %v717, %v721
        %v723 = vshrl.u32 %v584, 16
        %v725 = vrot.slane %v723, 4
        %v726 = vor.u32 %v725, %v721
        %v727 = vrot.slane %v726, 4
        %v729 = vshll.u32 %v585, 16
        %v731 = vrot.slane %v729, 5
        %v732 = vsel %vm588, %v727, %v731
        %745 = vst.msk [vmem:[#allocation2 + $0x4] sm:$0xf] %vm480, %v602
        %746 = vst.msk [vmem:[#allocation2 + $0x28] sm:$0xf] %vm480, %v612
        %747 = vst.msk [vmem:[#allocation2 + $0x4c] sm:$0xf] %vm480, %v626
        %748 = vst.msk [vmem:[#allocation2 + $0x70] sm:$0xf] %vm480, %v636
        %749 = vst.msk [vmem:[#allocation2 + $0x94] sm:$0xf] %vm480, %v650
        %750 = vst.msk [vmem:[#allocation2 + $0xb8] sm:$0xf] %vm480, %v660
        %751 = vst.msk [vmem:[#allocation2 + $0xdc] sm:$0xf] %vm480, %v674
        %752 = vst.msk [vmem:[#allocation2 + $0x100] sm:$0xf] %vm480, %v684
        %753 = vst.msk [vmem:[#allocation2 + $0x124] sm:$0xf] %vm480, %v698
        %754 = vst.msk [vmem:[#allocation2 + $0x148] sm:$0xf] %vm480, %v708
        %755 = vst.msk [vmem:[#allocation2 + $0x16c] sm:$0xf] %vm480, %v722
        %756 = vst.msk [vmem:[#allocation2 + $0x190] sm:$0xf] %vm480, %v732
        %v757 = vld [vmem:[%s494] sm:$0xf]
        %v758 = vld [vmem:[%s494 + $0x4] sm:$0xf]
        %v759 = vld [vmem:[%s494 + $0x8] sm:$0x1]
        %v760 = vld [vmem:[%s494 + $0xc] sm:$0xf]
        %v761 = vld [vmem:[%s494 + $0x10] sm:$0xf]
        %v762 = vld [vmem:[%s494 + $0x14] sm:$0x1]
        %v763 = vld [vmem:[%s494 + $0x18] sm:$0xf]
        %v764 = vld [vmem:[%s494 + $0x1c] sm:$0xf]
        %v765 = vld [vmem:[%s494 + $0x20] sm:$0x1]
        %v766 = vld [vmem:[%s494 + $0x24] sm:$0xf]
        %v767 = vld [vmem:[%s494 + $0x28] sm:$0xf]
        %v768 = vld [vmem:[%s494 + $0x2c] sm:$0x1]
        %v769 = vld [vmem:[%s494 + $0x30] sm:$0xf]
        %v770 = vld [vmem:[%s494 + $0x34] sm:$0xf]
        %v771 = vld [vmem:[%s494 + $0x38] sm:$0x1]
        %v772 = vld [vmem:[%s494 + $0x3c] sm:$0xf]
        %v773 = vld [vmem:[%s494 + $0x40] sm:$0xf]
        %v774 = vld [vmem:[%s494 + $0x44] sm:$0x1]
        %v776 = vshrl.u32 %v757, 16
        %v778 = vrot.slane %v776, 4
        %v779 = vshll.u32 %v757, 16
        %v781 = vrot.slane %v779, 5
        %v782 = vor.u32 %v778, %v781
        %v783 = vrot.slane %v782, 4
        %v785 = vshll.u32 %v758, 16
        %v787 = vrot.slane %v785, 5
        %v788 = vsel %vm588, %v783, %v787
        %v789 = vshrl.u32 %v758, 16
        %v791 = vrot.slane %v789, 4
        %v792 = vor.u32 %v791, %v787
        %v793 = vrot.slane %v792, 4
        %v795 = vshll.u32 %v759, 16
        %v797 = vrot.slane %v795, 5
        %v798 = vsel %vm588, %v793, %v797
        %v800 = vshrl.u32 %v760, 16
        %v802 = vrot.slane %v800, 4
        %v803 = vshll.u32 %v760, 16
        %v805 = vrot.slane %v803, 5
        %v806 = vor.u32 %v802, %v805
        %v807 = vrot.slane %v806, 4
        %v809 = vshll.u32 %v761, 16
        %v811 = vrot.slane %v809, 5
        %v812 = vsel %vm588, %v807, %v811
        %v813 = vshrl.u32 %v761, 16
        %v815 = vrot.slane %v813, 4
        %v816 = vor.u32 %v815, %v811
        %v817 = vrot.slane %v816, 4
        %v819 = vshll.u32 %v762, 16
        %v821 = vrot.slane %v819, 5
        %v822 = vsel %vm588, %v817, %v821
        %v824 = vshrl.u32 %v763, 16
        %v826 = vrot.slane %v824, 4
        %v827 = vshll.u32 %v763, 16
        %v829 = vrot.slane %v827, 5
        %v830 = vor.u32 %v826, %v829
        %v831 = vrot.slane %v830, 4
        %v833 = vshll.u32 %v764, 16
        %v835 = vrot.slane %v833, 5
        %v836 = vsel %vm588, %v831, %v835
        %v837 = vshrl.u32 %v764, 16
        %v839 = vrot.slane %v837, 4
        %v840 = vor.u32 %v839, %v835
        %v841 = vrot.slane %v840, 4
        %v843 = vshll.u32 %v765, 16
        %v845 = vrot.slane %v843, 5
        %v846 = vsel %vm588, %v841, %v845
        %v848 = vshrl.u32 %v766, 16
        %v850 = vrot.slane %v848, 4
        %v851 = vshll.u32 %v766, 16
        %v853 = vrot.slane %v851, 5
        %v854 = vor.u32 %v850, %v853
        %v855 = vrot.slane %v854, 4
        %v857 = vshll.u32 %v767, 16
        %v859 = vrot.slane %v857, 5
        %v860 = vsel %vm588, %v855, %v859
        %v861 = vshrl.u32 %v767, 16
        %v863 = vrot.slane %v861, 4
        %v864 = vor.u32 %v863, %v859
        %v865 = vrot.slane %v864, 4
        %v867 = vshll.u32 %v768, 16
        %v869 = vrot.slane %v867, 5
        %v870 = vsel %vm588, %v865, %v869
        %v872 = vshrl.u32 %v769, 16
        %v874 = vrot.slane %v872, 4
        %v875 = vshll.u32 %v769, 16
        %v877 = vrot.slane %v875, 5
        %v878 = vor.u32 %v874, %v877
        %v879 = vrot.slane %v878, 4
        %v881 = vshll.u32 %v770, 16
        %v883 = vrot.slane %v881, 5
        %v884 = vsel %vm588, %v879, %v883
        %v885 = vshrl.u32 %v770, 16
        %v887 = vrot.slane %v885, 4
        %v888 = vor.u32 %v887, %v883
        %v889 = vrot.slane %v888, 4
        %v891 = vshll.u32 %v771, 16
        %v893 = vrot.slane %v891, 5
        %v894 = vsel %vm588, %v889, %v893
        %v896 = vshrl.u32 %v772, 16
        %v898 = vrot.slane %v896, 4
        %v899 = vshll.u32 %v772, 16
        %v901 = vrot.slane %v899, 5
        %v902 = vor.u32 %v898, %v901
        %v903 = vrot.slane %v902, 4
        %v905 = vshll.u32 %v773, 16
        %v907 = vrot.slane %v905, 5
        %v908 = vsel %vm588, %v903, %v907
        %v909 = vshrl.u32 %v773, 16
        %v911 = vrot.slane %v909, 4
        %v912 = vor.u32 %v911, %v907
        %v913 = vrot.slane %v912, 4
        %v915 = vshll.u32 %v774, 16
        %v917 = vrot.slane %v915, 5
        %v918 = vsel %vm588, %v913, %v917
        %919 = vrot.lane.b32.xlu0 %v788, 4
        %v920 = vpop.permute.xlu0 %919
        %921 = vrot.lane.b32.xlu0 %v798, 4
        %v922 = vpop.permute.xlu0 %921
        %923 = vrot.lane.b32.xlu0 %v812, 4
        %v924 = vpop.permute.xlu0 %923
        %925 = vrot.lane.b32.xlu0 %v822, 4
        %v926 = vpop.permute.xlu0 %925
        %927 = vrot.lane.b32.xlu0 %v836, 4
        %v928 = vpop.permute.xlu0 %927
        %929 = vrot.lane.b32.xlu0 %v846, 4
        %v930 = vpop.permute.xlu0 %929
        %931 = vrot.lane.b32.xlu0 %v860, 4
        %v932 = vpop.permute.xlu0 %931
        %933 = vrot.lane.b32.xlu0 %v870, 4
        %v934 = vpop.permute.xlu0 %933
        %935 = vrot.lane.b32.xlu0 %v884, 4
        %v936 = vpop.permute.xlu0 %935
        %937 = vrot.lane.b32.xlu0 %v894, 4
        %v938 = vpop.permute.xlu0 %937
        %939 = vrot.lane.b32.xlu0 %v908, 4
        %v940 = vpop.permute.xlu0 %939
        %941 = vrot.lane.b32.xlu0 %v918, 4
        %v942 = vpop.permute.xlu0 %941
        %955 = vst.msk [vmem:[#allocation2 + $0x4] sm:$0xf] %vm555, %v920
        %956 = vst.msk [vmem:[#allocation2 + $0x28] sm:$0xf] %vm555, %v922
        %957 = vst.msk [vmem:[#allocation2 + $0x4c] sm:$0xf] %vm555, %v924
        %958 = vst.msk [vmem:[#allocation2 + $0x70] sm:$0xf] %vm555, %v926
        %959 = vst.msk [vmem:[#allocation2 + $0x94] sm:$0xf] %vm555, %v928
        %960 = vst.msk [vmem:[#allocation2 + $0xb8] sm:$0xf] %vm555, %v930
        %961 = vst.msk [vmem:[#allocation2 + $0xdc] sm:$0xf] %vm555, %v932
        %962 = vst.msk [vmem:[#allocation2 + $0x100] sm:$0xf] %vm555, %v934
        %963 = vst.msk [vmem:[#allocation2 + $0x124] sm:$0xf] %vm555, %v936
        %964 = vst.msk [vmem:[#allocation2 + $0x148] sm:$0xf] %vm555, %v938
        %965 = vst.msk [vmem:[#allocation2 + $0x16c] sm:$0xf] %vm555, %v940
        %966 = vst.msk [vmem:[#allocation2 + $0x190] sm:$0xf] %vm555, %v942
        %v967 = vld [vmem:[%s467] sm:$0xe]
        %v968 = vld [vmem:[%s467 + $0x4] sm:$0xf]
        %v969 = vld [vmem:[%s467 + $0x8] sm:$0x1]
        %v970 = vld [vmem:[%s467 + $0xc] sm:$0xe]
        %v971 = vld [vmem:[%s467 + $0x10] sm:$0xf]
        %v972 = vld [vmem:[%s467 + $0x14] sm:$0x1]
        %v973 = vld [vmem:[%s467 + $0x18] sm:$0xe]
        %v974 = vld [vmem:[%s467 + $0x1c] sm:$0xf]
        %v975 = vld [vmem:[%s467 + $0x20] sm:$0x1]
        %v976 = vld [vmem:[%s467 + $0x24] sm:$0xe]
        %v977 = vld [vmem:[%s467 + $0x28] sm:$0xf]
        %v978 = vld [vmem:[%s467 + $0x2c] sm:$0x1]
        %v979 = vld [vmem:[%s467 + $0x30] sm:$0xe]
        %v980 = vld [vmem:[%s467 + $0x34] sm:$0xf]
        %v981 = vld [vmem:[%s467 + $0x38] sm:$0x1]
        %v982 = vld [vmem:[%s467 + $0x3c] sm:$0xe]
        %v983 = vld [vmem:[%s467 + $0x40] sm:$0xf]
        %v984 = vld [vmem:[%s467 + $0x44] sm:$0x1]
        %vm1003 = vcmask 1042432
        %vm1004 = vcmask 1046532
        %vm1005 = vmor %vm1003, %vm1004
        %v1006 = vrot.slane %v967, 5
        %v1007 = vrot.slane %v1006, 4
        %v1008 = vrot.slane %v968, 5
        %v1009 = vsel %vm1005, %v1007, %v1008
        %v1010 = vrot.slane %v1008, 4
        %v1011 = vrot.slane %v969, 5
        %v1012 = vsel %vm1005, %v1010, %v1011
        %v1013 = vrot.slane %v970, 5
        %v1014 = vrot.slane %v1013, 4
        %v1015 = vrot.slane %v971, 5
        %v1016 = vsel %vm1005, %v1014, %v1015
        %v1017 = vrot.slane %v1015, 4
        %v1018 = vrot.slane %v972, 5
        %v1019 = vsel %vm1005, %v1017, %v1018
        %v1020 = vrot.slane %v973, 5
        %v1021 = vrot.slane %v1020, 4
        %v1022 = vrot.slane %v974, 5
        %v1023 = vsel %vm1005, %v1021, %v1022
        %v1024 = vrot.slane %v1022, 4
        %v1025 = vrot.slane %v975, 5
        %v1026 = vsel %vm1005, %v1024, %v1025
        %v1027 = vrot.slane %v976, 5
        %v1028 = vrot.slane %v1027, 4
        %v1029 = vrot.slane %v977, 5
        %v1030 = vsel %vm1005, %v1028, %v1029
        %v1031 = vrot.slane %v1029, 4
        %v1032 = vrot.slane %v978, 5
        %v1033 = vsel %vm1005, %v1031, %v1032
        %v1034 = vrot.slane %v979, 5
        %v1035 = vrot.slane %v1034, 4
        %v1036 = vrot.slane %v980, 5
        %v1037 = vsel %vm1005, %v1035, %v1036
        %v1038 = vrot.slane %v1036, 4
        %v1039 = vrot.slane %v981, 5
        %v1040 = vsel %vm1005, %v1038, %v1039
        %v1041 = vrot.slane %v982, 5
        %v1042 = vrot.slane %v1041, 4
        %v1043 = vrot.slane %v983, 5
        %v1044 = vsel %vm1005, %v1042, %v1043
        %v1045 = vrot.slane %v1043, 4
        %v1046 = vrot.slane %v984, 5
        %v1047 = vsel %vm1005, %v1045, %v1046
        %1060 = vst.msk [vmem:[#allocation2 + $0x8] sm:$0xf] %vm480, %v1009
        %1061 = vst.msk [vmem:[#allocation2 + $0x2c] sm:$0xf] %vm480, %v1012
        %1062 = vst.msk [vmem:[#allocation2 + $0x50] sm:$0xf] %vm480, %v1016
        %1063 = vst.msk [vmem:[#allocation2 + $0x74] sm:$0xf] %vm480, %v1019
        %1064 = vst.msk [vmem:[#allocation2 + $0x98] sm:$0xf] %vm480, %v1023
        %1065 = vst.msk [vmem:[#allocation2 + $0xbc] sm:$0xf] %vm480, %v1026
        %1066 = vst.msk [vmem:[#allocation2 + $0xe0] sm:$0xf] %vm480, %v1030
        %1067 = vst.msk [vmem:[#allocation2 + $0x104] sm:$0xf] %vm480, %v1033
        %1068 = vst.msk [vmem:[#allocation2 + $0x128] sm:$0xf] %vm480, %v1037
        %1069 = vst.msk [vmem:[#allocation2 + $0x14c] sm:$0xf] %vm480, %v1040
        %1070 = vst.msk [vmem:[#allocation2 + $0x170] sm:$0xf] %vm480, %v1044
        %1071 = vst.msk [vmem:[#allocation2 + $0x194] sm:$0xf] %vm480, %v1047
        %v1072 = vld [vmem:[%s494] sm:$0xe]
        %v1073 = vld [vmem:[%s494 + $0x4] sm:$0xf]
        %v1074 = vld [vmem:[%s494 + $0x8] sm:$0x1]
        %v1075 = vld [vmem:[%s494 + $0xc] sm:$0xe]
        %v1076 = vld [vmem:[%s494 + $0x10] sm:$0xf]
        %v1077 = vld [vmem:[%s494 + $0x14] sm:$0x1]
        %v1078 = vld [vmem:[%s494 + $0x18] sm:$0xe]
        %v1079 = vld [vmem:[%s494 + $0x1c] sm:$0xf]
        %v1080 = vld [vmem:[%s494 + $0x20] sm:$0x1]
        %v1081 = vld [vmem:[%s494 + $0x24] sm:$0xe]
        %v1082 = vld [vmem:[%s494 + $0x28] sm:$0xf]
        %v1083 = vld [vmem:[%s494 + $0x2c] sm:$0x1]
        %v1084 = vld [vmem:[%s494 + $0x30] sm:$0xe]
        %v1085 = vld [vmem:[%s494 + $0x34] sm:$0xf]
        %v1086 = vld [vmem:[%s494 + $0x38] sm:$0x1]
        %v1087 = vld [vmem:[%s494 + $0x3c] sm:$0xe]
        %v1088 = vld [vmem:[%s494 + $0x40] sm:$0xf]
        %v1089 = vld [vmem:[%s494 + $0x44] sm:$0x1]
        %v1108 = vrot.slane %v1072, 5
        %v1109 = vrot.slane %v1108, 4
        %v1110 = vrot.slane %v1073, 5
        %v1111 = vsel %vm1005, %v1109, %v1110
        %v1112 = vrot.slane %v1110, 4
        %v1113 = vrot.slane %v1074, 5
        %v1114 = vsel %vm1005, %v1112, %v1113
        %v1115 = vrot.slane %v1075, 5
        %v1116 = vrot.slane %v1115, 4
        %v1117 = vrot.slane %v1076, 5
        %v1118 = vsel %vm1005, %v1116, %v1117
        %v1119 = vrot.slane %v1117, 4
        %v1120 = vrot.slane %v1077, 5
        %v1121 = vsel %vm1005, %v1119, %v1120
        %v1122 = vrot.slane %v1078, 5
        %v1123 = vrot.slane %v1122, 4
        %v1124 = vrot.slane %v1079, 5
        %v1125 = vsel %vm1005, %v1123, %v1124
        %v1126 = vrot.slane %v1124, 4
        %v1127 = vrot.slane %v1080, 5
        %v1128 = vsel %vm1005, %v1126, %v1127
        %v1129 = vrot.slane %v1081, 5
        %v1130 = vrot.slane %v1129, 4
        %v1131 = vrot.slane %v1082, 5
        %v1132 = vsel %vm1005, %v1130, %v1131
        %v1133 = vrot.slane %v1131, 4
        %v1134 = vrot.slane %v1083, 5
        %v1135 = vsel %vm1005, %v1133, %v1134
        %v1136 = vrot.slane %v1084, 5
        %v1137 = vrot.slane %v1136, 4
        %v1138 = vrot.slane %v1085, 5
        %v1139 = vsel %vm1005, %v1137, %v1138
        %v1140 = vrot.slane %v1138, 4
        %v1141 = vrot.slane %v1086, 5
        %v1142 = vsel %vm1005, %v1140, %v1141
        %v1143 = vrot.slane %v1087, 5
        %v1144 = vrot.slane %v1143, 4
        %v1145 = vrot.slane %v1088, 5
        %v1146 = vsel %vm1005, %v1144, %v1145
        %v1147 = vrot.slane %v1145, 4
        %v1148 = vrot.slane %v1089, 5
        %v1149 = vsel %vm1005, %v1147, %v1148
        %1150 = vrot.lane.b32.xlu0 %v1111, 4
        %v1151 = vpop.permute.xlu0 %1150
        %1152 = vrot.lane.b32.xlu0 %v1114, 4
        %v1153 = vpop.permute.xlu0 %1152
        %1154 = vrot.lane.b32.xlu0 %v1118, 4
        %v1155 = vpop.permute.xlu0 %1154
        %1156 = vrot.lane.b32.xlu0 %v1121, 4
        %v1157 = vpop.permute.xlu0 %1156
        %1158 = vrot.lane.b32.xlu0 %v1125, 4
        %v1159 = vpop.permute.xlu0 %1158
        %1160 = vrot.lane.b32.xlu0 %v1128, 4
        %v1161 = vpop.permute.xlu0 %1160
        %1162 = vrot.lane.b32.xlu0 %v1132, 4
        %v1163 = vpop.permute.xlu0 %1162
        %1164 = vrot.lane.b32.xlu0 %v1135, 4
        %v1165 = vpop.permute.xlu0 %1164
        %1166 = vrot.lane.b32.xlu0 %v1139, 4
        %v1167 = vpop.permute.xlu0 %1166
        %1168 = vrot.lane.b32.xlu0 %v1142, 4
        %v1169 = vpop.permute.xlu0 %1168
        %1170 = vrot.lane.b32.xlu0 %v1146, 4
        %v1171 = vpop.permute.xlu0 %1170
        %1172 = vrot.lane.b32.xlu0 %v1149, 4
        %v1173 = vpop.permute.xlu0 %1172
        %1186 = vst.msk [vmem:[#allocation2 + $0x8] sm:$0xf] %vm555, %v1151
        %1187 = vst.msk [vmem:[#allocation2 + $0x2c] sm:$0xf] %vm555, %v1153
        %1188 = vst.msk [vmem:[#allocation2 + $0x50] sm:$0xf] %vm555, %v1155
        %1189 = vst.msk [vmem:[#allocation2 + $0x74] sm:$0xf] %vm555, %v1157
        %1190 = vst.msk [vmem:[#allocation2 + $0x98] sm:$0xf] %vm555, %v1159
        %1191 = vst.msk [vmem:[#allocation2 + $0xbc] sm:$0xf] %vm555, %v1161
        %1192 = vst.msk [vmem:[#allocation2 + $0xe0] sm:$0xf] %vm555, %v1163
        %1193 = vst.msk [vmem:[#allocation2 + $0x104] sm:$0xf] %vm555, %v1165
        %1194 = vst.msk [vmem:[#allocation2 + $0x128] sm:$0xf] %vm555, %v1167
        %1195 = vst.msk [vmem:[#allocation2 + $0x14c] sm:$0xf] %vm555, %v1169
        %1196 = vst.msk [vmem:[#allocation2 + $0x170] sm:$0xf] %vm555, %v1171
        %1197 = vst.msk [vmem:[#allocation2 + $0x194] sm:$0xf] %vm555, %v1173
        %s1198 = sadd.s32 %s355, 1
        %s1199 = smul.u32 %s1198, 3
        %s1200 = smul.addr %s1199, 4
        %s1201 = scalar_lea.vmem %s347, %s1200
        %v1202 = vld [vmem:[%s1201] sm:$0xf]
        %v1203 = vld [vmem:[%s1201 + $0x4] sm:$0xf]
        %v1204 = vld [vmem:[%s1201 + $0xc] sm:$0xf]
        %v1205 = vld [vmem:[%s1201 + $0x10] sm:$0xf]
        %v1206 = vld [vmem:[%s1201 + $0x18] sm:$0xf]
        %v1207 = vld [vmem:[%s1201 + $0x1c] sm:$0xf]
        %v1208 = vld [vmem:[%s1201 + $0x24] sm:$0xf]
        %v1209 = vld [vmem:[%s1201 + $0x28] sm:$0xf]
        %v1210 = vld [vmem:[%s1201 + $0x30] sm:$0xf]
        %v1211 = vld [vmem:[%s1201 + $0x34] sm:$0xf]
        %v1212 = vld [vmem:[%s1201 + $0x3c] sm:$0xf]
        %v1213 = vld [vmem:[%s1201 + $0x40] sm:$0xf]
        %1214 = vst.msk [vmem:[#allocation2 + $0xc] sm:$0xf] %vm480, %v1202
        %1215 = vst.msk [vmem:[#allocation2 + $0x30] sm:$0xf] %vm480, %v1203
        %1216 = vst.msk [vmem:[#allocation2 + $0x54] sm:$0xf] %vm480, %v1204
        %1217 = vst.msk [vmem:[#allocation2 + $0x78] sm:$0xf] %vm480, %v1205
        %1218 = vst.msk [vmem:[#allocation2 + $0x9c] sm:$0xf] %vm480, %v1206
        %1219 = vst.msk [vmem:[#allocation2 + $0xc0] sm:$0xf] %vm480, %v1207
        %1220 = vst.msk [vmem:[#allocation2 + $0xe4] sm:$0xf] %vm480, %v1208
        %1221 = vst.msk [vmem:[#allocation2 + $0x108] sm:$0xf] %vm480, %v1209
        %1222 = vst.msk [vmem:[#allocation2 + $0x12c] sm:$0xf] %vm480, %v1210
        %1223 = vst.msk [vmem:[#allocation2 + $0x150] sm:$0xf] %vm480, %v1211
        %1224 = vst.msk [vmem:[#allocation2 + $0x174] sm:$0xf] %vm480, %v1212
        %1225 = vst.msk [vmem:[#allocation2 + $0x198] sm:$0xf] %vm480, %v1213
        %s1226 = smul.addr %s1199, 4
        %s1227 = scalar_lea.vmem %s352, %s1226
        %v1228 = vld [vmem:[%s1227] sm:$0xf]
        %v1229 = vld [vmem:[%s1227 + $0x4] sm:$0xf]
        %v1230 = vld [vmem:[%s1227 + $0xc] sm:$0xf]
        %v1231 = vld [vmem:[%s1227 + $0x10] sm:$0xf]
        %v1232 = vld [vmem:[%s1227 + $0x18] sm:$0xf]
        %v1233 = vld [vmem:[%s1227 + $0x1c] sm:$0xf]
        %v1234 = vld [vmem:[%s1227 + $0x24] sm:$0xf]
        %v1235 = vld [vmem:[%s1227 + $0x28] sm:$0xf]
        %v1236 = vld [vmem:[%s1227 + $0x30] sm:$0xf]
        %v1237 = vld [vmem:[%s1227 + $0x34] sm:$0xf]
        %v1238 = vld [vmem:[%s1227 + $0x3c] sm:$0xf]
        %v1239 = vld [vmem:[%s1227 + $0x40] sm:$0xf]
        %1252 = vrot.lane.b32.xlu0 %v1228, 4
        %v1253 = vpop.permute.xlu0 %1252
        %1254 = vrot.lane.b32.xlu0 %v1229, 4
        %v1255 = vpop.permute.xlu0 %1254
        %1256 = vrot.lane.b32.xlu0 %v1230, 4
        %v1257 = vpop.permute.xlu0 %1256
        %1258 = vrot.lane.b32.xlu0 %v1231, 4
        %v1259 = vpop.permute.xlu0 %1258
        %1260 = vrot.lane.b32.xlu0 %v1232, 4
        %v1261 = vpop.permute.xlu0 %1260
        %1262 = vrot.lane.b32.xlu0 %v1233, 4
        %v1263 = vpop.permute.xlu0 %1262
        %1264 = vrot.lane.b32.xlu0 %v1234, 4
        %v1265 = vpop.permute.xlu0 %1264
        %1266 = vrot.lane.b32.xlu0 %v1235, 4
        %v1267 = vpop.permute.xlu0 %1266
        %1268 = vrot.lane.b32.xlu0 %v1236, 4
        %v1269 = vpop.permute.xlu0 %1268
        %1270 = vrot.lane.b32.xlu0 %v1237, 4
        %v1271 = vpop.permute.xlu0 %1270
        %1272 = vrot.lane.b32.xlu0 %v1238, 4
        %v1273 = vpop.permute.xlu0 %1272
        %1274 = vrot.lane.b32.xlu0 %v1239, 4
        %v1275 = vpop.permute.xlu0 %1274
        %1288 = vst.msk [vmem:[#allocation2 + $0xc] sm:$0xf] %vm555, %v1253
        %1289 = vst.msk [vmem:[#allocation2 + $0x30] sm:$0xf] %vm555, %v1255
        %1290 = vst.msk [vmem:[#allocation2 + $0x54] sm:$0xf] %vm555, %v1257
        %1291 = vst.msk [vmem:[#allocation2 + $0x78] sm:$0xf] %vm555, %v1259
        %1292 = vst.msk [vmem:[#allocation2 + $0x9c] sm:$0xf] %vm555, %v1261
        %1293 = vst.msk [vmem:[#allocation2 + $0xc0] sm:$0xf] %vm555, %v1263
        %1294 = vst.msk [vmem:[#allocation2 + $0xe4] sm:$0xf] %vm555, %v1265
        %1295 = vst.msk [vmem:[#allocation2 + $0x108] sm:$0xf] %vm555, %v1267
        %1296 = vst.msk [vmem:[#allocation2 + $0x12c] sm:$0xf] %vm555, %v1269
        %1297 = vst.msk [vmem:[#allocation2 + $0x150] sm:$0xf] %vm555, %v1271
        %1298 = vst.msk [vmem:[#allocation2 + $0x174] sm:$0xf] %vm555, %v1273
        %1299 = vst.msk [vmem:[#allocation2 + $0x198] sm:$0xf] %vm555, %v1275
        %v1300 = vld [vmem:[%s1201] sm:$0xf]
        %v1301 = vld [vmem:[%s1201 + $0x4] sm:$0xf]
        %v1302 = vld [vmem:[%s1201 + $0x8] sm:$0x1]
        %v1303 = vld [vmem:[%s1201 + $0xc] sm:$0xf]
        %v1304 = vld [vmem:[%s1201 + $0x10] sm:$0xf]
        %v1305 = vld [vmem:[%s1201 + $0x14] sm:$0x1]
        %v1306 = vld [vmem:[%s1201 + $0x18] sm:$0xf]
        %v1307 = vld [vmem:[%s1201 + $0x1c] sm:$0xf]
        %v1308 = vld [vmem:[%s1201 + $0x20] sm:$0x1]
        %v1309 = vld [vmem:[%s1201 + $0x24] sm:$0xf]
        %v1310 = vld [vmem:[%s1201 + $0x28] sm:$0xf]
        %v1311 = vld [vmem:[%s1201 + $0x2c] sm:$0x1]
        %v1312 = vld [vmem:[%s1201 + $0x30] sm:$0xf]
        %v1313 = vld [vmem:[%s1201 + $0x34] sm:$0xf]
        %v1314 = vld [vmem:[%s1201 + $0x38] sm:$0x1]
        %v1315 = vld [vmem:[%s1201 + $0x3c] sm:$0xf]
        %v1316 = vld [vmem:[%s1201 + $0x40] sm:$0xf]
        %v1317 = vld [vmem:[%s1201 + $0x44] sm:$0x1]
        %v1319 = vshrl.u32 %v1300, 16
        %v1321 = vrot.slane %v1319, 4
        %v1322 = vshll.u32 %v1300, 16
        %v1324 = vrot.slane %v1322, 5
        %v1325 = vor.u32 %v1321, %v1324
        %v1326 = vrot.slane %v1325, 4
        %v1328 = vshll.u32 %v1301, 16
        %v1330 = vrot.slane %v1328, 5
        %v1331 = vsel %vm588, %v1326, %v1330
        %v1332 = vshrl.u32 %v1301, 16
        %v1334 = vrot.slane %v1332, 4
        %v1335 = vor.u32 %v1334, %v1330
        %v1336 = vrot.slane %v1335, 4
        %v1338 = vshll.u32 %v1302, 16
        %v1340 = vrot.slane %v1338, 5
        %v1341 = vsel %vm588, %v1336, %v1340
        %v1343 = vshrl.u32 %v1303, 16
        %v1345 = vrot.slane %v1343, 4
        %v1346 = vshll.u32 %v1303, 16
        %v1348 = vrot.slane %v1346, 5
        %v1349 = vor.u32 %v1345, %v1348
        %v1350 = vrot.slane %v1349, 4
        %v1352 = vshll.u32 %v1304, 16
        %v1354 = vrot.slane %v1352, 5
        %v1355 = vsel %vm588, %v1350, %v1354
        %v1356 = vshrl.u32 %v1304, 16
        %v1358 = vrot.slane %v1356, 4
        %v1359 = vor.u32 %v1358, %v1354
        %v1360 = vrot.slane %v1359, 4
        %v1362 = vshll.u32 %v1305, 16
        %v1364 = vrot.slane %v1362, 5
        %v1365 = vsel %vm588, %v1360, %v1364
        %v1367 = vshrl.u32 %v1306, 16
        %v1369 = vrot.slane %v1367, 4
        %v1370 = vshll.u32 %v1306, 16
        %v1372 = vrot.slane %v1370, 5
        %v1373 = vor.u32 %v1369, %v1372
        %v1374 = vrot.slane %v1373, 4
        %v1376 = vshll.u32 %v1307, 16
        %v1378 = vrot.slane %v1376, 5
        %v1379 = vsel %vm588, %v1374, %v1378
        %v1380 = vshrl.u32 %v1307, 16
        %v1382 = vrot.slane %v1380, 4
        %v1383 = vor.u32 %v1382, %v1378
        %v1384 = vrot.slane %v1383, 4
        %v1386 = vshll.u32 %v1308, 16
        %v1388 = vrot.slane %v1386, 5
        %v1389 = vsel %vm588, %v1384, %v1388
        %v1391 = vshrl.u32 %v1309, 16
        %v1393 = vrot.slane %v1391, 4
        %v1394 = vshll.u32 %v1309, 16
        %v1396 = vrot.slane %v1394, 5
        %v1397 = vor.u32 %v1393, %v1396
        %v1398 = vrot.slane %v1397, 4
        %v1400 = vshll.u32 %v1310, 16
        %v1402 = vrot.slane %v1400, 5
        %v1403 = vsel %vm588, %v1398, %v1402
        %v1404 = vshrl.u32 %v1310, 16
        %v1406 = vrot.slane %v1404, 4
        %v1407 = vor.u32 %v1406, %v1402
        %v1408 = vrot.slane %v1407, 4
        %v1410 = vshll.u32 %v1311, 16
        %v1412 = vrot.slane %v1410, 5
        %v1413 = vsel %vm588, %v1408, %v1412
        %v1415 = vshrl.u32 %v1312, 16
        %v1417 = vrot.slane %v1415, 4
        %v1418 = vshll.u32 %v1312, 16
        %v1420 = vrot.slane %v1418, 5
        %v1421 = vor.u32 %v1417, %v1420
        %v1422 = vrot.slane %v1421, 4
        %v1424 = vshll.u32 %v1313, 16
        %v1426 = vrot.slane %v1424, 5
        %v1427 = vsel %vm588, %v1422, %v1426
        %v1428 = vshrl.u32 %v1313, 16
        %v1430 = vrot.slane %v1428, 4
        %v1431 = vor.u32 %v1430, %v1426
        %v1432 = vrot.slane %v1431, 4
        %v1434 = vshll.u32 %v1314, 16
        %v1436 = vrot.slane %v1434, 5
        %v1437 = vsel %vm588, %v1432, %v1436
        %v1439 = vshrl.u32 %v1315, 16
        %v1441 = vrot.slane %v1439, 4
        %v1442 = vshll.u32 %v1315, 16
        %v1444 = vrot.slane %v1442, 5
        %v1445 = vor.u32 %v1441, %v1444
        %v1446 = vrot.slane %v1445, 4
        %v1448 = vshll.u32 %v1316, 16
        %v1450 = vrot.slane %v1448, 5
        %v1451 = vsel %vm588, %v1446, %v1450
        %v1452 = vshrl.u32 %v1316, 16
        %v1454 = vrot.slane %v1452, 4
        %v1455 = vor.u32 %v1454, %v1450
        %v1456 = vrot.slane %v1455, 4
        %v1458 = vshll.u32 %v1317, 16
        %v1460 = vrot.slane %v1458, 5
        %v1461 = vsel %vm588, %v1456, %v1460
        %1474 = vst.msk [vmem:[#allocation2 + $0x10] sm:$0xf] %vm480, %v1331
        %1475 = vst.msk [vmem:[#allocation2 + $0x34] sm:$0xf] %vm480, %v1341
        %1476 = vst.msk [vmem:[#allocation2 + $0x58] sm:$0xf] %vm480, %v1355
        %1477 = vst.msk [vmem:[#allocation2 + $0x7c] sm:$0xf] %vm480, %v1365
        %1478 = vst.msk [vmem:[#allocation2 + $0xa0] sm:$0xf] %vm480, %v1379
        %1479 = vst.msk [vmem:[#allocation2 + $0xc4] sm:$0xf] %vm480, %v1389
        %1480 = vst.msk [vmem:[#allocation2 + $0xe8] sm:$0xf] %vm480, %v1403
        %1481 = vst.msk [vmem:[#allocation2 + $0x10c] sm:$0xf] %vm480, %v1413
        %1482 = vst.msk [vmem:[#allocation2 + $0x130] sm:$0xf] %vm480, %v1427
        %1483 = vst.msk [vmem:[#allocation2 + $0x154] sm:$0xf] %vm480, %v1437
        %1484 = vst.msk [vmem:[#allocation2 + $0x178] sm:$0xf] %vm480, %v1451
        %1485 = vst.msk [vmem:[#allocation2 + $0x19c] sm:$0xf] %vm480, %v1461
        %v1486 = vld [vmem:[%s1227] sm:$0xf]
        %v1487 = vld [vmem:[%s1227 + $0x4] sm:$0xf]
        %v1488 = vld [vmem:[%s1227 + $0x8] sm:$0x1]
        %v1489 = vld [vmem:[%s1227 + $0xc] sm:$0xf]
        %v1490 = vld [vmem:[%s1227 + $0x10] sm:$0xf]
        %v1491 = vld [vmem:[%s1227 + $0x14] sm:$0x1]
        %v1492 = vld [vmem:[%s1227 + $0x18] sm:$0xf]
        %v1493 = vld [vmem:[%s1227 + $0x1c] sm:$0xf]
        %v1494 = vld [vmem:[%s1227 + $0x20] sm:$0x1]
        %v1495 = vld [vmem:[%s1227 + $0x24] sm:$0xf]
        %v1496 = vld [vmem:[%s1227 + $0x28] sm:$0xf]
        %v1497 = vld [vmem:[%s1227 + $0x2c] sm:$0x1]
        %v1498 = vld [vmem:[%s1227 + $0x30] sm:$0xf]
        %v1499 = vld [vmem:[%s1227 + $0x34] sm:$0xf]
        %v1500 = vld [vmem:[%s1227 + $0x38] sm:$0x1]
        %v1501 = vld [vmem:[%s1227 + $0x3c] sm:$0xf]
        %v1502 = vld [vmem:[%s1227 + $0x40] sm:$0xf]
        %v1503 = vld [vmem:[%s1227 + $0x44] sm:$0x1]
        %v1505 = vshrl.u32 %v1486, 16
        %v1507 = vrot.slane %v1505, 4
        %v1508 = vshll.u32 %v1486, 16
        %v1510 = vrot.slane %v1508, 5
        %v1511 = vor.u32 %v1507, %v1510
        %v1512 = vrot.slane %v1511, 4
        %v1514 = vshll.u32 %v1487, 16
        %v1516 = vrot.slane %v1514, 5
        %v1517 = vsel %vm588, %v1512, %v1516
        %v1518 = vshrl.u32 %v1487, 16
        %v1520 = vrot.slane %v1518, 4
        %v1521 = vor.u32 %v1520, %v1516
        %v1522 = vrot.slane %v1521, 4
        %v1524 = vshll.u32 %v1488, 16
        %v1526 = vrot.slane %v1524, 5
        %v1527 = vsel %vm588, %v1522, %v1526
        %v1529 = vshrl.u32 %v1489, 16
        %v1531 = vrot.slane %v1529, 4
        %v1532 = vshll.u32 %v1489, 16
        %v1534 = vrot.slane %v1532, 5
        %v1535 = vor.u32 %v1531, %v1534
        %v1536 = vrot.slane %v1535, 4
        %v1538 = vshll.u32 %v1490, 16
        %v1540 = vrot.slane %v1538, 5
        %v1541 = vsel %vm588, %v1536, %v1540
        %v1542 = vshrl.u32 %v1490, 16
        %v1544 = vrot.slane %v1542, 4
        %v1545 = vor.u32 %v1544, %v1540
        %v1546 = vrot.slane %v1545, 4
        %v1548 = vshll.u32 %v1491, 16
        %v1550 = vrot.slane %v1548, 5
        %v1551 = vsel %vm588, %v1546, %v1550
        %v1553 = vshrl.u32 %v1492, 16
        %v1555 = vrot.slane %v1553, 4
        %v1556 = vshll.u32 %v1492, 16
        %v1558 = vrot.slane %v1556, 5
        %v1559 = vor.u32 %v1555, %v1558
        %v1560 = vrot.slane %v1559, 4
        %v1562 = vshll.u32 %v1493, 16
        %v1564 = vrot.slane %v1562, 5
        %v1565 = vsel %vm588, %v1560, %v1564
        %v1566 = vshrl.u32 %v1493, 16
        %v1568 = vrot.slane %v1566, 4
        %v1569 = vor.u32 %v1568, %v1564
        %v1570 = vrot.slane %v1569, 4
        %v1572 = vshll.u32 %v1494, 16
        %v1574 = vrot.slane %v1572, 5
        %v1575 = vsel %vm588, %v1570, %v1574
        %v1577 = vshrl.u32 %v1495, 16
        %v1579 = vrot.slane %v1577, 4
        %v1580 = vshll.u32 %v1495, 16
        %v1582 = vrot.slane %v1580, 5
        %v1583 = vor.u32 %v1579, %v1582
        %v1584 = vrot.slane %v1583, 4
        %v1586 = vshll.u32 %v1496, 16
        %v1588 = vrot.slane %v1586, 5
        %v1589 = vsel %vm588, %v1584, %v1588
        %v1590 = vshrl.u32 %v1496, 16
        %v1592 = vrot.slane %v1590, 4
        %v1593 = vor.u32 %v1592, %v1588
        %v1594 = vrot.slane %v1593, 4
        %v1596 = vshll.u32 %v1497, 16
        %v1598 = vrot.slane %v1596, 5
        %v1599 = vsel %vm588, %v1594, %v1598
        %v1601 = vshrl.u32 %v1498, 16
        %v1603 = vrot.slane %v1601, 4
        %v1604 = vshll.u32 %v1498, 16
        %v1606 = vrot.slane %v1604, 5
        %v1607 = vor.u32 %v1603, %v1606
        %v1608 = vrot.slane %v1607, 4
        %v1610 = vshll.u32 %v1499, 16
        %v1612 = vrot.slane %v1610, 5
        %v1613 = vsel %vm588, %v1608, %v1612
        %v1614 = vshrl.u32 %v1499, 16
        %v1616 = vrot.slane %v1614, 4
        %v1617 = vor.u32 %v1616, %v1612
        %v1618 = vrot.slane %v1617, 4
        %v1620 = vshll.u32 %v1500, 16
        %v1622 = vrot.slane %v1620, 5
        %v1623 = vsel %vm588, %v1618, %v1622
        %v1625 = vshrl.u32 %v1501, 16
        %v1627 = vrot.slane %v1625, 4
        %v1628 = vshll.u32 %v1501, 16
        %v1630 = vrot.slane %v1628, 5
        %v1631 = vor.u32 %v1627, %v1630
        %v1632 = vrot.slane %v1631, 4
        %v1634 = vshll.u32 %v1502, 16
        %v1636 = vrot.slane %v1634, 5
        %v1637 = vsel %vm588, %v1632, %v1636
        %v1638 = vshrl.u32 %v1502, 16
        %v1640 = vrot.slane %v1638, 4
        %v1641 = vor.u32 %v1640, %v1636
        %v1642 = vrot.slane %v1641, 4
        %v1644 = vshll.u32 %v1503, 16
        %v1646 = vrot.slane %v1644, 5
        %v1647 = vsel %vm588, %v1642, %v1646
        %1648 = vrot.lane.b32.xlu0 %v1517, 4
        %v1649 = vpop.permute.xlu0 %1648
        %1650 = vrot.lane.b32.xlu0 %v1527, 4
        %v1651 = vpop.permute.xlu0 %1650
        %1652 = vrot.lane.b32.xlu0 %v1541, 4
        %v1653 = vpop.permute.xlu0 %1652
        %1654 = vrot.lane.b32.xlu0 %v1551, 4
        %v1655 = vpop.permute.xlu0 %1654
        %1656 = vrot.lane.b32.xlu0 %v1565, 4
        %v1657 = vpop.permute.xlu0 %1656
        %1658 = vrot.lane.b32.xlu0 %v1575, 4
        %v1659 = vpop.permute.xlu0 %1658
        %1660 = vrot.lane.b32.xlu0 %v1589, 4
        %v1661 = vpop.permute.xlu0 %1660
        %1662 = vrot.lane.b32.xlu0 %v1599, 4
        %v1663 = vpop.permute.xlu0 %1662
        %1664 = vrot.lane.b32.xlu0 %v1613, 4
        %v1665 = vpop.permute.xlu0 %1664
        %1666 = vrot.lane.b32.xlu0 %v1623, 4
        %v1667 = vpop.permute.xlu0 %1666
        %1668 = vrot.lane.b32.xlu0 %v1637, 4
        %v1669 = vpop.permute.xlu0 %1668
        %1670 = vrot.lane.b32.xlu0 %v1647, 4
        %v1671 = vpop.permute.xlu0 %1670
        %1684 = vst.msk [vmem:[#allocation2 + $0x10] sm:$0xf] %vm555, %v1649
        %1685 = vst.msk [vmem:[#allocation2 + $0x34] sm:$0xf] %vm555, %v1651
        %1686 = vst.msk [vmem:[#allocation2 + $0x58] sm:$0xf] %vm555, %v1653
        %1687 = vst.msk [vmem:[#allocation2 + $0x7c] sm:$0xf] %vm555, %v1655
        %1688 = vst.msk [vmem:[#allocation2 + $0xa0] sm:$0xf] %vm555, %v1657
        %1689 = vst.msk [vmem:[#allocation2 + $0xc4] sm:$0xf] %vm555, %v1659
        %1690 = vst.msk [vmem:[#allocation2 + $0xe8] sm:$0xf] %vm555, %v1661
        %1691 = vst.msk [vmem:[#allocation2 + $0x10c] sm:$0xf] %vm555, %v1663
        %1692 = vst.msk [vmem:[#allocation2 + $0x130] sm:$0xf] %vm555, %v1665
        %1693 = vst.msk [vmem:[#allocation2 + $0x154] sm:$0xf] %vm555, %v1667
        %1694 = vst.msk [vmem:[#allocation2 + $0x178] sm:$0xf] %vm555, %v1669
        %1695 = vst.msk [vmem:[#allocation2 + $0x19c] sm:$0xf] %vm555, %v1671
        %v1696 = vld [vmem:[%s1201] sm:$0xe]
        %v1697 = vld [vmem:[%s1201 + $0x4] sm:$0xf]
        %v1698 = vld [vmem:[%s1201 + $0x8] sm:$0x1]
        %v1699 = vld [vmem:[%s1201 + $0xc] sm:$0xe]
        %v1700 = vld [vmem:[%s1201 + $0x10] sm:$0xf]
        %v1701 = vld [vmem:[%s1201 + $0x14] sm:$0x1]
        %v1702 = vld [vmem:[%s1201 + $0x18] sm:$0xe]
        %v1703 = vld [vmem:[%s1201 + $0x1c] sm:$0xf]
        %v1704 = vld [vmem:[%s1201 + $0x20] sm:$0x1]
        %v1705 = vld [vmem:[%s1201 + $0x24] sm:$0xe]
        %v1706 = vld [vmem:[%s1201 + $0x28] sm:$0xf]
        %v1707 = vld [vmem:[%s1201 + $0x2c] sm:$0x1]
        %v1708 = vld [vmem:[%s1201 + $0x30] sm:$0xe]
        %v1709 = vld [vmem:[%s1201 + $0x34] sm:$0xf]
        %v1710 = vld [vmem:[%s1201 + $0x38] sm:$0x1]
        %v1711 = vld [vmem:[%s1201 + $0x3c] sm:$0xe]
        %v1712 = vld [vmem:[%s1201 + $0x40] sm:$0xf]
        %v1713 = vld [vmem:[%s1201 + $0x44] sm:$0x1]
        %v1732 = vrot.slane %v1696, 5
        %v1733 = vrot.slane %v1732, 4
        %v1734 = vrot.slane %v1697, 5
        %v1735 = vsel %vm1005, %v1733, %v1734
        %v1736 = vrot.slane %v1734, 4
        %v1737 = vrot.slane %v1698, 5
        %v1738 = vsel %vm1005, %v1736, %v1737
        %v1739 = vrot.slane %v1699, 5
        %v1740 = vrot.slane %v1739, 4
        %v1741 = vrot.slane %v1700, 5
        %v1742 = vsel %vm1005, %v1740, %v1741
        %v1743 = vrot.slane %v1741, 4
        %v1744 = vrot.slane %v1701, 5
        %v1745 = vsel %vm1005, %v1743, %v1744
        %v1746 = vrot.slane %v1702, 5
        %v1747 = vrot.slane %v1746, 4
        %v1748 = vrot.slane %v1703, 5
        %v1749 = vsel %vm1005, %v1747, %v1748
        %v1750 = vrot.slane %v1748, 4
        %v1751 = vrot.slane %v1704, 5
        %v1752 = vsel %vm1005, %v1750, %v1751
        %v1753 = vrot.slane %v1705, 5
        %v1754 = vrot.slane %v1753, 4
        %v1755 = vrot.slane %v1706, 5
        %v1756 = vsel %vm1005, %v1754, %v1755
        %v1757 = vrot.slane %v1755, 4
        %v1758 = vrot.slane %v1707, 5
        %v1759 = vsel %vm1005, %v1757, %v1758
        %v1760 = vrot.slane %v1708, 5
        %v1761 = vrot.slane %v1760, 4
        %v1762 = vrot.slane %v1709, 5
        %v1763 = vsel %vm1005, %v1761, %v1762
        %v1764 = vrot.slane %v1762, 4
        %v1765 = vrot.slane %v1710, 5
        %v1766 = vsel %vm1005, %v1764, %v1765
        %v1767 = vrot.slane %v1711, 5
        %v1768 = vrot.slane %v1767, 4
        %v1769 = vrot.slane %v1712, 5
        %v1770 = vsel %vm1005, %v1768, %v1769
        %v1771 = vrot.slane %v1769, 4
        %v1772 = vrot.slane %v1713, 5
        %v1773 = vsel %vm1005, %v1771, %v1772
        %1786 = vst.msk [vmem:[#allocation2 + $0x14] sm:$0xf] %vm480, %v1735
        %1787 = vst.msk [vmem:[#allocation2 + $0x38] sm:$0xf] %vm480, %v1738
        %1788 = vst.msk [vmem:[#allocation2 + $0x5c] sm:$0xf] %vm480, %v1742
        %1789 = vst.msk [vmem:[#allocation2 + $0x80] sm:$0xf] %vm480, %v1745
        %1790 = vst.msk [vmem:[#allocation2 + $0xa4] sm:$0xf] %vm480, %v1749
        %1791 = vst.msk [vmem:[#allocation2 + $0xc8] sm:$0xf] %vm480, %v1752
        %1792 = vst.msk [vmem:[#allocation2 + $0xec] sm:$0xf] %vm480, %v1756
        %1793 = vst.msk [vmem:[#allocation2 + $0x110] sm:$0xf] %vm480, %v1759
        %1794 = vst.msk [vmem:[#allocation2 + $0x134] sm:$0xf] %vm480, %v1763
        %1795 = vst.msk [vmem:[#allocation2 + $0x158] sm:$0xf] %vm480, %v1766
        %1796 = vst.msk [vmem:[#allocation2 + $0x17c] sm:$0xf] %vm480, %v1770
        %1797 = vst.msk [vmem:[#allocation2 + $0x1a0] sm:$0xf] %vm480, %v1773
        %v1798 = vld [vmem:[%s1227] sm:$0xe]
        %v1799 = vld [vmem:[%s1227 + $0x4] sm:$0xf]
        %v1800 = vld [vmem:[%s1227 + $0x8] sm:$0x1]
        %v1801 = vld [vmem:[%s1227 + $0xc] sm:$0xe]
        %v1802 = vld [vmem:[%s1227 + $0x10] sm:$0xf]
        %v1803 = vld [vmem:[%s1227 + $0x14] sm:$0x1]
        %v1804 = vld [vmem:[%s1227 + $0x18] sm:$0xe]
        %v1805 = vld [vmem:[%s1227 + $0x1c] sm:$0xf]
        %v1806 = vld [vmem:[%s1227 + $0x20] sm:$0x1]
        %v1807 = vld [vmem:[%s1227 + $0x24] sm:$0xe]
        %v1808 = vld [vmem:[%s1227 + $0x28] sm:$0xf]
        %v1809 = vld [vmem:[%s1227 + $0x2c] sm:$0x1]
        %v1810 = vld [vmem:[%s1227 + $0x30] sm:$0xe]
        %v1811 = vld [vmem:[%s1227 + $0x34] sm:$0xf]
        %v1812 = vld [vmem:[%s1227 + $0x38] sm:$0x1]
        %v1813 = vld [vmem:[%s1227 + $0x3c] sm:$0xe]
        %v1814 = vld [vmem:[%s1227 + $0x40] sm:$0xf]
        %v1815 = vld [vmem:[%s1227 + $0x44] sm:$0x1]
        %v1834 = vrot.slane %v1798, 5
        %v1835 = vrot.slane %v1834, 4
        %v1836 = vrot.slane %v1799, 5
        %v1837 = vsel %vm1005, %v1835, %v1836
        %v1838 = vrot.slane %v1836, 4
        %v1839 = vrot.slane %v1800, 5
        %v1840 = vsel %vm1005, %v1838, %v1839
        %v1841 = vrot.slane %v1801, 5
        %v1842 = vrot.slane %v1841, 4
        %v1843 = vrot.slane %v1802, 5
        %v1844 = vsel %vm1005, %v1842, %v1843
        %v1845 = vrot.slane %v1843, 4
        %v1846 = vrot.slane %v1803, 5
        %v1847 = vsel %vm1005, %v1845, %v1846
        %v1848 = vrot.slane %v1804, 5
        %v1849 = vrot.slane %v1848, 4
        %v1850 = vrot.slane %v1805, 5
        %v1851 = vsel %vm1005, %v1849, %v1850
        %v1852 = vrot.slane %v1850, 4
        %v1853 = vrot.slane %v1806, 5
        %v1854 = vsel %vm1005, %v1852, %v1853
        %v1855 = vrot.slane %v1807, 5
        %v1856 = vrot.slane %v1855, 4
        %v1857 = vrot.slane %v1808, 5
        %v1858 = vsel %vm1005, %v1856, %v1857
        %v1859 = vrot.slane %v1857, 4
        %v1860 = vrot.slane %v1809, 5
        %v1861 = vsel %vm1005, %v1859, %v1860
        %v1862 = vrot.slane %v1810, 5
        %v1863 = vrot.slane %v1862, 4
        %v1864 = vrot.slane %v1811, 5
        %v1865 = vsel %vm1005, %v1863, %v1864
        %v1866 = vrot.slane %v1864, 4
        %v1867 = vrot.slane %v1812, 5
        %v1868 = vsel %vm1005, %v1866, %v1867
        %v1869 = vrot.slane %v1813, 5
        %v1870 = vrot.slane %v1869, 4
        %v1871 = vrot.slane %v1814, 5
        %v1872 = vsel %vm1005, %v1870, %v1871
        %v1873 = vrot.slane %v1871, 4
        %v1874 = vrot.slane %v1815, 5
        %v1875 = vsel %vm1005, %v1873, %v1874
        %1876 = vrot.lane.b32.xlu0 %v1837, 4
        %v1877 = vpop.permute.xlu0 %1876
        %1878 = vrot.lane.b32.xlu0 %v1840, 4
        %v1879 = vpop.permute.xlu0 %1878
        %1880 = vrot.lane.b32.xlu0 %v1844, 4
        %v1881 = vpop.permute.xlu0 %1880
        %1882 = vrot.lane.b32.xlu0 %v1847, 4
        %v1883 = vpop.permute.xlu0 %1882
        %1884 = vrot.lane.b32.xlu0 %v1851, 4
        %v1885 = vpop.permute.xlu0 %1884
        %1886 = vrot.lane.b32.xlu0 %v1854, 4
        %v1887 = vpop.permute.xlu0 %1886
        %1888 = vrot.lane.b32.xlu0 %v1858, 4
        %v1889 = vpop.permute.xlu0 %1888
        %1890 = vrot.lane.b32.xlu0 %v1861, 4
        %v1891 = vpop.permute.xlu0 %1890
        %1892 = vrot.lane.b32.xlu0 %v1865, 4
        %v1893 = vpop.permute.xlu0 %1892
        %1894 = vrot.lane.b32.xlu0 %v1868, 4
        %v1895 = vpop.permute.xlu0 %1894
        %1896 = vrot.lane.b32.xlu0 %v1872, 4
        %v1897 = vpop.permute.xlu0 %1896
        %1898 = vrot.lane.b32.xlu0 %v1875, 4
        %v1899 = vpop.permute.xlu0 %1898
        %1912 = vst.msk [vmem:[#allocation2 + $0x14] sm:$0xf] %vm555, %v1877
        %1913 = vst.msk [vmem:[#allocation2 + $0x38] sm:$0xf] %vm555, %v1879
        %1914 = vst.msk [vmem:[#allocation2 + $0x5c] sm:$0xf] %vm555, %v1881
        %1915 = vst.msk [vmem:[#allocation2 + $0x80] sm:$0xf] %vm555, %v1883
        %1916 = vst.msk [vmem:[#allocation2 + $0xa4] sm:$0xf] %vm555, %v1885
        %1917 = vst.msk [vmem:[#allocation2 + $0xc8] sm:$0xf] %vm555, %v1887
        %1918 = vst.msk [vmem:[#allocation2 + $0xec] sm:$0xf] %vm555, %v1889
        %1919 = vst.msk [vmem:[#allocation2 + $0x110] sm:$0xf] %vm555, %v1891
        %1920 = vst.msk [vmem:[#allocation2 + $0x134] sm:$0xf] %vm555, %v1893
        %1921 = vst.msk [vmem:[#allocation2 + $0x158] sm:$0xf] %vm555, %v1895
        %1922 = vst.msk [vmem:[#allocation2 + $0x17c] sm:$0xf] %vm555, %v1897
        %1923 = vst.msk [vmem:[#allocation2 + $0x1a0] sm:$0xf] %vm555, %v1899
        %s1924 = sadd.s32 %s355, 2
        %s1925 = smul.u32 %s1924, 3
        %s1926 = smul.addr %s1925, 4
        %s1927 = scalar_lea.vmem %s347, %s1926
        %v1928 = vld [vmem:[%s1927] sm:$0xf]
        %v1929 = vld [vmem:[%s1927 + $0x4] sm:$0xf]
        %v1930 = vld [vmem:[%s1927 + $0xc] sm:$0xf]
        %v1931 = vld [vmem:[%s1927 + $0x10] sm:$0xf]
        %v1932 = vld [vmem:[%s1927 + $0x18] sm:$0xf]
        %v1933 = vld [vmem:[%s1927 + $0x1c] sm:$0xf]
        %v1934 = vld [vmem:[%s1927 + $0x24] sm:$0xf]
        %v1935 = vld [vmem:[%s1927 + $0x28] sm:$0xf]
        %v1936 = vld [vmem:[%s1927 + $0x30] sm:$0xf]
        %v1937 = vld [vmem:[%s1927 + $0x34] sm:$0xf]
        %v1938 = vld [vmem:[%s1927 + $0x3c] sm:$0xf]
        %v1939 = vld [vmem:[%s1927 + $0x40] sm:$0xf]
        %1940 = vst.msk [vmem:[#allocation2 + $0x18] sm:$0xf] %vm480, %v1928
        %1941 = vst.msk [vmem:[#allocation2 + $0x3c] sm:$0xf] %vm480, %v1929
        %1942 = vst.msk [vmem:[#allocation2 + $0x60] sm:$0xf] %vm480, %v1930
        %1943 = vst.msk [vmem:[#allocation2 + $0x84] sm:$0xf] %vm480, %v1931
        %1944 = vst.msk [vmem:[#allocation2 + $0xa8] sm:$0xf] %vm480, %v1932
        %1945 = vst.msk [vmem:[#allocation2 + $0xcc] sm:$0xf] %vm480, %v1933
        %1946 = vst.msk [vmem:[#allocation2 + $0xf0] sm:$0xf] %vm480, %v1934
        %1947 = vst.msk [vmem:[#allocation2 + $0x114] sm:$0xf] %vm480, %v1935
        %1948 = vst.msk [vmem:[#allocation2 + $0x138] sm:$0xf] %vm480, %v1936
        %1949 = vst.msk [vmem:[#allocation2 + $0x15c] sm:$0xf] %vm480, %v1937
        %1950 = vst.msk [vmem:[#allocation2 + $0x180] sm:$0xf] %vm480, %v1938
        %1951 = vst.msk [vmem:[#allocation2 + $0x1a4] sm:$0xf] %vm480, %v1939
        %s1952 = smul.addr %s1925, 4
        %s1953 = scalar_lea.vmem %s352, %s1952
        %v1954 = vld [vmem:[%s1953] sm:$0xf]
        %v1955 = vld [vmem:[%s1953 + $0x4] sm:$0xf]
        %v1956 = vld [vmem:[%s1953 + $0xc] sm:$0xf]
        %v1957 = vld [vmem:[%s1953 + $0x10] sm:$0xf]
        %v1958 = vld [vmem:[%s1953 + $0x18] sm:$0xf]
        %v1959 = vld [vmem:[%s1953 + $0x1c] sm:$0xf]
        %v1960 = vld [vmem:[%s1953 + $0x24] sm:$0xf]
        %v1961 = vld [vmem:[%s1953 + $0x28] sm:$0xf]
        %v1962 = vld [vmem:[%s1953 + $0x30] sm:$0xf]
        %v1963 = vld [vmem:[%s1953 + $0x34] sm:$0xf]
        %v1964 = vld [vmem:[%s1953 + $0x3c] sm:$0xf]
        %v1965 = vld [vmem:[%s1953 + $0x40] sm:$0xf]
        %1978 = vrot.lane.b32.xlu0 %v1954, 4
        %v1979 = vpop.permute.xlu0 %1978
        %1980 = vrot.lane.b32.xlu0 %v1955, 4
        %v1981 = vpop.permute.xlu0 %1980
        %1982 = vrot.lane.b32.xlu0 %v1956, 4
        %v1983 = vpop.permute.xlu0 %1982
        %1984 = vrot.lane.b32.xlu0 %v1957, 4
        %v1985 = vpop.permute.xlu0 %1984
        %1986 = vrot.lane.b32.xlu0 %v1958, 4
        %v1987 = vpop.permute.xlu0 %1986
        %1988 = vrot.lane.b32.xlu0 %v1959, 4
        %v1989 = vpop.permute.xlu0 %1988
        %1990 = vrot.lane.b32.xlu0 %v1960, 4
        %v1991 = vpop.permute.xlu0 %1990
        %1992 = vrot.lane.b32.xlu0 %v1961, 4
        %v1993 = vpop.permute.xlu0 %1992
        %1994 = vrot.lane.b32.xlu0 %v1962, 4
        %v1995 = vpop.permute.xlu0 %1994
        %1996 = vrot.lane.b32.xlu0 %v1963, 4
        %v1997 = vpop.permute.xlu0 %1996
        %1998 = vrot.lane.b32.xlu0 %v1964, 4
        %v1999 = vpop.permute.xlu0 %1998
        %2000 = vrot.lane.b32.xlu0 %v1965, 4
        %v2001 = vpop.permute.xlu0 %2000
        %2014 = vst.msk [vmem:[#allocation2 + $0x18] sm:$0xf] %vm555, %v1979
        %2015 = vst.msk [vmem:[#allocation2 + $0x3c] sm:$0xf] %vm555, %v1981
        %2016 = vst.msk [vmem:[#allocation2 + $0x60] sm:$0xf] %vm555, %v1983
        %2017 = vst.msk [vmem:[#allocation2 + $0x84] sm:$0xf] %vm555, %v1985
        %2018 = vst.msk [vmem:[#allocation2 + $0xa8] sm:$0xf] %vm555, %v1987
        %2019 = vst.msk [vmem:[#allocation2 + $0xcc] sm:$0xf] %vm555, %v1989
        %2020 = vst.msk [vmem:[#allocation2 + $0xf0] sm:$0xf] %vm555, %v1991
        %2021 = vst.msk [vmem:[#allocation2 + $0x114] sm:$0xf] %vm555, %v1993
        %2022 = vst.msk [vmem:[#allocation2 + $0x138] sm:$0xf] %vm555, %v1995
        %2023 = vst.msk [vmem:[#allocation2 + $0x15c] sm:$0xf] %vm555, %v1997
        %2024 = vst.msk [vmem:[#allocation2 + $0x180] sm:$0xf] %vm555, %v1999
        %2025 = vst.msk [vmem:[#allocation2 + $0x1a4] sm:$0xf] %vm555, %v2001
        %v2026 = vld [vmem:[%s1927] sm:$0xf]
        %v2027 = vld [vmem:[%s1927 + $0x4] sm:$0xf]
        %v2028 = vld [vmem:[%s1927 + $0x8] sm:$0x1]
        %v2029 = vld [vmem:[%s1927 + $0xc] sm:$0xf]
        %v2030 = vld [vmem:[%s1927 + $0x10] sm:$0xf]
        %v2031 = vld [vmem:[%s1927 + $0x14] sm:$0x1]
        %v2032 = vld [vmem:[%s1927 + $0x18] sm:$0xf]
        %v2033 = vld [vmem:[%s1927 + $0x1c] sm:$0xf]
        %v2034 = vld [vmem:[%s1927 + $0x20] sm:$0x1]
        %v2035 = vld [vmem:[%s1927 + $0x24] sm:$0xf]
        %v2036 = vld [vmem:[%s1927 + $0x28] sm:$0xf]
        %v2037 = vld [vmem:[%s1927 + $0x2c] sm:$0x1]
        %v2038 = vld [vmem:[%s1927 + $0x30] sm:$0xf]
        %v2039 = vld [vmem:[%s1927 + $0x34] sm:$0xf]
        %v2040 = vld [vmem:[%s1927 + $0x38] sm:$0x1]
        %v2041 = vld [vmem:[%s1927 + $0x3c] sm:$0xf]
        %v2042 = vld [vmem:[%s1927 + $0x40] sm:$0xf]
        %v2043 = vld [vmem:[%s1927 + $0x44] sm:$0x1]
        %v2045 = vshrl.u32 %v2026, 16
        %v2047 = vrot.slane %v2045, 4
        %v2048 = vshll.u32 %v2026, 16
        %v2050 = vrot.slane %v2048, 5
        %v2051 = vor.u32 %v2047, %v2050
        %v2052 = vrot.slane %v2051, 4
        %v2054 = vshll.u32 %v2027, 16
        %v2056 = vrot.slane %v2054, 5
        %v2057 = vsel %vm588, %v2052, %v2056
        %v2058 = vshrl.u32 %v2027, 16
        %v2060 = vrot.slane %v2058, 4
        %v2061 = vor.u32 %v2060, %v2056
        %v2062 = vrot.slane %v2061, 4
        %v2064 = vshll.u32 %v2028, 16
        %v2066 = vrot.slane %v2064, 5
        %v2067 = vsel %vm588, %v2062, %v2066
        %v2069 = vshrl.u32 %v2029, 16
        %v2071 = vrot.slane %v2069, 4
        %v2072 = vshll.u32 %v2029, 16
        %v2074 = vrot.slane %v2072, 5
        %v2075 = vor.u32 %v2071, %v2074
        %v2076 = vrot.slane %v2075, 4
        %v2078 = vshll.u32 %v2030, 16
        %v2080 = vrot.slane %v2078, 5
        %v2081 = vsel %vm588, %v2076, %v2080
        %v2082 = vshrl.u32 %v2030, 16
        %v2084 = vrot.slane %v2082, 4
        %v2085 = vor.u32 %v2084, %v2080
        %v2086 = vrot.slane %v2085, 4
        %v2088 = vshll.u32 %v2031, 16
        %v2090 = vrot.slane %v2088, 5
        %v2091 = vsel %vm588, %v2086, %v2090
        %v2093 = vshrl.u32 %v2032, 16
        %v2095 = vrot.slane %v2093, 4
        %v2096 = vshll.u32 %v2032, 16
        %v2098 = vrot.slane %v2096, 5
        %v2099 = vor.u32 %v2095, %v2098
        %v2100 = vrot.slane %v2099, 4
        %v2102 = vshll.u32 %v2033, 16
        %v2104 = vrot.slane %v2102, 5
        %v2105 = vsel %vm588, %v2100, %v2104
        %v2106 = vshrl.u32 %v2033, 16
        %v2108 = vrot.slane %v2106, 4
        %v2109 = vor.u32 %v2108, %v2104
        %v2110 = vrot.slane %v2109, 4
        %v2112 = vshll.u32 %v2034, 16
        %v2114 = vrot.slane %v2112, 5
        %v2115 = vsel %vm588, %v2110, %v2114
        %v2117 = vshrl.u32 %v2035, 16
        %v2119 = vrot.slane %v2117, 4
        %v2120 = vshll.u32 %v2035, 16
        %v2122 = vrot.slane %v2120, 5
        %v2123 = vor.u32 %v2119, %v2122
        %v2124 = vrot.slane %v2123, 4
        %v2126 = vshll.u32 %v2036, 16
        %v2128 = vrot.slane %v2126, 5
        %v2129 = vsel %vm588, %v2124, %v2128
        %v2130 = vshrl.u32 %v2036, 16
        %v2132 = vrot.slane %v2130, 4
        %v2133 = vor.u32 %v2132, %v2128
        %v2134 = vrot.slane %v2133, 4
        %v2136 = vshll.u32 %v2037, 16
        %v2138 = vrot.slane %v2136, 5
        %v2139 = vsel %vm588, %v2134, %v2138
        %v2141 = vshrl.u32 %v2038, 16
        %v2143 = vrot.slane %v2141, 4
        %v2144 = vshll.u32 %v2038, 16
        %v2146 = vrot.slane %v2144, 5
        %v2147 = vor.u32 %v2143, %v2146
        %v2148 = vrot.slane %v2147, 4
        %v2150 = vshll.u32 %v2039, 16
        %v2152 = vrot.slane %v2150, 5
        %v2153 = vsel %vm588, %v2148, %v2152
        %v2154 = vshrl.u32 %v2039, 16
        %v2156 = vrot.slane %v2154, 4
        %v2157 = vor.u32 %v2156, %v2152
        %v2158 = vrot.slane %v2157, 4
        %v2160 = vshll.u32 %v2040, 16
        %v2162 = vrot.slane %v2160, 5
        %v2163 = vsel %vm588, %v2158, %v2162
        %v2165 = vshrl.u32 %v2041, 16
        %v2167 = vrot.slane %v2165, 4
        %v2168 = vshll.u32 %v2041, 16
        %v2170 = vrot.slane %v2168, 5
        %v2171 = vor.u32 %v2167, %v2170
        %v2172 = vrot.slane %v2171, 4
        %v2174 = vshll.u32 %v2042, 16
        %v2176 = vrot.slane %v2174, 5
        %v2177 = vsel %vm588, %v2172, %v2176
        %v2178 = vshrl.u32 %v2042, 16
        %v2180 = vrot.slane %v2178, 4
        %v2181 = vor.u32 %v2180, %v2176
        %v2182 = vrot.slane %v2181, 4
        %v2184 = vshll.u32 %v2043, 16
        %v2186 = vrot.slane %v2184, 5
        %v2187 = vsel %vm588, %v2182, %v2186
        %2200 = vst.msk [vmem:[#allocation2 + $0x1c] sm:$0xf] %vm480, %v2057
        %2201 = vst.msk [vmem:[#allocation2 + $0x40] sm:$0xf] %vm480, %v2067
        %2202 = vst.msk [vmem:[#allocation2 + $0x64] sm:$0xf] %vm480, %v2081
        %2203 = vst.msk [vmem:[#allocation2 + $0x88] sm:$0xf] %vm480, %v2091
        %2204 = vst.msk [vmem:[#allocation2 + $0xac] sm:$0xf] %vm480, %v2105
        %2205 = vst.msk [vmem:[#allocation2 + $0xd0] sm:$0xf] %vm480, %v2115
        %2206 = vst.msk [vmem:[#allocation2 + $0xf4] sm:$0xf] %vm480, %v2129
        %2207 = vst.msk [vmem:[#allocation2 + $0x118] sm:$0xf] %vm480, %v2139
        %2208 = vst.msk [vmem:[#allocation2 + $0x13c] sm:$0xf] %vm480, %v2153
        %2209 = vst.msk [vmem:[#allocation2 + $0x160] sm:$0xf] %vm480, %v2163
        %2210 = vst.msk [vmem:[#allocation2 + $0x184] sm:$0xf] %vm480, %v2177
        %2211 = vst.msk [vmem:[#allocation2 + $0x1a8] sm:$0xf] %vm480, %v2187
        %v2212 = vld [vmem:[%s1953] sm:$0xf]
        %v2213 = vld [vmem:[%s1953 + $0x4] sm:$0xf]
        %v2214 = vld [vmem:[%s1953 + $0x8] sm:$0x1]
        %v2215 = vld [vmem:[%s1953 + $0xc] sm:$0xf]
        %v2216 = vld [vmem:[%s1953 + $0x10] sm:$0xf]
        %v2217 = vld [vmem:[%s1953 + $0x14] sm:$0x1]
        %v2218 = vld [vmem:[%s1953 + $0x18] sm:$0xf]
        %v2219 = vld [vmem:[%s1953 + $0x1c] sm:$0xf]
        %v2220 = vld [vmem:[%s1953 + $0x20] sm:$0x1]
        %v2221 = vld [vmem:[%s1953 + $0x24] sm:$0xf]
        %v2222 = vld [vmem:[%s1953 + $0x28] sm:$0xf]
        %v2223 = vld [vmem:[%s1953 + $0x2c] sm:$0x1]
        %v2224 = vld [vmem:[%s1953 + $0x30] sm:$0xf]
        %v2225 = vld [vmem:[%s1953 + $0x34] sm:$0xf]
        %v2226 = vld [vmem:[%s1953 + $0x38] sm:$0x1]
        %v2227 = vld [vmem:[%s1953 + $0x3c] sm:$0xf]
        %v2228 = vld [vmem:[%s1953 + $0x40] sm:$0xf]
        %v2229 = vld [vmem:[%s1953 + $0x44] sm:$0x1]
        %v2231 = vshrl.u32 %v2212, 16
        %v2233 = vrot.slane %v2231, 4
        %v2234 = vshll.u32 %v2212, 16
        %v2236 = vrot.slane %v2234, 5
        %v2237 = vor.u32 %v2233, %v2236
        %v2238 = vrot.slane %v2237, 4
        %v2240 = vshll.u32 %v2213, 16
        %v2242 = vrot.slane %v2240, 5
        %v2243 = vsel %vm588, %v2238, %v2242
        %v2244 = vshrl.u32 %v2213, 16
        %v2246 = vrot.slane %v2244, 4
        %v2247 = vor.u32 %v2246, %v2242
        %v2248 = vrot.slane %v2247, 4
        %v2250 = vshll.u32 %v2214, 16
        %v2252 = vrot.slane %v2250, 5
        %v2253 = vsel %vm588, %v2248, %v2252
        %v2255 = vshrl.u32 %v2215, 16
        %v2257 = vrot.slane %v2255, 4
        %v2258 = vshll.u32 %v2215, 16
        %v2260 = vrot.slane %v2258, 5
        %v2261 = vor.u32 %v2257, %v2260
        %v2262 = vrot.slane %v2261, 4
        %v2264 = vshll.u32 %v2216, 16
        %v2266 = vrot.slane %v2264, 5
        %v2267 = vsel %vm588, %v2262, %v2266
        %v2268 = vshrl.u32 %v2216, 16
        %v2270 = vrot.slane %v2268, 4
        %v2271 = vor.u32 %v2270, %v2266
        %v2272 = vrot.slane %v2271, 4
        %v2274 = vshll.u32 %v2217, 16
        %v2276 = vrot.slane %v2274, 5
        %v2277 = vsel %vm588, %v2272, %v2276
        %v2279 = vshrl.u32 %v2218, 16
        %v2281 = vrot.slane %v2279, 4
        %v2282 = vshll.u32 %v2218, 16
        %v2284 = vrot.slane %v2282, 5
        %v2285 = vor.u32 %v2281, %v2284
        %v2286 = vrot.slane %v2285, 4
        %v2288 = vshll.u32 %v2219, 16
        %v2290 = vrot.slane %v2288, 5
        %v2291 = vsel %vm588, %v2286, %v2290
        %v2292 = vshrl.u32 %v2219, 16
        %v2294 = vrot.slane %v2292, 4
        %v2295 = vor.u32 %v2294, %v2290
        %v2296 = vrot.slane %v2295, 4
        %v2298 = vshll.u32 %v2220, 16
        %v2300 = vrot.slane %v2298, 5
        %v2301 = vsel %vm588, %v2296, %v2300
        %v2303 = vshrl.u32 %v2221, 16
        %v2305 = vrot.slane %v2303, 4
        %v2306 = vshll.u32 %v2221, 16
        %v2308 = vrot.slane %v2306, 5
        %v2309 = vor.u32 %v2305, %v2308
        %v2310 = vrot.slane %v2309, 4
        %v2312 = vshll.u32 %v2222, 16
        %v2314 = vrot.slane %v2312, 5
        %v2315 = vsel %vm588, %v2310, %v2314
        %v2316 = vshrl.u32 %v2222, 16
        %v2318 = vrot.slane %v2316, 4
        %v2319 = vor.u32 %v2318, %v2314
        %v2320 = vrot.slane %v2319, 4
        %v2322 = vshll.u32 %v2223, 16
        %v2324 = vrot.slane %v2322, 5
        %v2325 = vsel %vm588, %v2320, %v2324
        %v2327 = vshrl.u32 %v2224, 16
        %v2329 = vrot.slane %v2327, 4
        %v2330 = vshll.u32 %v2224, 16
        %v2332 = vrot.slane %v2330, 5
        %v2333 = vor.u32 %v2329, %v2332
        %v2334 = vrot.slane %v2333, 4
        %v2336 = vshll.u32 %v2225, 16
        %v2338 = vrot.slane %v2336, 5
        %v2339 = vsel %vm588, %v2334, %v2338
        %v2340 = vshrl.u32 %v2225, 16
        %v2342 = vrot.slane %v2340, 4
        %v2343 = vor.u32 %v2342, %v2338
        %v2344 = vrot.slane %v2343, 4
        %v2346 = vshll.u32 %v2226, 16
        %v2348 = vrot.slane %v2346, 5
        %v2349 = vsel %vm588, %v2344, %v2348
        %v2351 = vshrl.u32 %v2227, 16
        %v2353 = vrot.slane %v2351, 4
        %v2354 = vshll.u32 %v2227, 16
        %v2356 = vrot.slane %v2354, 5
        %v2357 = vor.u32 %v2353, %v2356
        %v2358 = vrot.slane %v2357, 4
        %v2360 = vshll.u32 %v2228, 16
        %v2362 = vrot.slane %v2360, 5
        %v2363 = vsel %vm588, %v2358, %v2362
        %v2364 = vshrl.u32 %v2228, 16
        %v2366 = vrot.slane %v2364, 4
        %v2367 = vor.u32 %v2366, %v2362
        %v2368 = vrot.slane %v2367, 4
        %v2370 = vshll.u32 %v2229, 16
        %v2372 = vrot.slane %v2370, 5
        %v2373 = vsel %vm588, %v2368, %v2372
        %2374 = vrot.lane.b32.xlu0 %v2243, 4
        %v2375 = vpop.permute.xlu0 %2374
        %2376 = vrot.lane.b32.xlu0 %v2253, 4
        %v2377 = vpop.permute.xlu0 %2376
        %2378 = vrot.lane.b32.xlu0 %v2267, 4
        %v2379 = vpop.permute.xlu0 %2378
        %2380 = vrot.lane.b32.xlu0 %v2277, 4
        %v2381 = vpop.permute.xlu0 %2380
        %2382 = vrot.lane.b32.xlu0 %v2291, 4
        %v2383 = vpop.permute.xlu0 %2382
        %2384 = vrot.lane.b32.xlu0 %v2301, 4
        %v2385 = vpop.permute.xlu0 %2384
        %2386 = vrot.lane.b32.xlu0 %v2315, 4
        %v2387 = vpop.permute.xlu0 %2386
        %2388 = vrot.lane.b32.xlu0 %v2325, 4
        %v2389 = vpop.permute.xlu0 %2388
        %2390 = vrot.lane.b32.xlu0 %v2339, 4
        %v2391 = vpop.permute.xlu0 %2390
        %2392 = vrot.lane.b32.xlu0 %v2349, 4
        %v2393 = vpop.permute.xlu0 %2392
        %2394 = vrot.lane.b32.xlu0 %v2363, 4
        %v2395 = vpop.permute.xlu0 %2394
        %2396 = vrot.lane.b32.xlu0 %v2373, 4
        %v2397 = vpop.permute.xlu0 %2396
        %2410 = vst.msk [vmem:[#allocation2 + $0x1c] sm:$0xf] %vm555, %v2375
        %2411 = vst.msk [vmem:[#allocation2 + $0x40] sm:$0xf] %vm555, %v2377
        %2412 = vst.msk [vmem:[#allocation2 + $0x64] sm:$0xf] %vm555, %v2379
        %2413 = vst.msk [vmem:[#allocation2 + $0x88] sm:$0xf] %vm555, %v2381
        %2414 = vst.msk [vmem:[#allocation2 + $0xac] sm:$0xf] %vm555, %v2383
        %2415 = vst.msk [vmem:[#allocation2 + $0xd0] sm:$0xf] %vm555, %v2385
        %2416 = vst.msk [vmem:[#allocation2 + $0xf4] sm:$0xf] %vm555, %v2387
        %2417 = vst.msk [vmem:[#allocation2 + $0x118] sm:$0xf] %vm555, %v2389
        %2418 = vst.msk [vmem:[#allocation2 + $0x13c] sm:$0xf] %vm555, %v2391
        %2419 = vst.msk [vmem:[#allocation2 + $0x160] sm:$0xf] %vm555, %v2393
        %2420 = vst.msk [vmem:[#allocation2 + $0x184] sm:$0xf] %vm555, %v2395
        %2421 = vst.msk [vmem:[#allocation2 + $0x1a8] sm:$0xf] %vm555, %v2397
        %v2422 = vld [vmem:[%s1927] sm:$0xe]
        %v2423 = vld [vmem:[%s1927 + $0x4] sm:$0xf]
        %v2424 = vld [vmem:[%s1927 + $0x8] sm:$0x1]
        %v2425 = vld [vmem:[%s1927 + $0xc] sm:$0xe]
        %v2426 = vld [vmem:[%s1927 + $0x10] sm:$0xf]
        %v2427 = vld [vmem:[%s1927 + $0x14] sm:$0x1]
        %v2428 = vld [vmem:[%s1927 + $0x18] sm:$0xe]
        %v2429 = vld [vmem:[%s1927 + $0x1c] sm:$0xf]
        %v2430 = vld [vmem:[%s1927 + $0x20] sm:$0x1]
        %v2431 = vld [vmem:[%s1927 + $0x24] sm:$0xe]
        %v2432 = vld [vmem:[%s1927 + $0x28] sm:$0xf]
        %v2433 = vld [vmem:[%s1927 + $0x2c] sm:$0x1]
        %v2434 = vld [vmem:[%s1927 + $0x30] sm:$0xe]
        %v2435 = vld [vmem:[%s1927 + $0x34] sm:$0xf]
        %v2436 = vld [vmem:[%s1927 + $0x38] sm:$0x1]
        %v2437 = vld [vmem:[%s1927 + $0x3c] sm:$0xe]
        %v2438 = vld [vmem:[%s1927 + $0x40] sm:$0xf]
        %v2439 = vld [vmem:[%s1927 + $0x44] sm:$0x1]
        %v2458 = vrot.slane %v2422, 5
        %v2459 = vrot.slane %v2458, 4
        %v2460 = vrot.slane %v2423, 5
        %v2461 = vsel %vm1005, %v2459, %v2460
        %v2462 = vrot.slane %v2460, 4
        %v2463 = vrot.slane %v2424, 5
        %v2464 = vsel %vm1005, %v2462, %v2463
        %v2465 = vrot.slane %v2425, 5
        %v2466 = vrot.slane %v2465, 4
        %v2467 = vrot.slane %v2426, 5
        %v2468 = vsel %vm1005, %v2466, %v2467
        %v2469 = vrot.slane %v2467, 4
        %v2470 = vrot.slane %v2427, 5
        %v2471 = vsel %vm1005, %v2469, %v2470
        %v2472 = vrot.slane %v2428, 5
        %v2473 = vrot.slane %v2472, 4
        %v2474 = vrot.slane %v2429, 5
        %v2475 = vsel %vm1005, %v2473, %v2474
        %v2476 = vrot.slane %v2474, 4
        %v2477 = vrot.slane %v2430, 5
        %v2478 = vsel %vm1005, %v2476, %v2477
        %v2479 = vrot.slane %v2431, 5
        %v2480 = vrot.slane %v2479, 4
        %v2481 = vrot.slane %v2432, 5
        %v2482 = vsel %vm1005, %v2480, %v2481
        %v2483 = vrot.slane %v2481, 4
        %v2484 = vrot.slane %v2433, 5
        %v2485 = vsel %vm1005, %v2483, %v2484
        %v2486 = vrot.slane %v2434, 5
        %v2487 = vrot.slane %v2486, 4
        %v2488 = vrot.slane %v2435, 5
        %v2489 = vsel %vm1005, %v2487, %v2488
        %v2490 = vrot.slane %v2488, 4
        %v2491 = vrot.slane %v2436, 5
        %v2492 = vsel %vm1005, %v2490, %v2491
        %v2493 = vrot.slane %v2437, 5
        %v2494 = vrot.slane %v2493, 4
        %v2495 = vrot.slane %v2438, 5
        %v2496 = vsel %vm1005, %v2494, %v2495
        %v2497 = vrot.slane %v2495, 4
        %v2498 = vrot.slane %v2439, 5
        %v2499 = vsel %vm1005, %v2497, %v2498
        %2512 = vst.msk [vmem:[#allocation2 + $0x20] sm:$0xf] %vm480, %v2461
        %2513 = vst.msk [vmem:[#allocation2 + $0x44] sm:$0xf] %vm480, %v2464
        %2514 = vst.msk [vmem:[#allocation2 + $0x68] sm:$0xf] %vm480, %v2468
        %2515 = vst.msk [vmem:[#allocation2 + $0x8c] sm:$0xf] %vm480, %v2471
        %2516 = vst.msk [vmem:[#allocation2 + $0xb0] sm:$0xf] %vm480, %v2475
        %2517 = vst.msk [vmem:[#allocation2 + $0xd4] sm:$0xf] %vm480, %v2478
        %2518 = vst.msk [vmem:[#allocation2 + $0xf8] sm:$0xf] %vm480, %v2482
        %2519 = vst.msk [vmem:[#allocation2 + $0x11c] sm:$0xf] %vm480, %v2485
        %2520 = vst.msk [vmem:[#allocation2 + $0x140] sm:$0xf] %vm480, %v2489
        %2521 = vst.msk [vmem:[#allocation2 + $0x164] sm:$0xf] %vm480, %v2492
        %2522 = vst.msk [vmem:[#allocation2 + $0x188] sm:$0xf] %vm480, %v2496
        %2523 = vst.msk [vmem:[#allocation2 + $0x1ac] sm:$0xf] %vm480, %v2499
        %v2524 = vld [vmem:[%s1953] sm:$0xe]
        %v2525 = vld [vmem:[%s1953 + $0x4] sm:$0xf]
        %v2526 = vld [vmem:[%s1953 + $0x8] sm:$0x1]
        %v2527 = vld [vmem:[%s1953 + $0xc] sm:$0xe]
        %v2528 = vld [vmem:[%s1953 + $0x10] sm:$0xf]
        %v2529 = vld [vmem:[%s1953 + $0x14] sm:$0x1]
        %v2530 = vld [vmem:[%s1953 + $0x18] sm:$0xe]
        %v2531 = vld [vmem:[%s1953 + $0x1c] sm:$0xf]
        %v2532 = vld [vmem:[%s1953 + $0x20] sm:$0x1]
        %v2533 = vld [vmem:[%s1953 + $0x24] sm:$0xe]
        %v2534 = vld [vmem:[%s1953 + $0x28] sm:$0xf]
        %v2535 = vld [vmem:[%s1953 + $0x2c] sm:$0x1]
        %v2536 = vld [vmem:[%s1953 + $0x30] sm:$0xe]
        %v2537 = vld [vmem:[%s1953 + $0x34] sm:$0xf]
        %v2538 = vld [vmem:[%s1953 + $0x38] sm:$0x1]
        %v2539 = vld [vmem:[%s1953 + $0x3c] sm:$0xe]
        %v2540 = vld [vmem:[%s1953 + $0x40] sm:$0xf]
        %v2541 = vld [vmem:[%s1953 + $0x44] sm:$0x1]
        %v2560 = vrot.slane %v2524, 5
        %v2561 = vrot.slane %v2560, 4
        %v2562 = vrot.slane %v2525, 5
        %v2563 = vsel %vm1005, %v2561, %v2562
        %v2564 = vrot.slane %v2562, 4
        %v2565 = vrot.slane %v2526, 5
        %v2566 = vsel %vm1005, %v2564, %v2565
        %v2567 = vrot.slane %v2527, 5
        %v2568 = vrot.slane %v2567, 4
        %v2569 = vrot.slane %v2528, 5
        %v2570 = vsel %vm1005, %v2568, %v2569
        %v2571 = vrot.slane %v2569, 4
        %v2572 = vrot.slane %v2529, 5
        %v2573 = vsel %vm1005, %v2571, %v2572
        %v2574 = vrot.slane %v2530, 5
        %v2575 = vrot.slane %v2574, 4
        %v2576 = vrot.slane %v2531, 5
        %v2577 = vsel %vm1005, %v2575, %v2576
        %v2578 = vrot.slane %v2576, 4
        %v2579 = vrot.slane %v2532, 5
        %v2580 = vsel %vm1005, %v2578, %v2579
        %v2581 = vrot.slane %v2533, 5
        %v2582 = vrot.slane %v2581, 4
        %v2583 = vrot.slane %v2534, 5
        %v2584 = vsel %vm1005, %v2582, %v2583
        %v2585 = vrot.slane %v2583, 4
        %v2586 = vrot.slane %v2535, 5
        %v2587 = vsel %vm1005, %v2585, %v2586
        %v2588 = vrot.slane %v2536, 5
        %v2589 = vrot.slane %v2588, 4
        %v2590 = vrot.slane %v2537, 5
        %v2591 = vsel %vm1005, %v2589, %v2590
        %v2592 = vrot.slane %v2590, 4
        %v2593 = vrot.slane %v2538, 5
        %v2594 = vsel %vm1005, %v2592, %v2593
        %v2595 = vrot.slane %v2539, 5
        %v2596 = vrot.slane %v2595, 4
        %v2597 = vrot.slane %v2540, 5
        %v2598 = vsel %vm1005, %v2596, %v2597
        %v2599 = vrot.slane %v2597, 4
        %v2600 = vrot.slane %v2541, 5
        %v2601 = vsel %vm1005, %v2599, %v2600
        %2602 = vrot.lane.b32.xlu0 %v2563, 4
        %v2603 = vpop.permute.xlu0 %2602
        %2604 = vrot.lane.b32.xlu0 %v2566, 4
        %v2605 = vpop.permute.xlu0 %2604
        %2606 = vrot.lane.b32.xlu0 %v2570, 4
        %v2607 = vpop.permute.xlu0 %2606
        %2608 = vrot.lane.b32.xlu0 %v2573, 4
        %v2609 = vpop.permute.xlu0 %2608
        %2610 = vrot.lane.b32.xlu0 %v2577, 4
        %v2611 = vpop.permute.xlu0 %2610
        %2612 = vrot.lane.b32.xlu0 %v2580, 4
        %v2613 = vpop.permute.xlu0 %2612
        %2614 = vrot.lane.b32.xlu0 %v2584, 4
        %v2615 = vpop.permute.xlu0 %2614
        %2616 = vrot.lane.b32.xlu0 %v2587, 4
        %v2617 = vpop.permute.xlu0 %2616
        %2618 = vrot.lane.b32.xlu0 %v2591, 4
        %v2619 = vpop.permute.xlu0 %2618
        %2620 = vrot.lane.b32.xlu0 %v2594, 4
        %v2621 = vpop.permute.xlu0 %2620
        %2622 = vrot.lane.b32.xlu0 %v2598, 4
        %v2623 = vpop.permute.xlu0 %2622
        %2624 = vrot.lane.b32.xlu0 %v2601, 4
        %v2625 = vpop.permute.xlu0 %2624
        %2638 = vst.msk [vmem:[#allocation2 + $0x20] sm:$0xf] %vm555, %v2603
        %2639 = vst.msk [vmem:[#allocation2 + $0x44] sm:$0xf] %vm555, %v2605
        %2640 = vst.msk [vmem:[#allocation2 + $0x68] sm:$0xf] %vm555, %v2607
        %2641 = vst.msk [vmem:[#allocation2 + $0x8c] sm:$0xf] %vm555, %v2609
        %2642 = vst.msk [vmem:[#allocation2 + $0xb0] sm:$0xf] %vm555, %v2611
        %2643 = vst.msk [vmem:[#allocation2 + $0xd4] sm:$0xf] %vm555, %v2613
        %2644 = vst.msk [vmem:[#allocation2 + $0xf8] sm:$0xf] %vm555, %v2615
        %2645 = vst.msk [vmem:[#allocation2 + $0x11c] sm:$0xf] %vm555, %v2617
        %2646 = vst.msk [vmem:[#allocation2 + $0x140] sm:$0xf] %vm555, %v2619
        %2647 = vst.msk [vmem:[#allocation2 + $0x164] sm:$0xf] %vm555, %v2621
        %2648 = vst.msk [vmem:[#allocation2 + $0x188] sm:$0xf] %vm555, %v2623
        %2649 = vst.msk [vmem:[#allocation2 + $0x1ac] sm:$0xf] %vm555, %v2625
        %v2650 = vld [vmem:[#allocation2] sm:$0xff]
        %v2651 = vld [vmem:[#allocation2 + $0x8] sm:$0xff]
        %v2652 = vld [vmem:[#allocation2 + $0x10] sm:$0xff]
        %v2653 = vld [vmem:[#allocation2 + $0x18] sm:$0xff]
        %v2654 = vld [vmem:[#allocation2 + $0x20] sm:$0xf]
        %v2655 = vld [vmem:[#allocation2 + $0x24] sm:$0xff]
        %v2656 = vld [vmem:[#allocation2 + $0x2c] sm:$0xff]
        %v2657 = vld [vmem:[#allocation2 + $0x34] sm:$0xff]
        %v2658 = vld [vmem:[#allocation2 + $0x3c] sm:$0xff]
        %v2659 = vld [vmem:[#allocation2 + $0x44] sm:$0xf]
        %v2660 = vld [vmem:[#allocation2 + $0x48] sm:$0xff]
        %v2661 = vld [vmem:[#allocation2 + $0x50] sm:$0xff]
        %v2662 = vld [vmem:[#allocation2 + $0x58] sm:$0xff]
        %v2663 = vld [vmem:[#allocation2 + $0x60] sm:$0xff]
        %v2664 = vld [vmem:[#allocation2 + $0x68] sm:$0xf]
        %v2665 = vld [vmem:[#allocation2 + $0x6c] sm:$0xff]
        %v2666 = vld [vmem:[#allocation2 + $0x74] sm:$0xff]
        %v2667 = vld [vmem:[#allocation2 + $0x7c] sm:$0xff]
        %v2668 = vld [vmem:[#allocation2 + $0x84] sm:$0xff]
        %v2669 = vld [vmem:[#allocation2 + $0x8c] sm:$0xf]
        %v2670 = vld [vmem:[#allocation2 + $0x90] sm:$0xff]
        %v2671 = vld [vmem:[#allocation2 + $0x98] sm:$0xff]
        %v2672 = vld [vmem:[#allocation2 + $0xa0] sm:$0xff]
        %v2673 = vld [vmem:[#allocation2 + $0xa8] sm:$0xff]
        %v2674 = vld [vmem:[#allocation2 + $0xb0] sm:$0xf]
        %v2675 = vld [vmem:[#allocation2 + $0xb4] sm:$0xff]
        %v2676 = vld [vmem:[#allocation2 + $0xbc] sm:$0xff]
        %v2677 = vld [vmem:[#allocation2 + $0xc4] sm:$0xff]
        %v2678 = vld [vmem:[#allocation2 + $0xcc] sm:$0xff]
        %v2679 = vld [vmem:[#allocation2 + $0xd4] sm:$0xf]
        %v2680 = vld [vmem:[#allocation2 + $0xd8] sm:$0xff]
        %v2681 = vld [vmem:[#allocation2 + $0xe0] sm:$0xff]
        %v2682 = vld [vmem:[#allocation2 + $0xe8] sm:$0xff]
        %v2683 = vld [vmem:[#allocation2 + $0xf0] sm:$0xff]
        %v2684 = vld [vmem:[#allocation2 + $0xf8] sm:$0xf]
        %v2685 = vld [vmem:[#allocation2 + $0xfc] sm:$0xff]
        %v2686 = vld [vmem:[#allocation2 + $0x104] sm:$0xff]
        %v2687 = vld [vmem:[#allocation2 + $0x10c] sm:$0xff]
        %v2688 = vld [vmem:[#allocation2 + $0x114] sm:$0xff]
        %v2689 = vld [vmem:[#allocation2 + $0x11c] sm:$0xf]
        %v2690 = vld [vmem:[#allocation2 + $0x120] sm:$0xff]
        %v2691 = vld [vmem:[#allocation2 + $0x128] sm:$0xff]
        %v2692 = vld [vmem:[#allocation2 + $0x130] sm:$0xff]
        %v2693 = vld [vmem:[#allocation2 + $0x138] sm:$0xff]
        %v2694 = vld [vmem:[#allocation2 + $0x140] sm:$0xf]
        %v2695 = vld [vmem:[#allocation2 + $0x144] sm:$0xff]
        %v2696 = vld [vmem:[#allocation2 + $0x14c] sm:$0xff]
        %v2697 = vld [vmem:[#allocation2 + $0x154] sm:$0xff]
        %v2698 = vld [vmem:[#allocation2 + $0x15c] sm:$0xff]
        %v2699 = vld [vmem:[#allocation2 + $0x164] sm:$0xf]
        %v2700 = vld [vmem:[#allocation2 + $0x168] sm:$0xff]
        %v2701 = vld [vmem:[#allocation2 + $0x170] sm:$0xff]
        %v2702 = vld [vmem:[#allocation2 + $0x178] sm:$0xff]
        %v2703 = vld [vmem:[#allocation2 + $0x180] sm:$0xff]
        %v2704 = vld [vmem:[#allocation2 + $0x188] sm:$0xf]
        %v2705 = vld [vmem:[#allocation2 + $0x18c] sm:$0xff]
        %v2706 = vld [vmem:[#allocation2 + $0x194] sm:$0xff]
        %v2707 = vld [vmem:[#allocation2 + $0x19c] sm:$0xff]
        %v2708 = vld [vmem:[#allocation2 + $0x1a4] sm:$0xff]
        %v2709 = vld [vmem:[#allocation2 + $0x1ac] sm:$0xf]
        %v2710 = vld [vmem:[%s2] sm:$0xf]
        %v2711 = vld [vmem:[%s2 + $0x4] sm:$0xf]
        %v2712 = vld [vmem:[%s2 + $0x8] sm:$0xf]
        %v2713 = vld [vmem:[%s2 + $0xc] sm:$0xf]
        %v2714 = vld [vmem:[%s2 + $0x10] sm:$0xf]
        %v2715 = vld [vmem:[%s2 + $0x14] sm:$0xf]
        %v2716 = vld [vmem:[%s2 + $0x18] sm:$0xf]
        %v2717 = vld [vmem:[%s2 + $0x1c] sm:$0xf]
        %v2718 = vld [vmem:[%s2 + $0x20] sm:$0xf]
        %v2719 = vld [vmem:[%s2 + $0x24] sm:$0xf]
        %v2720 = vld [vmem:[%s2 + $0x28] sm:$0xf]
        %v2721 = vld [vmem:[%s2 + $0x2c] sm:$0xf]
        %v2722 = vld [vmem:[%s2 + $0x30] sm:$0xf]
        %v2723 = vld [vmem:[%s2 + $0x34] sm:$0xf]
        %v2724 = vld [vmem:[%s2 + $0x38] sm:$0xf]
        %v2725 = vld [vmem:[%s2 + $0x3c] sm:$0xf]
        %v2726 = vld [vmem:[%s2 + $0x40] sm:$0xf]
        %v2727 = vld [vmem:[%s2 + $0x44] sm:$0xf]
        %v2728 = vld [vmem:[%s2 + $0x48] sm:$0xf]
        %v2729 = vld [vmem:[%s2 + $0x4c] sm:$0xf]
        %v2730 = vld [vmem:[%s2 + $0x50] sm:$0xf]
        %v2731 = vld [vmem:[%s2 + $0x54] sm:$0xf]
        %v2732 = vld [vmem:[%s2 + $0x58] sm:$0xf]
        %v2733 = vld [vmem:[%s2 + $0x5c] sm:$0xf]
        %v2734 = vld [vmem:[%s2 + $0x60] sm:$0xf]
        %v2735 = vld [vmem:[%s2 + $0x64] sm:$0xf]
        %v2736 = vld [vmem:[%s2 + $0x68] sm:$0xf]
        %v2737 = vld [vmem:[%s2 + $0x6c] sm:$0xf]
        %v2738 = vld [vmem:[%s2 + $0x70] sm:$0xf]
        %v2739 = vld [vmem:[%s2 + $0x74] sm:$0xf]
        %v2740 = vld [vmem:[%s2 + $0x78] sm:$0xf]
        %v2741 = vld [vmem:[%s2 + $0x7c] sm:$0xf]
        %v2742 = vld [vmem:[%s2 + $0x80] sm:$0xf]
        %v2743 = vld [vmem:[%s2 + $0x84] sm:$0xf]
        %v2744 = vld [vmem:[%s2 + $0x88] sm:$0xf]
        %v2745 = vld [vmem:[%s2 + $0x8c] sm:$0xf]
        %v2746 = vld [vmem:[%s2 + $0x90] sm:$0xf]
        %v2747 = vld [vmem:[%s2 + $0x94] sm:$0xf]
        %v2748 = vld [vmem:[%s2 + $0x98] sm:$0xf]
        %v2749 = vld [vmem:[%s2 + $0x9c] sm:$0xf]
        %v2750 = vld [vmem:[%s2 + $0xa0] sm:$0xf]
        %v2751 = vld [vmem:[%s2 + $0xa4] sm:$0xf]
        %v2752 = vld [vmem:[%s2 + $0xa8] sm:$0xf]
        %v2753 = vld [vmem:[%s2 + $0xac] sm:$0xf]
        %v2754 = vld [vmem:[%s2 + $0xb0] sm:$0xf]
        %v2755 = vld [vmem:[%s2 + $0xb4] sm:$0xf]
        %v2756 = vld [vmem:[%s2 + $0xb8] sm:$0xf]
        %v2757 = vld [vmem:[%s2 + $0xbc] sm:$0xf]
        %v2758 = vld [vmem:[%s2 + $0xc0] sm:$0xf]
        %v2759 = vld [vmem:[%s2 + $0xc4] sm:$0xf]
        %v2760 = vld [vmem:[%s2 + $0xc8] sm:$0xf]
        %v2761 = vld [vmem:[%s2 + $0xcc] sm:$0xf]
        %v2762 = vld [vmem:[%s2 + $0xd0] sm:$0xf]
        %v2763 = vld [vmem:[%s2 + $0xd4] sm:$0xf]
        %v2764 = vld [vmem:[%s2 + $0xd8] sm:$0xf]
        %v2765 = vld [vmem:[%s2 + $0xdc] sm:$0xf]
        %v2766 = vld [vmem:[%s2 + $0xe0] sm:$0xf]
        %v2767 = vld [vmem:[%s2 + $0xe4] sm:$0xf]
        %v2768 = vld [vmem:[%s2 + $0xe8] sm:$0xf]
        %v2769 = vld [vmem:[%s2 + $0xec] sm:$0xf]
        %v2770 = vld [vmem:[%s2 + $0xf0] sm:$0xf]
        %v2771 = vld [vmem:[%s2 + $0xf4] sm:$0xf]
        %v2772 = vld [vmem:[%s2 + $0xf8] sm:$0xf]
        %v2773 = vld [vmem:[%s2 + $0xfc] sm:$0xf]
        %v2774 = vld [vmem:[%s2 + $0x100] sm:$0xf]
        %v2775 = vld [vmem:[%s2 + $0x104] sm:$0xf]
        %v2776 = vld [vmem:[%s2 + $0x108] sm:$0xf]
        %v2777 = vld [vmem:[%s2 + $0x10c] sm:$0xf]
        %v2778 = vld [vmem:[%s2 + $0x110] sm:$0xf]
        %v2779 = vld [vmem:[%s2 + $0x114] sm:$0xf]
        %v2780 = vld [vmem:[%s2 + $0x118] sm:$0xf]
        %v2781 = vld [vmem:[%s2 + $0x11c] sm:$0xf]
        %v2782 = vld [vmem:[%s2 + $0x120] sm:$0xf]
        %v2783 = vld [vmem:[%s2 + $0x124] sm:$0xf]
        %v2784 = vld [vmem:[%s2 + $0x128] sm:$0xf]
        %v2785 = vld [vmem:[%s2 + $0x12c] sm:$0xf]
        %v2786 = vld [vmem:[%s2 + $0x130] sm:$0xf]
        %v2787 = vld [vmem:[%s2 + $0x134] sm:$0xf]
        %v2788 = vld [vmem:[%s2 + $0x138] sm:$0xf]
        %v2789 = vld [vmem:[%s2 + $0x13c] sm:$0xf]
        %v2790 = vld [vmem:[%s2 + $0x140] sm:$0xf]
        %v2791 = vld [vmem:[%s2 + $0x144] sm:$0xf]
        %v2792 = vld [vmem:[%s2 + $0x148] sm:$0xf]
        %v2793 = vld [vmem:[%s2 + $0x14c] sm:$0xf]
        %v2794 = vld [vmem:[%s2 + $0x150] sm:$0xf]
        %v2795 = vld [vmem:[%s2 + $0x154] sm:$0xf]
        %v2796 = vld [vmem:[%s2 + $0x158] sm:$0xf]
        %v2797 = vld [vmem:[%s2 + $0x15c] sm:$0xf]
        %v2798 = vld [vmem:[%s2 + $0x160] sm:$0xf]
        %v2799 = vld [vmem:[%s2 + $0x164] sm:$0xf]
        %v2800 = vld [vmem:[%s2 + $0x168] sm:$0xf]
        %v2801 = vld [vmem:[%s2 + $0x16c] sm:$0xf]
        %v2802 = vld [vmem:[%s2 + $0x170] sm:$0xf]
        %v2803 = vld [vmem:[%s2 + $0x174] sm:$0xf]
        %v2804 = vld [vmem:[%s2 + $0x178] sm:$0xf]
        %v2805 = vld [vmem:[%s2 + $0x17c] sm:$0xf]
        %v2806 = vld [vmem:[%s2 + $0x180] sm:$0xf]
        %v2807 = vld [vmem:[%s2 + $0x184] sm:$0xf]
        %v2808 = vld [vmem:[%s2 + $0x188] sm:$0xf]
        %v2809 = vld [vmem:[%s2 + $0x18c] sm:$0xf]
        %v2810 = vld [vmem:[%s2 + $0x190] sm:$0xf]
        %v2811 = vld [vmem:[%s2 + $0x194] sm:$0xf]
        %v2812 = vld [vmem:[%s2 + $0x198] sm:$0xf]
        %v2813 = vld [vmem:[%s2 + $0x19c] sm:$0xf]
        %v2814 = vld [vmem:[%s2 + $0x1a0] sm:$0xf]
        %v2815 = vld [vmem:[%s2 + $0x1a4] sm:$0xf]
        %v2816 = vld [vmem:[%s2 + $0x1a8] sm:$0xf]
        %v2817 = vld [vmem:[%s2 + $0x1ac] sm:$0xf]
        %v2818 = vld [vmem:[%s2 + $0x1b0] sm:$0xf]
        %v2819 = vld [vmem:[%s2 + $0x1b4] sm:$0xf]
        %v2820 = vld [vmem:[%s2 + $0x1b8] sm:$0xf]
        %v2821 = vld [vmem:[%s2 + $0x1bc] sm:$0xf]
        %v2822 = vld [vmem:[%s2 + $0x1c0] sm:$0xf]
        %v2823 = vld [vmem:[%s2 + $0x1c4] sm:$0xf]
        %v2824 = vld [vmem:[%s2 + $0x1c8] sm:$0xf]
        %v2825 = vld [vmem:[%s2 + $0x1cc] sm:$0xf]
        %v2826 = vld [vmem:[%s2 + $0x1d0] sm:$0xf]
        %v2827 = vld [vmem:[%s2 + $0x1d4] sm:$0xf]
        %v2828 = vld [vmem:[%s2 + $0x1d8] sm:$0xf]
        %v2829 = vld [vmem:[%s2 + $0x1dc] sm:$0xf]
        %v2830 = vld [vmem:[%s2 + $0x1e0] sm:$0xf]
        %v2831 = vld [vmem:[%s2 + $0x1e4] sm:$0xf]
        %v2832 = vld [vmem:[%s2 + $0x1e8] sm:$0xf]
        %v2833 = vld [vmem:[%s2 + $0x1ec] sm:$0xf]
        %v2834 = vld [vmem:[%s2 + $0x1f0] sm:$0xf]
        %v2835 = vld [vmem:[%s2 + $0x1f4] sm:$0xf]
        %v2836 = vld [vmem:[%s2 + $0x1f8] sm:$0xf]
        %v2837 = vld [vmem:[%s2 + $0x1fc] sm:$0xf]
        %v2838 = vld [vmem:[%s2 + $0x200] sm:$0xf]
        %v2839 = vld [vmem:[%s2 + $0x204] sm:$0xf]
        %v2840 = vld [vmem:[%s2 + $0x208] sm:$0xf]
        %v2841 = vld [vmem:[%s2 + $0x20c] sm:$0xf]
        %v2842 = vld [vmem:[%s2 + $0x210] sm:$0xf]
        %v2843 = vld [vmem:[%s2 + $0x214] sm:$0xf]
        %v2844 = vld [vmem:[%s2 + $0x218] sm:$0xf]
        %v2845 = vld [vmem:[%s2 + $0x21c] sm:$0xf]
        %v2846 = vld [vmem:[%s2 + $0x220] sm:$0xf]
        %v2847 = vld [vmem:[%s2 + $0x224] sm:$0xf]
        %v2848 = vld [vmem:[%s2 + $0x228] sm:$0xf]
        %v2849 = vld [vmem:[%s2 + $0x22c] sm:$0xf]
        %v2850 = vld [vmem:[%s2 + $0x230] sm:$0xf]
        %v2851 = vld [vmem:[%s2 + $0x234] sm:$0xf]
        %v2852 = vld [vmem:[%s2 + $0x238] sm:$0xf]
        %v2853 = vld [vmem:[%s2 + $0x23c] sm:$0xf]
        %v2914 = vunpack.c.l.b16 %v2650
        %v2915 = vunpack.c.h.b16 %v2650
        %v2916 = vunpack.c.l.b16 %v2651
        %v2917 = vunpack.c.h.b16 %v2651
        %v2918 = vunpack.c.l.b16 %v2652
        %v2919 = vunpack.c.h.b16 %v2652
        %v2920 = vunpack.c.l.b16 %v2653
        %v2921 = vunpack.c.h.b16 %v2653
        %v2922 = vunpack.c.l.b16 %v2654
        %v2923 = vunpack.c.l.b16 %v2655
        %v2924 = vunpack.c.h.b16 %v2655
        %v2925 = vunpack.c.l.b16 %v2656
        %v2926 = vunpack.c.h.b16 %v2656
        %v2927 = vunpack.c.l.b16 %v2657
        %v2928 = vunpack.c.h.b16 %v2657
        %v2929 = vunpack.c.l.b16 %v2658
        %v2930 = vunpack.c.h.b16 %v2658
        %v2931 = vunpack.c.l.b16 %v2659
        %v2932 = vunpack.c.l.b16 %v2660
        %v2933 = vunpack.c.h.b16 %v2660
        %v2934 = vunpack.c.l.b16 %v2661
        %v2935 = vunpack.c.h.b16 %v2661
        %v2936 = vunpack.c.l.b16 %v2662
        %v2937 = vunpack.c.h.b16 %v2662
        %v2938 = vunpack.c.l.b16 %v2663
        %v2939 = vunpack.c.h.b16 %v2663
        %v2940 = vunpack.c.l.b16 %v2664
        %v2941 = vunpack.c.l.b16 %v2665
        %v2942 = vunpack.c.h.b16 %v2665
        %v2943 = vunpack.c.l.b16 %v2666
        %v2944 = vunpack.c.h.b16 %v2666
        %v2945 = vunpack.c.l.b16 %v2667
        %v2946 = vunpack.c.h.b16 %v2667
        %v2947 = vunpack.c.l.b16 %v2668
        %v2948 = vunpack.c.h.b16 %v2668
        %v2949 = vunpack.c.l.b16 %v2669
        %v2950 = vunpack.c.l.b16 %v2670
        %v2951 = vunpack.c.h.b16 %v2670
        %v2952 = vunpack.c.l.b16 %v2671
        %v2953 = vunpack.c.h.b16 %v2671
        %v2954 = vunpack.c.l.b16 %v2672
        %v2955 = vunpack.c.h.b16 %v2672
        %v2956 = vunpack.c.l.b16 %v2673
        %v2957 = vunpack.c.h.b16 %v2673
        %v2958 = vunpack.c.l.b16 %v2674
        %v2959 = vunpack.c.l.b16 %v2675
        %v2960 = vunpack.c.h.b16 %v2675
        %v2961 = vunpack.c.l.b16 %v2676
        %v2962 = vunpack.c.h.b16 %v2676
        %v2963 = vunpack.c.l.b16 %v2677
        %v2964 = vunpack.c.h.b16 %v2677
        %v2965 = vunpack.c.l.b16 %v2678
        %v2966 = vunpack.c.h.b16 %v2678
        %v2967 = vunpack.c.l.b16 %v2679
        %v2968 = vunpack.c.l.b16 %v2680
        %v2969 = vunpack.c.h.b16 %v2680
        %v2970 = vunpack.c.l.b16 %v2681
        %v2971 = vunpack.c.h.b16 %v2681
        %v2972 = vunpack.c.l.b16 %v2682
        %v2973 = vunpack.c.h.b16 %v2682
        %v2974 = vunpack.c.l.b16 %v2683
        %v2975 = vunpack.c.h.b16 %v2683
        %v2976 = vunpack.c.l.b16 %v2684
        %v2977 = vunpack.c.l.b16 %v2685
        %v2978 = vunpack.c.h.b16 %v2685
        %v2979 = vunpack.c.l.b16 %v2686
        %v2980 = vunpack.c.h.b16 %v2686
        %v2981 = vunpack.c.l.b16 %v2687
        %v2982 = vunpack.c.h.b16 %v2687
        %v2983 = vunpack.c.l.b16 %v2688
        %v2984 = vunpack.c.h.b16 %v2688
        %v2985 = vunpack.c.l.b16 %v2689
        %v2986 = vunpack.c.l.b16 %v2690
        %v2987 = vunpack.c.h.b16 %v2690
        %v2988 = vunpack.c.l.b16 %v2691
        %v2989 = vunpack.c.h.b16 %v2691
        %v2990 = vunpack.c.l.b16 %v2692
        %v2991 = vunpack.c.h.b16 %v2692
        %v2992 = vunpack.c.l.b16 %v2693
        %v2993 = vunpack.c.h.b16 %v2693
        %v2994 = vunpack.c.l.b16 %v2694
        %v2995 = vunpack.c.l.b16 %v2695
        %v2996 = vunpack.c.h.b16 %v2695
        %v2997 = vunpack.c.l.b16 %v2696
        %v2998 = vunpack.c.h.b16 %v2696
        %v2999 = vunpack.c.l.b16 %v2697
        %v3000 = vunpack.c.h.b16 %v2697
        %v3001 = vunpack.c.l.b16 %v2698
        %v3002 = vunpack.c.h.b16 %v2698
        %v3003 = vunpack.c.l.b16 %v2699
        %v3004 = vunpack.c.l.b16 %v2700
        %v3005 = vunpack.c.h.b16 %v2700
        %v3006 = vunpack.c.l.b16 %v2701
        %v3007 = vunpack.c.h.b16 %v2701
        %v3008 = vunpack.c.l.b16 %v2702
        %v3009 = vunpack.c.h.b16 %v2702
        %v3010 = vunpack.c.l.b16 %v2703
        %v3011 = vunpack.c.h.b16 %v2703
        %v3012 = vunpack.c.l.b16 %v2704
        %v3013 = vunpack.c.l.b16 %v2705
        %v3014 = vunpack.c.h.b16 %v2705
        %v3015 = vunpack.c.l.b16 %v2706
        %v3016 = vunpack.c.h.b16 %v2706
        %v3017 = vunpack.c.l.b16 %v2707
        %v3018 = vunpack.c.h.b16 %v2707
        %v3019 = vunpack.c.l.b16 %v2708
        %v3020 = vunpack.c.h.b16 %v2708
        %v3021 = vunpack.c.l.b16 %v2709
        %v3022 = vpack.c.b16 %v2923, %v2914
        %v3023 = vpack.c.b16 %v2924, %v2915
        %v3024 = vpack.c.b16 %v2925, %v2916
        %v3025 = vpack.c.b16 %v2926, %v2917
        %v3026 = vpack.c.b16 %v2927, %v2918
        %v3027 = vpack.c.b16 %v2928, %v2919
        %v3028 = vpack.c.b16 %v2929, %v2920
        %v3029 = vpack.c.b16 %v2930, %v2921
        %v3030 = vpack.c.b16 %v2931, %v2922
        %v3031 = vpack.c.b16 %v2941, %v2932
        %v3032 = vpack.c.b16 %v2942, %v2933
        %v3033 = vpack.c.b16 %v2943, %v2934
        %v3034 = vpack.c.b16 %v2944, %v2935
        %v3035 = vpack.c.b16 %v2945, %v2936
        %v3036 = vpack.c.b16 %v2946, %v2937
        %v3037 = vpack.c.b16 %v2947, %v2938
        %v3038 = vpack.c.b16 %v2948, %v2939
        %v3039 = vpack.c.b16 %v2949, %v2940
        %v3040 = vpack.c.b16 %v2959, %v2950
        %v3041 = vpack.c.b16 %v2960, %v2951
        %v3042 = vpack.c.b16 %v2961, %v2952
        %v3043 = vpack.c.b16 %v2962, %v2953
        %v3044 = vpack.c.b16 %v2963, %v2954
        %v3045 = vpack.c.b16 %v2964, %v2955
        %v3046 = vpack.c.b16 %v2965, %v2956
        %v3047 = vpack.c.b16 %v2966, %v2957
        %v3048 = vpack.c.b16 %v2967, %v2958
        %v3049 = vpack.c.b16 %v2977, %v2968
        %v3050 = vpack.c.b16 %v2978, %v2969
        %v3051 = vpack.c.b16 %v2979, %v2970
        %v3052 = vpack.c.b16 %v2980, %v2971
        %v3053 = vpack.c.b16 %v2981, %v2972
        %v3054 = vpack.c.b16 %v2982, %v2973
        %v3055 = vpack.c.b16 %v2983, %v2974
        %v3056 = vpack.c.b16 %v2984, %v2975
        %v3057 = vpack.c.b16 %v2985, %v2976
        %v3058 = vpack.c.b16 %v2995, %v2986
        %v3059 = vpack.c.b16 %v2996, %v2987
        %v3060 = vpack.c.b16 %v2997, %v2988
        %v3061 = vpack.c.b16 %v2998, %v2989
        %v3062 = vpack.c.b16 %v2999, %v2990
        %v3063 = vpack.c.b16 %v3000, %v2991
        %v3064 = vpack.c.b16 %v3001, %v2992
        %v3065 = vpack.c.b16 %v3002, %v2993
        %v3066 = vpack.c.b16 %v3003, %v2994
        %v3067 = vpack.c.b16 %v3013, %v3004
        %v3068 = vpack.c.b16 %v3014, %v3005
        %v3069 = vpack.c.b16 %v3015, %v3006
        %v3070 = vpack.c.b16 %v3016, %v3007
        %v3071 = vpack.c.b16 %v3017, %v3008
        %v3072 = vpack.c.b16 %v3018, %v3009
        %v3073 = vpack.c.b16 %v3019, %v3010
        %v3074 = vpack.c.b16 %v3020, %v3011
        %v3075 = vpack.c.b16 %v3021, %v3012
        %v3274 = vunpack.c.l.b16 %v2710
        %v3275 = vunpack.c.l.b16 %v2711
        %v3276 = vunpack.c.l.b16 %v2712
        %v3277 = vunpack.c.l.b16 %v2713
        %v3278 = vunpack.c.l.b16 %v2714
        %v3279 = vunpack.c.l.b16 %v2715
        %v3280 = vunpack.c.l.b16 %v2716
        %v3281 = vunpack.c.l.b16 %v2717
        %v3282 = vunpack.c.l.b16 %v2718
        %v3283 = vunpack.c.l.b16 %v2719
        %v3284 = vunpack.c.l.b16 %v2720
        %v3285 = vunpack.c.l.b16 %v2721
        %v3286 = vunpack.c.l.b16 %v2722
        %v3287 = vunpack.c.l.b16 %v2723
        %v3288 = vunpack.c.l.b16 %v2724
        %v3289 = vunpack.c.l.b16 %v2725
        %v3290 = vunpack.c.l.b16 %v2726
        %v3291 = vunpack.c.l.b16 %v2727
        %v3292 = vunpack.c.l.b16 %v2728
        %v3293 = vunpack.c.l.b16 %v2729
        %v3294 = vunpack.c.l.b16 %v2730
        %v3295 = vunpack.c.l.b16 %v2731
        %v3296 = vunpack.c.l.b16 %v2732
        %v3297 = vunpack.c.l.b16 %v2733
        %v3298 = vunpack.c.l.b16 %v2734
        %v3299 = vunpack.c.l.b16 %v2735
        %v3300 = vunpack.c.l.b16 %v2736
        %v3301 = vunpack.c.l.b16 %v2737
        %v3302 = vunpack.c.l.b16 %v2738
        %v3303 = vunpack.c.l.b16 %v2739
        %v3304 = vunpack.c.l.b16 %v2740
        %v3305 = vunpack.c.l.b16 %v2741
        %v3306 = vunpack.c.l.b16 %v2742
        %v3307 = vunpack.c.l.b16 %v2743
        %v3308 = vunpack.c.l.b16 %v2744
        %v3309 = vunpack.c.l.b16 %v2745
        %v3310 = vunpack.c.l.b16 %v2746
        %v3311 = vunpack.c.l.b16 %v2747
        %v3312 = vunpack.c.l.b16 %v2748
        %v3313 = vunpack.c.l.b16 %v2749
        %v3314 = vunpack.c.l.b16 %v2750
        %v3315 = vunpack.c.l.b16 %v2751
        %v3316 = vunpack.c.l.b16 %v2752
        %v3317 = vunpack.c.l.b16 %v2753
        %v3318 = vunpack.c.l.b16 %v2754
        %v3319 = vunpack.c.l.b16 %v2755
        %v3320 = vunpack.c.l.b16 %v2756
        %v3321 = vunpack.c.l.b16 %v2757
        %v3322 = vunpack.c.l.b16 %v2758
        %v3323 = vunpack.c.l.b16 %v2759
        %v3324 = vunpack.c.l.b16 %v2760
        %v3325 = vunpack.c.l.b16 %v2761
        %v3326 = vunpack.c.l.b16 %v2762
        %v3327 = vunpack.c.l.b16 %v2763
        %v3328 = vunpack.c.l.b16 %v2764
        %v3329 = vunpack.c.l.b16 %v2765
        %v3330 = vunpack.c.l.b16 %v2766
        %v3331 = vunpack.c.l.b16 %v2767
        %v3332 = vunpack.c.l.b16 %v2768
        %v3333 = vunpack.c.l.b16 %v2769
        %v3334 = vunpack.c.l.b16 %v2770
        %v3335 = vunpack.c.l.b16 %v2771
        %v3336 = vunpack.c.l.b16 %v2772
        %v3337 = vunpack.c.l.b16 %v2773
        %v3338 = vunpack.c.l.b16 %v2774
        %v3339 = vunpack.c.l.b16 %v2775
        %v3340 = vunpack.c.l.b16 %v2776
        %v3341 = vunpack.c.l.b16 %v2777
        %v3342 = vunpack.c.l.b16 %v2778
        %v3343 = vunpack.c.l.b16 %v2779
        %v3344 = vunpack.c.l.b16 %v2780
        %v3345 = vunpack.c.l.b16 %v2781
        %v3346 = vunpack.c.l.b16 %v2782
        %v3347 = vunpack.c.l.b16 %v2783
        %v3348 = vunpack.c.l.b16 %v2784
        %v3349 = vunpack.c.l.b16 %v2785
        %v3350 = vunpack.c.l.b16 %v2786
        %v3351 = vunpack.c.l.b16 %v2787
        %v3352 = vunpack.c.l.b16 %v2788
        %v3353 = vunpack.c.l.b16 %v2789
        %v3354 = vunpack.c.l.b16 %v2790
        %v3355 = vunpack.c.l.b16 %v2791
        %v3356 = vunpack.c.l.b16 %v2792
        %v3357 = vunpack.c.l.b16 %v2793
        %v3358 = vunpack.c.l.b16 %v2794
        %v3359 = vunpack.c.l.b16 %v2795
        %v3360 = vunpack.c.l.b16 %v2796
        %v3361 = vunpack.c.l.b16 %v2797
        %v3362 = vunpack.c.l.b16 %v2798
        %v3363 = vunpack.c.l.b16 %v2799
        %v3364 = vunpack.c.l.b16 %v2800
        %v3365 = vunpack.c.l.b16 %v2801
        %v3366 = vunpack.c.l.b16 %v2802
        %v3367 = vunpack.c.l.b16 %v2803
        %v3368 = vunpack.c.l.b16 %v2804
        %v3369 = vunpack.c.l.b16 %v2805
        %v3370 = vunpack.c.l.b16 %v2806
        %v3371 = vunpack.c.l.b16 %v2807
        %v3372 = vunpack.c.l.b16 %v2808
        %v3373 = vunpack.c.l.b16 %v2809
        %v3374 = vunpack.c.l.b16 %v2810
        %v3375 = vunpack.c.l.b16 %v2811
        %v3376 = vunpack.c.l.b16 %v2812
        %v3377 = vunpack.c.l.b16 %v2813
        %v3378 = vunpack.c.l.b16 %v2814
        %v3379 = vunpack.c.l.b16 %v2815
        %v3380 = vunpack.c.l.b16 %v2816
        %v3381 = vunpack.c.l.b16 %v2817
        %v3382 = vunpack.c.l.b16 %v2818
        %v3383 = vunpack.c.l.b16 %v2819
        %v3384 = vunpack.c.l.b16 %v2820
        %v3385 = vunpack.c.l.b16 %v2821
        %v3386 = vunpack.c.l.b16 %v2822
        %v3387 = vunpack.c.l.b16 %v2823
        %v3388 = vunpack.c.l.b16 %v2824
        %v3389 = vunpack.c.l.b16 %v2825
        %v3390 = vunpack.c.l.b16 %v2826
        %v3391 = vunpack.c.l.b16 %v2827
        %v3392 = vunpack.c.l.b16 %v2828
        %v3393 = vunpack.c.l.b16 %v2829
        %v3394 = vunpack.c.l.b16 %v2830
        %v3395 = vunpack.c.l.b16 %v2831
        %v3396 = vunpack.c.l.b16 %v2832
        %v3397 = vunpack.c.l.b16 %v2833
        %v3398 = vunpack.c.l.b16 %v2834
        %v3399 = vunpack.c.l.b16 %v2835
        %v3400 = vunpack.c.l.b16 %v2836
        %v3401 = vunpack.c.l.b16 %v2837
        %v3402 = vunpack.c.l.b16 %v2838
        %v3403 = vunpack.c.l.b16 %v2839
        %v3404 = vunpack.c.l.b16 %v2840
        %v3405 = vunpack.c.l.b16 %v2841
        %v3406 = vunpack.c.l.b16 %v2842
        %v3407 = vunpack.c.l.b16 %v2843
        %v3408 = vunpack.c.l.b16 %v2844
        %v3409 = vunpack.c.l.b16 %v2845
        %v3410 = vunpack.c.l.b16 %v2846
        %v3411 = vunpack.c.l.b16 %v2847
        %v3412 = vunpack.c.l.b16 %v2848
        %v3413 = vunpack.c.l.b16 %v2849
        %v3414 = vunpack.c.l.b16 %v2850
        %v3415 = vunpack.c.l.b16 %v2851
        %v3416 = vunpack.c.l.b16 %v2852
        %v3417 = vunpack.c.l.b16 %v2853
        %v3418 = vpack.c.b16 %v3275, %v3274
        %v3419 = vpack.c.b16 %v3277, %v3276
        %v3420 = vpack.c.b16 %v3279, %v3278
        %v3421 = vpack.c.b16 %v3281, %v3280
        %v3422 = vpack.c.b16 %v3283, %v3282
        %v3423 = vpack.c.b16 %v3285, %v3284
        %v3424 = vpack.c.b16 %v3287, %v3286
        %v3425 = vpack.c.b16 %v3289, %v3288
        %v3426 = vpack.c.b16 %v3291, %v3290
        %v3427 = vpack.c.b16 %v3293, %v3292
        %v3428 = vpack.c.b16 %v3295, %v3294
        %v3429 = vpack.c.b16 %v3297, %v3296
        %v3430 = vpack.c.b16 %v3299, %v3298
        %v3431 = vpack.c.b16 %v3301, %v3300
        %v3432 = vpack.c.b16 %v3303, %v3302
        %v3433 = vpack.c.b16 %v3305, %v3304
        %v3434 = vpack.c.b16 %v3307, %v3306
        %v3435 = vpack.c.b16 %v3309, %v3308
        %v3436 = vpack.c.b16 %v3311, %v3310
        %v3437 = vpack.c.b16 %v3313, %v3312
        %v3438 = vpack.c.b16 %v3315, %v3314
        %v3439 = vpack.c.b16 %v3317, %v3316
        %v3440 = vpack.c.b16 %v3319, %v3318
        %v3441 = vpack.c.b16 %v3321, %v3320
        %v3442 = vpack.c.b16 %v3323, %v3322
        %v3443 = vpack.c.b16 %v3325, %v3324
        %v3444 = vpack.c.b16 %v3327, %v3326
        %v3445 = vpack.c.b16 %v3329, %v3328
        %v3446 = vpack.c.b16 %v3331, %v3330
        %v3447 = vpack.c.b16 %v3333, %v3332
        %v3448 = vpack.c.b16 %v3335, %v3334
        %v3449 = vpack.c.b16 %v3337, %v3336
        %v3450 = vpack.c.b16 %v3339, %v3338
        %v3451 = vpack.c.b16 %v3341, %v3340
        %v3452 = vpack.c.b16 %v3343, %v3342
        %v3453 = vpack.c.b16 %v3345, %v3344
        %v3454 = vpack.c.b16 %v3347, %v3346
        %v3455 = vpack.c.b16 %v3349, %v3348
        %v3456 = vpack.c.b16 %v3351, %v3350
        %v3457 = vpack.c.b16 %v3353, %v3352
        %v3458 = vpack.c.b16 %v3355, %v3354
        %v3459 = vpack.c.b16 %v3357, %v3356
        %v3460 = vpack.c.b16 %v3359, %v3358
        %v3461 = vpack.c.b16 %v3361, %v3360
        %v3462 = vpack.c.b16 %v3363, %v3362
        %v3463 = vpack.c.b16 %v3365, %v3364
        %v3464 = vpack.c.b16 %v3367, %v3366
        %v3465 = vpack.c.b16 %v3369, %v3368
        %v3466 = vpack.c.b16 %v3371, %v3370
        %v3467 = vpack.c.b16 %v3373, %v3372
        %v3468 = vpack.c.b16 %v3375, %v3374
        %v3469 = vpack.c.b16 %v3377, %v3376
        %v3470 = vpack.c.b16 %v3379, %v3378
        %v3471 = vpack.c.b16 %v3381, %v3380
        %v3472 = vpack.c.b16 %v3383, %v3382
        %v3473 = vpack.c.b16 %v3385, %v3384
        %v3474 = vpack.c.b16 %v3387, %v3386
        %v3475 = vpack.c.b16 %v3389, %v3388
        %v3476 = vpack.c.b16 %v3391, %v3390
        %v3477 = vpack.c.b16 %v3393, %v3392
        %v3478 = vpack.c.b16 %v3395, %v3394
        %v3479 = vpack.c.b16 %v3397, %v3396
        %v3480 = vpack.c.b16 %v3399, %v3398
        %v3481 = vpack.c.b16 %v3401, %v3400
        %v3482 = vpack.c.b16 %v3403, %v3402
        %v3483 = vpack.c.b16 %v3405, %v3404
        %v3484 = vpack.c.b16 %v3407, %v3406
        %v3485 = vpack.c.b16 %v3409, %v3408
        %v3486 = vpack.c.b16 %v3411, %v3410
        %v3487 = vpack.c.b16 %v3413, %v3412
        %v3488 = vpack.c.b16 %v3415, %v3414
        %v3489 = vpack.c.b16 %v3417, %v3416
        %3562 = vmatprep.subr.bf16.mxu0 0
        %3563 = vmatpush1.bf16.msra.mxu0 %v3425
        %3564 = vmatprep.subr.bf16.mxu0 0
        %3565 = vmatpush1.bf16.msra.mxu0 %v3424
        %3566 = vmatprep.subr.bf16.mxu0 0
        %3567 = vmatpush1.bf16.msra.mxu0 %v3423
        %3568 = vmatprep.subr.bf16.mxu0 0
        %3569 = vmatpush1.bf16.msra.mxu0 %v3422
        %3570 = vmatprep.subr.bf16.mxu0 0
        %3571 = vmatpush1.bf16.msra.mxu0 %v3421
        %3572 = vmatprep.subr.bf16.mxu0 0
        %3573 = vmatpush1.bf16.msra.mxu0 %v3420
        %3574 = vmatprep.subr.bf16.mxu0 0
        %3575 = vmatpush1.bf16.msra.mxu0 %v3419
        %3576 = vmatprep.subr.bf16.mxu0 0
        %3577 = vmatpush1.bf16.msra.mxu0 %v3418
        %3578 = vmatprep.subr.bf16.mxu0 0
        %3579 = vmatpush2.bf16.msra.mxu0 %v3433
        %3580 = vmatprep.subr.bf16.mxu0 0
        %3581 = vmatpush2.bf16.msra.mxu0 %v3432
        %3582 = vmatprep.subr.bf16.mxu0 0
        %3583 = vmatpush2.bf16.msra.mxu0 %v3431
        %3584 = vmatprep.subr.bf16.mxu0 0
        %3585 = vmatpush2.bf16.msra.mxu0 %v3430
        %3586 = vmatprep.subr.bf16.mxu0 0
        %3587 = vmatpush2.bf16.msra.mxu0 %v3429
        %3588 = vmatprep.subr.bf16.mxu0 0
        %3589 = vmatpush2.bf16.msra.mxu0 %v3428
        %3590 = vmatprep.subr.bf16.mxu0 0
        %3591 = vmatpush2.bf16.msra.mxu0 %v3427
        %3592 = vmatprep.subr.bf16.mxu0 0
        %3593 = vmatpush2.bf16.msra.mxu0 %v3426
        %3594 = vmatprep.mubr.bf16.mxu0 %v3023
        %3595 = vmatmul.mubr.bf16.gmra.mxu0 %v3022
        %v3596 = vpop.f32.mrf.mxu0
        %v3597 = vadd.f32 0.0, %v3596
        %v3598 = vpop.f32.mrf.mxu0
        %v3599 = vpop.f32.mrf.mxu0
        %v3600 = vadd.f32 0.0, %v3599
        %v3601 = vpop.f32.mrf.mxu0
        %3602 = vmatprep.mubr.bf16.mxu0 %v3032
        %3603 = vmatmul.mubr.bf16.gmra.mxu0 %v3031
        %v3604 = vpop.f32.mrf.mxu0
        %v3605 = vadd.f32 0.0, %v3604
        %v3606 = vpop.f32.mrf.mxu0
        %v3607 = vpop.f32.mrf.mxu0
        %v3608 = vadd.f32 0.0, %v3607
        %v3609 = vpop.f32.mrf.mxu0
        %3610 = vmatprep.mubr.bf16.mxu0 %v3041
        %3611 = vmatmul.mubr.bf16.gmra.mxu0 %v3040
        %v3612 = vpop.f32.mrf.mxu0
        %v3613 = vadd.f32 0.0, %v3612
        %v3614 = vpop.f32.mrf.mxu0
        %v3615 = vpop.f32.mrf.mxu0
        %v3616 = vadd.f32 0.0, %v3615
        %v3617 = vpop.f32.mrf.mxu0
        %3618 = vmatprep.mubr.bf16.mxu0 %v3050
        %3619 = vmatmul.mubr.bf16.gmra.mxu0 %v3049
        %v3620 = vpop.f32.mrf.mxu0
        %v3621 = vadd.f32 0.0, %v3620
        %v3622 = vpop.f32.mrf.mxu0
        %v3623 = vpop.f32.mrf.mxu0
        %v3624 = vadd.f32 0.0, %v3623
        %v3625 = vpop.f32.mrf.mxu0
        %3626 = vmatprep.mubr.bf16.mxu0 %v3059
        %3627 = vmatmul.mubr.bf16.gmra.mxu0 %v3058
        %v3628 = vpop.f32.mrf.mxu0
        %v3629 = vadd.f32 0.0, %v3628
        %v3630 = vpop.f32.mrf.mxu0
        %v3631 = vpop.f32.mrf.mxu0
        %v3632 = vadd.f32 0.0, %v3631
        %v3633 = vpop.f32.mrf.mxu0
        %3634 = vmatprep.mubr.bf16.mxu0 %v3068
        %3635 = vmatmul.mubr.bf16.gmra.mxu0 %v3067
        %v3636 = vpop.f32.mrf.mxu0
        %v3637 = vadd.f32 0.0, %v3636
        %v3638 = vpop.f32.mrf.mxu0
        %v3639 = vpop.f32.mrf.mxu0
        %v3640 = vadd.f32 0.0, %v3639
        %v3641 = vpop.f32.mrf.mxu0
        %3642 = vdwg.mxu0
        %3643 = vmatprep.subr.bf16.mxu0 0
        %3644 = vmatpush1.bf16.msra.mxu0 %v3441
        %3645 = vmatprep.subr.bf16.mxu0 0
        %3646 = vmatpush1.bf16.msra.mxu0 %v3440
        %3647 = vmatprep.subr.bf16.mxu0 0
        %3648 = vmatpush1.bf16.msra.mxu0 %v3439
        %3649 = vmatprep.subr.bf16.mxu0 0
        %3650 = vmatpush1.bf16.msra.mxu0 %v3438
        %3651 = vmatprep.subr.bf16.mxu0 0
        %3652 = vmatpush1.bf16.msra.mxu0 %v3437
        %3653 = vmatprep.subr.bf16.mxu0 0
        %3654 = vmatpush1.bf16.msra.mxu0 %v3436
        %3655 = vmatprep.subr.bf16.mxu0 0
        %3656 = vmatpush1.bf16.msra.mxu0 %v3435
        %3657 = vmatprep.subr.bf16.mxu0 0
        %3658 = vmatpush1.bf16.msra.mxu0 %v3434
        %3659 = vmatprep.subr.bf16.mxu0 0
        %3660 = vmatpush2.bf16.msra.mxu0 %v3449
        %3661 = vmatprep.subr.bf16.mxu0 0
        %3662 = vmatpush2.bf16.msra.mxu0 %v3448
        %3663 = vmatprep.subr.bf16.mxu0 0
        %3664 = vmatpush2.bf16.msra.mxu0 %v3447
        %3665 = vmatprep.subr.bf16.mxu0 0
        %3666 = vmatpush2.bf16.msra.mxu0 %v3446
        %3667 = vmatprep.subr.bf16.mxu0 0
        %3668 = vmatpush2.bf16.msra.mxu0 %v3445
        %3669 = vmatprep.subr.bf16.mxu0 0
        %3670 = vmatpush2.bf16.msra.mxu0 %v3444
        %3671 = vmatprep.subr.bf16.mxu0 0
        %3672 = vmatpush2.bf16.msra.mxu0 %v3443
        %3673 = vmatprep.subr.bf16.mxu0 0
        %3674 = vmatpush2.bf16.msra.mxu0 %v3442
        %3675 = vmatprep.mubr.bf16.mxu0 %v3025
        %3676 = vmatmul.mubr.bf16.gmra.mxu0 %v3024
        %v3677 = vpop.f32.mrf.mxu0
        %v3678 = vadd.f32 %v3597, %v3677
        %v3679 = vpop.f32.mrf.mxu0
        %v3680 = vpop.f32.mrf.mxu0
        %v3681 = vadd.f32 %v3600, %v3680
        %v3682 = vpop.f32.mrf.mxu0
        %3683 = vmatprep.mubr.bf16.mxu0 %v3034
        %3684 = vmatmul.mubr.bf16.gmra.mxu0 %v3033
        %v3685 = vpop.f32.mrf.mxu0
        %v3686 = vadd.f32 %v3605, %v3685
        %v3687 = vpop.f32.mrf.mxu0
        %v3688 = vpop.f32.mrf.mxu0
        %v3689 = vadd.f32 %v3608, %v3688
        %v3690 = vpop.f32.mrf.mxu0
        %3691 = vmatprep.mubr.bf16.mxu0 %v3043
        %3692 = vmatmul.mubr.bf16.gmra.mxu0 %v3042
        %v3693 = vpop.f32.mrf.mxu0
        %v3694 = vadd.f32 %v3613, %v3693
        %v3695 = vpop.f32.mrf.mxu0
        %v3696 = vpop.f32.mrf.mxu0
        %v3697 = vadd.f32 %v3616, %v3696
        %v3698 = vpop.f32.mrf.mxu0
        %3699 = vmatprep.mubr.bf16.mxu0 %v3052
        %3700 = vmatmul.mubr.bf16.gmra.mxu0 %v3051
        %v3701 = vpop.f32.mrf.mxu0
        %v3702 = vadd.f32 %v3621, %v3701
        %v3703 = vpop.f32.mrf.mxu0
        %v3704 = vpop.f32.mrf.mxu0
        %v3705 = vadd.f32 %v3624, %v3704
        %v3706 = vpop.f32.mrf.mxu0
        %3707 = vmatprep.mubr.bf16.mxu0 %v3061
        %3708 = vmatmul.mubr.bf16.gmra.mxu0 %v3060
        %v3709 = vpop.f32.mrf.mxu0
        %v3710 = vadd.f32 %v3629, %v3709
        %v3711 = vpop.f32.mrf.mxu0
        %v3712 = vpop.f32.mrf.mxu0
        %v3713 = vadd.f32 %v3632, %v3712
        %v3714 = vpop.f32.mrf.mxu0
        %3715 = vmatprep.mubr.bf16.mxu0 %v3070
        %3716 = vmatmul.mubr.bf16.gmra.mxu0 %v3069
        %v3717 = vpop.f32.mrf.mxu0
        %v3718 = vadd.f32 %v3637, %v3717
        %v3719 = vpop.f32.mrf.mxu0
        %v3720 = vpop.f32.mrf.mxu0
        %v3721 = vadd.f32 %v3640, %v3720
        %v3722 = vpop.f32.mrf.mxu0
        %3723 = vdwg.mxu0
        %3724 = vmatprep.subr.bf16.mxu0 0
        %3725 = vmatpush1.bf16.msra.mxu0 %v3457
        %3726 = vmatprep.subr.bf16.mxu0 0
        %3727 = vmatpush1.bf16.msra.mxu0 %v3456
        %3728 = vmatprep.subr.bf16.mxu0 0
        %3729 = vmatpush1.bf16.msra.mxu0 %v3455
        %3730 = vmatprep.subr.bf16.mxu0 0
        %3731 = vmatpush1.bf16.msra.mxu0 %v3454
        %3732 = vmatprep.subr.bf16.mxu0 0
        %3733 = vmatpush1.bf16.msra.mxu0 %v3453
        %3734 = vmatprep.subr.bf16.mxu0 0
        %3735 = vmatpush1.bf16.msra.mxu0 %v3452
        %3736 = vmatprep.subr.bf16.mxu0 0
        %3737 = vmatpush1.bf16.msra.mxu0 %v3451
        %3738 = vmatprep.subr.bf16.mxu0 0
        %3739 = vmatpush1.bf16.msra.mxu0 %v3450
        %3740 = vmatprep.subr.bf16.mxu0 0
        %3741 = vmatpush2.bf16.msra.mxu0 %v3465
        %3742 = vmatprep.subr.bf16.mxu0 0
        %3743 = vmatpush2.bf16.msra.mxu0 %v3464
        %3744 = vmatprep.subr.bf16.mxu0 0
        %3745 = vmatpush2.bf16.msra.mxu0 %v3463
        %3746 = vmatprep.subr.bf16.mxu0 0
        %3747 = vmatpush2.bf16.msra.mxu0 %v3462
        %3748 = vmatprep.subr.bf16.mxu0 0
        %3749 = vmatpush2.bf16.msra.mxu0 %v3461
        %3750 = vmatprep.subr.bf16.mxu0 0
        %3751 = vmatpush2.bf16.msra.mxu0 %v3460
        %3752 = vmatprep.subr.bf16.mxu0 0
        %3753 = vmatpush2.bf16.msra.mxu0 %v3459
        %3754 = vmatprep.subr.bf16.mxu0 0
        %3755 = vmatpush2.bf16.msra.mxu0 %v3458
        %3756 = vmatprep.mubr.bf16.mxu0 %v3027
        %3757 = vmatmul.mubr.bf16.gmra.mxu0 %v3026
        %v3758 = vpop.f32.mrf.mxu0
        %v3759 = vadd.f32 %v3678, %v3758
        %v3760 = vpop.f32.mrf.mxu0
        %v3761 = vpop.f32.mrf.mxu0
        %v3762 = vadd.f32 %v3681, %v3761
        %v3763 = vpop.f32.mrf.mxu0
        %3764 = vmatprep.mubr.bf16.mxu0 %v3036
        %3765 = vmatmul.mubr.bf16.gmra.mxu0 %v3035
        %v3766 = vpop.f32.mrf.mxu0
        %v3767 = vadd.f32 %v3686, %v3766
        %v3768 = vpop.f32.mrf.mxu0
        %v3769 = vpop.f32.mrf.mxu0
        %v3770 = vadd.f32 %v3689, %v3769
        %v3771 = vpop.f32.mrf.mxu0
        %3772 = vmatprep.mubr.bf16.mxu0 %v3045
        %3773 = vmatmul.mubr.bf16.gmra.mxu0 %v3044
        %v3774 = vpop.f32.mrf.mxu0
        %v3775 = vadd.f32 %v3694, %v3774
        %v3776 = vpop.f32.mrf.mxu0
        %v3777 = vpop.f32.mrf.mxu0
        %v3778 = vadd.f32 %v3697, %v3777
        %v3779 = vpop.f32.mrf.mxu0
        %3780 = vmatprep.mubr.bf16.mxu0 %v3054
        %3781 = vmatmul.mubr.bf16.gmra.mxu0 %v3053
        %v3782 = vpop.f32.mrf.mxu0
        %v3783 = vadd.f32 %v3702, %v3782
        %v3784 = vpop.f32.mrf.mxu0
        %v3785 = vpop.f32.mrf.mxu0
        %v3786 = vadd.f32 %v3705, %v3785
        %v3787 = vpop.f32.mrf.mxu0
        %3788 = vmatprep.mubr.bf16.mxu0 %v3063
        %3789 = vmatmul.mubr.bf16.gmra.mxu0 %v3062
        %v3790 = vpop.f32.mrf.mxu0
        %v3791 = vadd.f32 %v3710, %v3790
        %v3792 = vpop.f32.mrf.mxu0
        %v3793 = vpop.f32.mrf.mxu0
        %v3794 = vadd.f32 %v3713, %v3793
        %v3795 = vpop.f32.mrf.mxu0
        %3796 = vmatprep.mubr.bf16.mxu0 %v3072
        %3797 = vmatmul.mubr.bf16.gmra.mxu0 %v3071
        %v3798 = vpop.f32.mrf.mxu0
        %v3799 = vadd.f32 %v3718, %v3798
        %v3800 = vpop.f32.mrf.mxu0
        %v3801 = vpop.f32.mrf.mxu0
        %v3802 = vadd.f32 %v3721, %v3801
        %v3803 = vpop.f32.mrf.mxu0
        %3804 = vdwg.mxu0
        %3805 = vmatprep.subr.bf16.mxu0 0
        %3806 = vmatpush1.bf16.msra.mxu0 %v3473
        %3807 = vmatprep.subr.bf16.mxu0 0
        %3808 = vmatpush1.bf16.msra.mxu0 %v3472
        %3809 = vmatprep.subr.bf16.mxu0 0
        %3810 = vmatpush1.bf16.msra.mxu0 %v3471
        %3811 = vmatprep.subr.bf16.mxu0 0
        %3812 = vmatpush1.bf16.msra.mxu0 %v3470
        %3813 = vmatprep.subr.bf16.mxu0 0
        %3814 = vmatpush1.bf16.msra.mxu0 %v3469
        %3815 = vmatprep.subr.bf16.mxu0 0
        %3816 = vmatpush1.bf16.msra.mxu0 %v3468
        %3817 = vmatprep.subr.bf16.mxu0 0
        %3818 = vmatpush1.bf16.msra.mxu0 %v3467
        %3819 = vmatprep.subr.bf16.mxu0 0
        %3820 = vmatpush1.bf16.msra.mxu0 %v3466
        %3821 = vmatprep.subr.bf16.mxu0 0
        %3822 = vmatpush2.bf16.msra.mxu0 %v3481
        %3823 = vmatprep.subr.bf16.mxu0 0
        %3824 = vmatpush2.bf16.msra.mxu0 %v3480
        %3825 = vmatprep.subr.bf16.mxu0 0
        %3826 = vmatpush2.bf16.msra.mxu0 %v3479
        %3827 = vmatprep.subr.bf16.mxu0 0
        %3828 = vmatpush2.bf16.msra.mxu0 %v3478
        %3829 = vmatprep.subr.bf16.mxu0 0
        %3830 = vmatpush2.bf16.msra.mxu0 %v3477
        %3831 = vmatprep.subr.bf16.mxu0 0
        %3832 = vmatpush2.bf16.msra.mxu0 %v3476
        %3833 = vmatprep.subr.bf16.mxu0 0
        %3834 = vmatpush2.bf16.msra.mxu0 %v3475
        %3835 = vmatprep.subr.bf16.mxu0 0
        %3836 = vmatpush2.bf16.msra.mxu0 %v3474
        %3837 = vmatprep.mubr.bf16.mxu0 %v3029
        %3838 = vmatmul.mubr.bf16.gmra.mxu0 %v3028
        %v3839 = vpop.f32.mrf.mxu0
        %v3840 = vadd.f32 %v3759, %v3839
        %v3841 = vpop.f32.mrf.mxu0
        %v3842 = vpop.f32.mrf.mxu0
        %v3843 = vadd.f32 %v3762, %v3842
        %v3844 = vpop.f32.mrf.mxu0
        %3845 = vmatprep.mubr.bf16.mxu0 %v3038
        %3846 = vmatmul.mubr.bf16.gmra.mxu0 %v3037
        %v3847 = vpop.f32.mrf.mxu0
        %v3848 = vadd.f32 %v3767, %v3847
        %v3849 = vpop.f32.mrf.mxu0
        %v3850 = vpop.f32.mrf.mxu0
        %v3851 = vadd.f32 %v3770, %v3850
        %v3852 = vpop.f32.mrf.mxu0
        %3853 = vmatprep.mubr.bf16.mxu0 %v3047
        %3854 = vmatmul.mubr.bf16.gmra.mxu0 %v3046
        %v3855 = vpop.f32.mrf.mxu0
        %v3856 = vadd.f32 %v3775, %v3855
        %v3857 = vpop.f32.mrf.mxu0
        %v3858 = vpop.f32.mrf.mxu0
        %v3859 = vadd.f32 %v3778, %v3858
        %v3860 = vpop.f32.mrf.mxu0
        %3861 = vmatprep.mubr.bf16.mxu0 %v3056
        %3862 = vmatmul.mubr.bf16.gmra.mxu0 %v3055
        %v3863 = vpop.f32.mrf.mxu0
        %v3864 = vadd.f32 %v3783, %v3863
        %v3865 = vpop.f32.mrf.mxu0
        %v3866 = vpop.f32.mrf.mxu0
        %v3867 = vadd.f32 %v3786, %v3866
        %v3868 = vpop.f32.mrf.mxu0
        %3869 = vmatprep.mubr.bf16.mxu0 %v3065
        %3870 = vmatmul.mubr.bf16.gmra.mxu0 %v3064
        %v3871 = vpop.f32.mrf.mxu0
        %v3872 = vadd.f32 %v3791, %v3871
        %v3873 = vpop.f32.mrf.mxu0
        %v3874 = vpop.f32.mrf.mxu0
        %v3875 = vadd.f32 %v3794, %v3874
        %v3876 = vpop.f32.mrf.mxu0
        %3877 = vmatprep.mubr.bf16.mxu0 %v3074
        %3878 = vmatmul.mubr.bf16.gmra.mxu0 %v3073
        %v3879 = vpop.f32.mrf.mxu0
        %v3880 = vadd.f32 %v3799, %v3879
        %v3881 = vpop.f32.mrf.mxu0
        %v3882 = vpop.f32.mrf.mxu0
        %v3883 = vadd.f32 %v3802, %v3882
        %v3884 = vpop.f32.mrf.mxu0
        %3885 = vdwg.mxu0
        %3886 = vmatprep.subr.bf16.mxu0 0
        %3887 = vmatpush1.bf16.msra.mxu0 %v3489
        %3888 = vmatprep.subr.bf16.mxu0 0
        %3889 = vmatpush1.bf16.msra.mxu0 %v3488
        %3890 = vmatprep.subr.bf16.mxu0 0
        %3891 = vmatpush1.bf16.msra.mxu0 %v3487
        %3892 = vmatprep.subr.bf16.mxu0 0
        %3893 = vmatpush1.bf16.msra.mxu0 %v3486
        %3894 = vmatprep.subr.bf16.mxu0 0
        %3895 = vmatpush1.bf16.msra.mxu0 %v3485
        %3896 = vmatprep.subr.bf16.mxu0 0
        %3897 = vmatpush1.bf16.msra.mxu0 %v3484
        %3898 = vmatprep.subr.bf16.mxu0 0
        %3899 = vmatpush1.bf16.msra.mxu0 %v3483
        %3900 = vmatprep.subr.bf16.mxu0 0
        %3901 = vmatpush1.bf16.msra.mxu0 %v3482
        %3902 = vmatprep.subr.bf16.mxu0 0
        %3903 = vmatpush2.bf16.msra.mxu0 0
        %3904 = vmatprep.subr.bf16.mxu0 0
        %3905 = vmatpush2.bf16.msra.mxu0 0
        %3906 = vmatprep.subr.bf16.mxu0 0
        %3907 = vmatpush2.bf16.msra.mxu0 0
        %3908 = vmatprep.subr.bf16.mxu0 0
        %3909 = vmatpush2.bf16.msra.mxu0 0
        %3910 = vmatprep.subr.bf16.mxu0 0
        %3911 = vmatpush2.bf16.msra.mxu0 0
        %3912 = vmatprep.subr.bf16.mxu0 0
        %3913 = vmatpush2.bf16.msra.mxu0 0
        %3914 = vmatprep.subr.bf16.mxu0 0
        %3915 = vmatpush2.bf16.msra.mxu0 0
        %3916 = vmatprep.subr.bf16.mxu0 0
        %3917 = vmatpush2.bf16.msra.mxu0 0
        %3918 = vmatprep.mubr.bf16.mxu0 0
        %3919 = vmatmul.mubr.bf16.gmra.mxu0 %v3030
        %v3920 = vpop.f32.mrf.mxu0
        %v3921 = vadd.f32 %v3840, %v3920
        %v3922 = vpop.f32.mrf.mxu0
        %v3923 = vpop.f32.mrf.mxu0
        %v3924 = vadd.f32 %v3843, %v3923
        %v3925 = vpop.f32.mrf.mxu0
        %3926 = vmatprep.mubr.bf16.mxu0 0
        %3927 = vmatmul.mubr.bf16.gmra.mxu0 %v3039
        %v3928 = vpop.f32.mrf.mxu0
        %v3929 = vadd.f32 %v3848, %v3928
        %v3930 = vpop.f32.mrf.mxu0
        %v3931 = vpop.f32.mrf.mxu0
        %v3932 = vadd.f32 %v3851, %v3931
        %v3933 = vpop.f32.mrf.mxu0
        %3934 = vmatprep.mubr.bf16.mxu0 0
        %3935 = vmatmul.mubr.bf16.gmra.mxu0 %v3048
        %v3936 = vpop.f32.mrf.mxu0
        %v3937 = vadd.f32 %v3856, %v3936
        %v3938 = vpop.f32.mrf.mxu0
        %v3939 = vpop.f32.mrf.mxu0
        %v3940 = vadd.f32 %v3859, %v3939
        %v3941 = vpop.f32.mrf.mxu0
        %3942 = vmatprep.mubr.bf16.mxu0 0
        %3943 = vmatmul.mubr.bf16.gmra.mxu0 %v3057
        %v3944 = vpop.f32.mrf.mxu0
        %v3945 = vadd.f32 %v3864, %v3944
        %v3946 = vpop.f32.mrf.mxu0
        %v3947 = vpop.f32.mrf.mxu0
        %v3948 = vadd.f32 %v3867, %v3947
        %v3949 = vpop.f32.mrf.mxu0
        %3950 = vmatprep.mubr.bf16.mxu0 0
        %3951 = vmatmul.mubr.bf16.gmra.mxu0 %v3066
        %v3952 = vpop.f32.mrf.mxu0
        %v3953 = vadd.f32 %v3872, %v3952
        %v3954 = vpop.f32.mrf.mxu0
        %v3955 = vpop.f32.mrf.mxu0
        %v3956 = vadd.f32 %v3875, %v3955
        %v3957 = vpop.f32.mrf.mxu0
        %3958 = vmatprep.mubr.bf16.mxu0 0
        %3959 = vmatmul.mubr.bf16.gmra.mxu0 %v3075
        %v3960 = vpop.f32.mrf.mxu0
        %v3961 = vadd.f32 %v3880, %v3960
        %v3962 = vpop.f32.mrf.mxu0
        %v3963 = vpop.f32.mrf.mxu0
        %v3964 = vadd.f32 %v3883, %v3963
        %v3965 = vpop.f32.mrf.mxu0
        %3966 = vdwg.mxu0
        %v3967 = vld [vmem:[%s3] sm:$0x1]
        %v3969 = vlaneseq
        %v3970 = vshrl.u32 %v3969, 7
        %v3971 = vsub.s32 0, %v3970
        %v3972 = vrot.slane %v3967, %v3971
        %v3974 = vmul.f32 %v3921, %v3972
        %v3975 = vmul.f32 %v3924, %v3972
        %v3976 = vmul.f32 %v3929, %v3972
        %v3977 = vmul.f32 %v3932, %v3972
        %v3978 = vmul.f32 %v3937, %v3972
        %v3979 = vmul.f32 %v3940, %v3972
        %v3980 = vmul.f32 %v3945, %v3972
        %v3981 = vmul.f32 %v3948, %v3972
        %v3982 = vmul.f32 %v3953, %v3972
        %v3983 = vmul.f32 %v3956, %v3972
        %v3984 = vmul.f32 %v3961, %v3972
        %v3985 = vmul.f32 %v3964, %v3972
        %v3986 = vld [vmem:[%s4] sm:$0x1]
        %v3988 = vlaneseq
        %v3989 = vshrl.u32 %v3988, 7
        %v3990 = vsub.s32 0, %v3989
        %v3991 = vrot.slane %v3986, %v3990
        %v3993 = vadd.f32 %v3974, %v3991
        %v3994 = vadd.f32 %v3975, %v3991
        %v3995 = vadd.f32 %v3976, %v3991
        %v3996 = vadd.f32 %v3977, %v3991
        %v3997 = vadd.f32 %v3978, %v3991
        %v3998 = vadd.f32 %v3979, %v3991
        %v3999 = vadd.f32 %v3980, %v3991
        %v4000 = vadd.f32 %v3981, %v3991
        %v4001 = vadd.f32 %v3982, %v3991
        %v4002 = vadd.f32 %v3983, %v3991
        %v4003 = vadd.f32 %v3984, %v3991
        %v4004 = vadd.f32 %v3985, %v3991
        %v4005 = vmax.f32 %v3993, 0.0
        %v4006 = vmax.f32 %v3994, 0.0
        %v4007 = vmax.f32 %v3995, 0.0
        %v4008 = vmax.f32 %v3996, 0.0
        %v4009 = vmax.f32 %v3997, 0.0
        %v4010 = vmax.f32 %v3998, 0.0
        %v4011 = vmax.f32 %v3999, 0.0
        %v4012 = vmax.f32 %v4000, 0.0
        %v4013 = vmax.f32 %v4001, 0.0
        %v4014 = vmax.f32 %v4002, 0.0
        %v4015 = vmax.f32 %v4003, 0.0
        %v4016 = vmax.f32 %v4004, 0.0
        %vm4017 = vcmask 1040384
        %vm4018 = vsmask.f32 256
        %vm4019 = vmand %vm4017, %vm4018
        %v4020 = vld [vmem:[#allocation3] sm:$0x1]
        %v4021 = vsel %vm4019, 0, %v4020
        %4022 = vst [vmem:[#allocation3] sm:$0x1] %v4021
        %v4023 = vld [vmem:[#allocation3 + $0xc] sm:$0x1]
        %v4024 = vsel %vm4019, 0, %v4023
        %4025 = vst [vmem:[#allocation3 + $0xc] sm:$0x1] %v4024
        %v4026 = vld [vmem:[#allocation3 + $0x18] sm:$0x1]
        %v4027 = vsel %vm4019, 0, %v4026
        %4028 = vst [vmem:[#allocation3 + $0x18] sm:$0x1] %v4027
        %v4029 = vld [vmem:[#allocation3 + $0x24] sm:$0x1]
        %v4030 = vsel %vm4019, 0, %v4029
        %4031 = vst [vmem:[#allocation3 + $0x24] sm:$0x1] %v4030
        %v4032 = vld [vmem:[#allocation3 + $0x30] sm:$0x1]
        %v4033 = vsel %vm4019, 0, %v4032
        %4034 = vst [vmem:[#allocation3 + $0x30] sm:$0x1] %v4033
        %v4035 = vld [vmem:[#allocation3 + $0x3c] sm:$0x1]
        %v4036 = vsel %vm4019, 0, %v4035
        %4037 = vst [vmem:[#allocation3 + $0x3c] sm:$0x1] %v4036
        %vm4038 = vsmask.f32 7938
        %vm4039 = vmand %vm4017, %vm4038
        %v4040 = vld [vmem:[#allocation3 + $0x8] sm:$0x1]
        %v4041 = vsel %vm4039, 0, %v4040
        %4042 = vst [vmem:[#allocation3 + $0x8] sm:$0x1] %v4041
        %v4043 = vld [vmem:[#allocation3 + $0x14] sm:$0x1]
        %v4044 = vsel %vm4039, 0, %v4043
        %4045 = vst [vmem:[#allocation3 + $0x14] sm:$0x1] %v4044
        %v4046 = vld [vmem:[#allocation3 + $0x20] sm:$0x1]
        %v4047 = vsel %vm4039, 0, %v4046
        %4048 = vst [vmem:[#allocation3 + $0x20] sm:$0x1] %v4047
        %v4049 = vld [vmem:[#allocation3 + $0x2c] sm:$0x1]
        %v4050 = vsel %vm4039, 0, %v4049
        %4051 = vst [vmem:[#allocation3 + $0x2c] sm:$0x1] %v4050
        %v4052 = vld [vmem:[#allocation3 + $0x38] sm:$0x1]
        %v4053 = vsel %vm4039, 0, %v4052
        %4054 = vst [vmem:[#allocation3 + $0x38] sm:$0x1] %v4053
        %v4055 = vld [vmem:[#allocation3 + $0x44] sm:$0x1]
        %v4056 = vsel %vm4039, 0, %v4055
        %4057 = vst [vmem:[#allocation3 + $0x44] sm:$0x1] %v4056
        %v4058 = vpack.c.bf16 %v4006, %v4005
        %v4059 = vpack.c.bf16 %v4008, %v4007
        %v4060 = vpack.c.bf16 %v4010, %v4009
        %v4061 = vpack.c.bf16 %v4012, %v4011
        %v4062 = vpack.c.bf16 %v4014, %v4013
        %v4063 = vpack.c.bf16 %v4016, %v4015
        %v4070 = vunpack.c.l.b16 %v4058
        %v4071 = vunpack.c.h.b16 %v4058
        %v4072 = vunpack.c.l.b16 %v4059
        %v4073 = vunpack.c.h.b16 %v4059
        %v4074 = vunpack.c.l.b16 %v4060
        %v4075 = vunpack.c.h.b16 %v4060
        %v4076 = vunpack.c.l.b16 %v4061
        %v4077 = vunpack.c.h.b16 %v4061
        %v4078 = vunpack.c.l.b16 %v4062
        %v4079 = vunpack.c.h.b16 %v4062
        %v4080 = vunpack.c.l.b16 %v4063
        %v4081 = vunpack.c.h.b16 %v4063
        %v4082 = vpack.c.b16 %v4070, %v4070
        %v4083 = vpack.c.b16 %v4071, %v4071
        %v4084 = vpack.c.b16 %v4072, %v4072
        %v4085 = vpack.c.b16 %v4073, %v4073
        %v4086 = vpack.c.b16 %v4074, %v4074
        %v4087 = vpack.c.b16 %v4075, %v4075
        %v4088 = vpack.c.b16 %v4076, %v4076
        %v4089 = vpack.c.b16 %v4077, %v4077
        %v4090 = vpack.c.b16 %v4078, %v4078
        %v4091 = vpack.c.b16 %v4079, %v4079
        %v4092 = vpack.c.b16 %v4080, %v4080
        %v4093 = vpack.c.b16 %v4081, %v4081
        %vm4094 = vsmask.f32 4368
        %vm4095 = vmor %vm4018, %vm4094
        %v4097 = vshrl.u32 %v4082, 16
        %v4099 = vrot.slane %v4097, 7
        %v4100 = vshll.u32 %v4082, 16
        %v4102 = vor.u32 %v4099, %v4100
        %v4103 = vrot.slane %v4099, 4
        %v4105 = vshrl.u32 %v4083, 16
        %v4107 = vrot.slane %v4105, 7
        %v4108 = vshll.u32 %v4083, 16
        %v4110 = vor.u32 %v4107, %v4108
        %v4111 = vsel %vm4095, %v4103, %v4110
        %v4112 = vrot.slane %v4107, 4
        %v4114 = vshrl.u32 %v4084, 16
        %v4116 = vrot.slane %v4114, 7
        %v4117 = vshll.u32 %v4084, 16
        %v4119 = vor.u32 %v4116, %v4117
        %v4120 = vrot.slane %v4116, 4
        %v4122 = vshrl.u32 %v4085, 16
        %v4124 = vrot.slane %v4122, 7
        %v4125 = vshll.u32 %v4085, 16
        %v4127 = vor.u32 %v4124, %v4125
        %v4128 = vsel %vm4095, %v4120, %v4127
        %v4129 = vrot.slane %v4124, 4
        %v4131 = vshrl.u32 %v4086, 16
        %v4133 = vrot.slane %v4131, 7
        %v4134 = vshll.u32 %v4086, 16
        %v4136 = vor.u32 %v4133, %v4134
        %v4137 = vrot.slane %v4133, 4
        %v4139 = vshrl.u32 %v4087, 16
        %v4141 = vrot.slane %v4139, 7
        %v4142 = vshll.u32 %v4087, 16
        %v4144 = vor.u32 %v4141, %v4142
        %v4145 = vsel %vm4095, %v4137, %v4144
        %v4146 = vrot.slane %v4141, 4
        %v4148 = vshrl.u32 %v4088, 16
        %v4150 = vrot.slane %v4148, 7
        %v4151 = vshll.u32 %v4088, 16
        %v4153 = vor.u32 %v4150, %v4151
        %v4154 = vrot.slane %v4150, 4
        %v4156 = vshrl.u32 %v4089, 16
        %v4158 = vrot.slane %v4156, 7
        %v4159 = vshll.u32 %v4089, 16
        %v4161 = vor.u32 %v4158, %v4159
        %v4162 = vsel %vm4095, %v4154, %v4161
        %v4163 = vrot.slane %v4158, 4
        %v4165 = vshrl.u32 %v4090, 16
        %v4167 = vrot.slane %v4165, 7
        %v4168 = vshll.u32 %v4090, 16
        %v4170 = vor.u32 %v4167, %v4168
        %v4171 = vrot.slane %v4167, 4
        %v4173 = vshrl.u32 %v4091, 16
        %v4175 = vrot.slane %v4173, 7
        %v4176 = vshll.u32 %v4091, 16
        %v4178 = vor.u32 %v4175, %v4176
        %v4179 = vsel %vm4095, %v4171, %v4178
        %v4180 = vrot.slane %v4175, 4
        %v4182 = vshrl.u32 %v4092, 16
        %v4184 = vrot.slane %v4182, 7
        %v4185 = vshll.u32 %v4092, 16
        %v4187 = vor.u32 %v4184, %v4185
        %v4188 = vrot.slane %v4184, 4
        %v4190 = vshrl.u32 %v4093, 16
        %v4192 = vrot.slane %v4190, 7
        %v4193 = vshll.u32 %v4093, 16
        %v4195 = vor.u32 %v4192, %v4193
        %v4196 = vsel %vm4095, %v4188, %v4195
        %v4197 = vrot.slane %v4192, 4
        %vm4216 = vcmask 1043456
        %vm4217 = vmand %vm4216, %vm4038
        %v4218 = vld [vmem:[#allocation3] sm:$0xf]
        %v4219 = vsel %vm4217, %v4102, %v4218
        %4220 = vst [vmem:[#allocation3] sm:$0xf] %v4219
        %4221 = vst [vmem:[#allocation3 + $0x4] sm:$0xf] %v4111
        %v4222 = vld [vmem:[#allocation3 + $0x8] sm:$0x1]
        %v4223 = vsel %vm4019, %v4112, %v4222
        %4224 = vst [vmem:[#allocation3 + $0x8] sm:$0x1] %v4223
        %v4225 = vld [vmem:[#allocation3 + $0xc] sm:$0xf]
        %v4226 = vsel %vm4217, %v4119, %v4225
        %4227 = vst [vmem:[#allocation3 + $0xc] sm:$0xf] %v4226
        %4228 = vst [vmem:[#allocation3 + $0x10] sm:$0xf] %v4128
        %v4229 = vld [vmem:[#allocation3 + $0x14] sm:$0x1]
        %v4230 = vsel %vm4019, %v4129, %v4229
        %4231 = vst [vmem:[#allocation3 + $0x14] sm:$0x1] %v4230
        %v4232 = vld [vmem:[#allocation3 + $0x18] sm:$0xf]
        %v4233 = vsel %vm4217, %v4136, %v4232
        %4234 = vst [vmem:[#allocation3 + $0x18] sm:$0xf] %v4233
        %4235 = vst [vmem:[#allocation3 + $0x1c] sm:$0xf] %v4145
        %v4236 = vld [vmem:[#allocation3 + $0x20] sm:$0x1]
        %v4237 = vsel %vm4019, %v4146, %v4236
        %4238 = vst [vmem:[#allocation3 + $0x20] sm:$0x1] %v4237
        %v4239 = vld [vmem:[#allocation3 + $0x24] sm:$0xf]
        %v4240 = vsel %vm4217, %v4153, %v4239
        %4241 = vst [vmem:[#allocation3 + $0x24] sm:$0xf] %v4240
        %4242 = vst [vmem:[#allocation3 + $0x28] sm:$0xf] %v4162
        %v4243 = vld [vmem:[#allocation3 + $0x2c] sm:$0x1]
        %v4244 = vsel %vm4019, %v4163, %v4243
        %4245 = vst [vmem:[#allocation3 + $0x2c] sm:$0x1] %v4244
        %v4246 = vld [vmem:[#allocation3 + $0x30] sm:$0xf]
        %v4247 = vsel %vm4217, %v4170, %v4246
        %4248 = vst [vmem:[#allocation3 + $0x30] sm:$0xf] %v4247
        %4249 = vst [vmem:[#allocation3 + $0x34] sm:$0xf] %v4179
        %v4250 = vld [vmem:[#allocation3 + $0x38] sm:$0x1]
        %v4251 = vsel %vm4019, %v4180, %v4250
        %4252 = vst [vmem:[#allocation3 + $0x38] sm:$0x1] %v4251
        %v4253 = vld [vmem:[#allocation3 + $0x3c] sm:$0xf]
        %v4254 = vsel %vm4217, %v4187, %v4253
        %4255 = vst [vmem:[#allocation3 + $0x3c] sm:$0xf] %v4254
        %4256 = vst [vmem:[#allocation3 + $0x40] sm:$0xf] %v4196
        %v4257 = vld [vmem:[#allocation3 + $0x44] sm:$0x1]
        %v4258 = vsel %vm4019, %v4197, %v4257
        %4259 = vst [vmem:[#allocation3 + $0x44] sm:$0x1] %v4258
        %p4260 = scmp.eq.s32.totalorder %s28, 0
        // Predicated region
        $region57: #{tpu_custom_call.1} parent=51 // pred_check
          %p4261 = pneg %p4260
        $region58: #{tpu_custom_call.1} parent=51 // pred_check_branch
          %4263 = sbr.rel (%p4261) target = $region60
        $region59: #{tpu_custom_call.1} parent=51 // pred_region
          %4264 = vst [vmem:[#allocation3] sm:$0xf] 0
          %4265 = vst [vmem:[#allocation3 + $0x4] sm:$0xf] 0
          %4266 = vst [vmem:[#allocation3 + $0x8] sm:$0x1] 0
        $region60: #{tpu_custom_call.1} parent=51 // pred_fallthru
          _
        %p4267 = scmp.eq.s32.totalorder %s28, 3
        // Predicated region
        $region61: #{tpu_custom_call.1} parent=51 // pred_check
          %p4268 = pneg %p4267
        $region62: #{tpu_custom_call.1} parent=51 // pred_check_branch
          %4270 = sbr.rel (%p4268) target = $region64
        $region63: #{tpu_custom_call.1} parent=51 // pred_region
          %s4271 = scalar_lea.vmem [#allocation3], 60
          %4272 = vst [vmem:[%s4271] sm:$0xf] 0
          %4273 = vst [vmem:[%s4271 + $0x4] sm:$0xf] 0
          %4274 = vst [vmem:[%s4271 + $0x8] sm:$0x1] 0
        $region64: #{tpu_custom_call.1} parent=51 // pred_fallthru
          _
        %v4275 = vld [vmem:[#allocation3] sm:$0xf]
        %v4276 = vld [vmem:[#allocation3 + $0x4] sm:$0xf]
        %v4277 = vld [vmem:[#allocation3 + $0xc] sm:$0xf]
        %v4278 = vld [vmem:[#allocation3 + $0x10] sm:$0xf]
        %v4279 = vld [vmem:[#allocation3 + $0x18] sm:$0xf]
        %v4280 = vld [vmem:[#allocation3 + $0x1c] sm:$0xf]
        %v4281 = vld [vmem:[#allocation3 + $0x24] sm:$0xf]
        %v4282 = vld [vmem:[#allocation3 + $0x28] sm:$0xf]
        %4283 = vst [vmem:[#allocation4] sm:$0xf] %v4275
        %4284 = vst [vmem:[#allocation4 + $0x24] sm:$0xf] %v4276
        %4285 = vst [vmem:[#allocation4 + $0x48] sm:$0xf] %v4277
        %4286 = vst [vmem:[#allocation4 + $0x6c] sm:$0xf] %v4278
        %4287 = vst [vmem:[#allocation4 + $0x90] sm:$0xf] %v4279
        %4288 = vst [vmem:[#allocation4 + $0xb4] sm:$0xf] %v4280
        %4289 = vst [vmem:[#allocation4 + $0xd8] sm:$0xf] %v4281
        %4290 = vst [vmem:[#allocation4 + $0xfc] sm:$0xf] %v4282
        %v4291 = vld [vmem:[#allocation3] sm:$0xf]
        %v4292 = vld [vmem:[#allocation3 + $0x4] sm:$0xf]
        %v4293 = vld [vmem:[#allocation3 + $0x8] sm:$0x1]
        %v4294 = vld [vmem:[#allocation3 + $0xc] sm:$0xf]
        %v4295 = vld [vmem:[#allocation3 + $0x10] sm:$0xf]
        %v4296 = vld [vmem:[#allocation3 + $0x14] sm:$0x1]
        %v4297 = vld [vmem:[#allocation3 + $0x18] sm:$0xf]
        %v4298 = vld [vmem:[#allocation3 + $0x1c] sm:$0xf]
        %v4299 = vld [vmem:[#allocation3 + $0x20] sm:$0x1]
        %v4300 = vld [vmem:[#allocation3 + $0x24] sm:$0xf]
        %v4301 = vld [vmem:[#allocation3 + $0x28] sm:$0xf]
        %v4302 = vld [vmem:[#allocation3 + $0x2c] sm:$0x1]
        %v4304 = vshrl.u32 %v4291, 16
        %v4306 = vrot.slane %v4304, 4
        %v4307 = vshll.u32 %v4291, 16
        %v4309 = vrot.slane %v4307, 5
        %v4310 = vor.u32 %v4306, %v4309
        %v4311 = vrot.slane %v4310, 4
        %v4313 = vshll.u32 %v4292, 16
        %v4315 = vrot.slane %v4313, 5
        %v4316 = vsel %vm588, %v4311, %v4315
        %v4317 = vshrl.u32 %v4292, 16
        %v4319 = vrot.slane %v4317, 4
        %v4320 = vor.u32 %v4319, %v4315
        %v4321 = vrot.slane %v4320, 4
        %v4323 = vshll.u32 %v4293, 16
        %v4325 = vrot.slane %v4323, 5
        %v4326 = vsel %vm588, %v4321, %v4325
        %v4328 = vshrl.u32 %v4294, 16
        %v4330 = vrot.slane %v4328, 4
        %v4331 = vshll.u32 %v4294, 16
        %v4333 = vrot.slane %v4331, 5
        %v4334 = vor.u32 %v4330, %v4333
        %v4335 = vrot.slane %v4334, 4
        %v4337 = vshll.u32 %v4295, 16
        %v4339 = vrot.slane %v4337, 5
        %v4340 = vsel %vm588, %v4335, %v4339
        %v4341 = vshrl.u32 %v4295, 16
        %v4343 = vrot.slane %v4341, 4
        %v4344 = vor.u32 %v4343, %v4339
        %v4345 = vrot.slane %v4344, 4
        %v4347 = vshll.u32 %v4296, 16
        %v4349 = vrot.slane %v4347, 5
        %v4350 = vsel %vm588, %v4345, %v4349
        %v4352 = vshrl.u32 %v4297, 16
        %v4354 = vrot.slane %v4352, 4
        %v4355 = vshll.u32 %v4297, 16
        %v4357 = vrot.slane %v4355, 5
        %v4358 = vor.u32 %v4354, %v4357
        %v4359 = vrot.slane %v4358, 4
        %v4361 = vshll.u32 %v4298, 16
        %v4363 = vrot.slane %v4361, 5
        %v4364 = vsel %vm588, %v4359, %v4363
        %v4365 = vshrl.u32 %v4298, 16
        %v4367 = vrot.slane %v4365, 4
        %v4368 = vor.u32 %v4367, %v4363
        %v4369 = vrot.slane %v4368, 4
        %v4371 = vshll.u32 %v4299, 16
        %v4373 = vrot.slane %v4371, 5
        %v4374 = vsel %vm588, %v4369, %v4373
        %v4376 = vshrl.u32 %v4300, 16
        %v4378 = vrot.slane %v4376, 4
        %v4379 = vshll.u32 %v4300, 16
        %v4381 = vrot.slane %v4379, 5
        %v4382 = vor.u32 %v4378, %v4381
        %v4383 = vrot.slane %v4382, 4
        %v4385 = vshll.u32 %v4301, 16
        %v4387 = vrot.slane %v4385, 5
        %v4388 = vsel %vm588, %v4383, %v4387
        %v4389 = vshrl.u32 %v4301, 16
        %v4391 = vrot.slane %v4389, 4
        %v4392 = vor.u32 %v4391, %v4387
        %v4393 = vrot.slane %v4392, 4
        %v4395 = vshll.u32 %v4302, 16
        %v4397 = vrot.slane %v4395, 5
        %v4398 = vsel %vm588, %v4393, %v4397
        %4407 = vst [vmem:[#allocation4 + $0x4] sm:$0xf] %v4316
        %4408 = vst [vmem:[#allocation4 + $0x28] sm:$0xf] %v4326
        %4409 = vst [vmem:[#allocation4 + $0x4c] sm:$0xf] %v4340
        %4410 = vst [vmem:[#allocation4 + $0x70] sm:$0xf] %v4350
        %4411 = vst [vmem:[#allocation4 + $0x94] sm:$0xf] %v4364
        %4412 = vst [vmem:[#allocation4 + $0xb8] sm:$0xf] %v4374
        %4413 = vst [vmem:[#allocation4 + $0xdc] sm:$0xf] %v4388
        %4414 = vst [vmem:[#allocation4 + $0x100] sm:$0xf] %v4398
        %v4415 = vld [vmem:[#allocation3] sm:$0xe]
        %v4416 = vld [vmem:[#allocation3 + $0x4] sm:$0xf]
        %v4417 = vld [vmem:[#allocation3 + $0x8] sm:$0x1]
        %v4418 = vld [vmem:[#allocation3 + $0xc] sm:$0xe]
        %v4419 = vld [vmem:[#allocation3 + $0x10] sm:$0xf]
        %v4420 = vld [vmem:[#allocation3 + $0x14] sm:$0x1]
        %v4421 = vld [vmem:[#allocation3 + $0x18] sm:$0xe]
        %v4422 = vld [vmem:[#allocation3 + $0x1c] sm:$0xf]
        %v4423 = vld [vmem:[#allocation3 + $0x20] sm:$0x1]
        %v4424 = vld [vmem:[#allocation3 + $0x24] sm:$0xe]
        %v4425 = vld [vmem:[#allocation3 + $0x28] sm:$0xf]
        %v4426 = vld [vmem:[#allocation3 + $0x2c] sm:$0x1]
        %v4439 = vrot.slane %v4415, 5
        %v4440 = vrot.slane %v4439, 4
        %v4441 = vrot.slane %v4416, 5
        %v4442 = vsel %vm1005, %v4440, %v4441
        %v4443 = vrot.slane %v4441, 4
        %v4444 = vrot.slane %v4417, 5
        %v4445 = vsel %vm1005, %v4443, %v4444
        %v4446 = vrot.slane %v4418, 5
        %v4447 = vrot.slane %v4446, 4
        %v4448 = vrot.slane %v4419, 5
        %v4449 = vsel %vm1005, %v4447, %v4448
        %v4450 = vrot.slane %v4448, 4
        %v4451 = vrot.slane %v4420, 5
        %v4452 = vsel %vm1005, %v4450, %v4451
        %v4453 = vrot.slane %v4421, 5
        %v4454 = vrot.slane %v4453, 4
        %v4455 = vrot.slane %v4422, 5
        %v4456 = vsel %vm1005, %v4454, %v4455
        %v4457 = vrot.slane %v4455, 4
        %v4458 = vrot.slane %v4423, 5
        %v4459 = vsel %vm1005, %v4457, %v4458
        %v4460 = vrot.slane %v4424, 5
        %v4461 = vrot.slane %v4460, 4
        %v4462 = vrot.slane %v4425, 5
        %v4463 = vsel %vm1005, %v4461, %v4462
        %v4464 = vrot.slane %v4462, 4
        %v4465 = vrot.slane %v4426, 5
        %v4466 = vsel %vm1005, %v4464, %v4465
        %4475 = vst [vmem:[#allocation4 + $0x8] sm:$0xf] %v4442
        %4476 = vst [vmem:[#allocation4 + $0x2c] sm:$0xf] %v4445
        %4477 = vst [vmem:[#allocation4 + $0x50] sm:$0xf] %v4449
        %4478 = vst [vmem:[#allocation4 + $0x74] sm:$0xf] %v4452
        %4479 = vst [vmem:[#allocation4 + $0x98] sm:$0xf] %v4456
        %4480 = vst [vmem:[#allocation4 + $0xbc] sm:$0xf] %v4459
        %4481 = vst [vmem:[#allocation4 + $0xe0] sm:$0xf] %v4463
        %4482 = vst [vmem:[#allocation4 + $0x104] sm:$0xf] %v4466
        %s4483 = scalar_lea.vmem [#allocation3], 12
        %v4484 = vld [vmem:[%s4483] sm:$0xf]
        %v4485 = vld [vmem:[%s4483 + $0x4] sm:$0xf]
        %v4486 = vld [vmem:[%s4483 + $0xc] sm:$0xf]
        %v4487 = vld [vmem:[%s4483 + $0x10] sm:$0xf]
        %v4488 = vld [vmem:[%s4483 + $0x18] sm:$0xf]
        %v4489 = vld [vmem:[%s4483 + $0x1c] sm:$0xf]
        %v4490 = vld [vmem:[%s4483 + $0x24] sm:$0xf]
        %v4491 = vld [vmem:[%s4483 + $0x28] sm:$0xf]
        %4492 = vst [vmem:[#allocation4 + $0xc] sm:$0xf] %v4484
        %4493 = vst [vmem:[#allocation4 + $0x30] sm:$0xf] %v4485
        %4494 = vst [vmem:[#allocation4 + $0x54] sm:$0xf] %v4486
        %4495 = vst [vmem:[#allocation4 + $0x78] sm:$0xf] %v4487
        %4496 = vst [vmem:[#allocation4 + $0x9c] sm:$0xf] %v4488
        %4497 = vst [vmem:[#allocation4 + $0xc0] sm:$0xf] %v4489
        %4498 = vst [vmem:[#allocation4 + $0xe4] sm:$0xf] %v4490
        %4499 = vst [vmem:[#allocation4 + $0x108] sm:$0xf] %v4491
        %v4500 = vld [vmem:[%s4483] sm:$0xf]
        %v4501 = vld [vmem:[%s4483 + $0x4] sm:$0xf]
        %v4502 = vld [vmem:[%s4483 + $0x8] sm:$0x1]
        %v4503 = vld [vmem:[%s4483 + $0xc] sm:$0xf]
        %v4504 = vld [vmem:[%s4483 + $0x10] sm:$0xf]
        %v4505 = vld [vmem:[%s4483 + $0x14] sm:$0x1]
        %v4506 = vld [vmem:[%s4483 + $0x18] sm:$0xf]
        %v4507 = vld [vmem:[%s4483 + $0x1c] sm:$0xf]
        %v4508 = vld [vmem:[%s4483 + $0x20] sm:$0x1]
        %v4509 = vld [vmem:[%s4483 + $0x24] sm:$0xf]
        %v4510 = vld [vmem:[%s4483 + $0x28] sm:$0xf]
        %v4511 = vld [vmem:[%s4483 + $0x2c] sm:$0x1]
        %v4513 = vshrl.u32 %v4500, 16
        %v4515 = vrot.slane %v4513, 4
        %v4516 = vshll.u32 %v4500, 16
        %v4518 = vrot.slane %v4516, 5
        %v4519 = vor.u32 %v4515, %v4518
        %v4520 = vrot.slane %v4519, 4
        %v4522 = vshll.u32 %v4501, 16
        %v4524 = vrot.slane %v4522, 5
        %v4525 = vsel %vm588, %v4520, %v4524
        %v4526 = vshrl.u32 %v4501, 16
        %v4528 = vrot.slane %v4526, 4
        %v4529 = vor.u32 %v4528, %v4524
        %v4530 = vrot.slane %v4529, 4
        %v4532 = vshll.u32 %v4502, 16
        %v4534 = vrot.slane %v4532, 5
        %v4535 = vsel %vm588, %v4530, %v4534
        %v4537 = vshrl.u32 %v4503, 16
        %v4539 = vrot.slane %v4537, 4
        %v4540 = vshll.u32 %v4503, 16
        %v4542 = vrot.slane %v4540, 5
        %v4543 = vor.u32 %v4539, %v4542
        %v4544 = vrot.slane %v4543, 4
        %v4546 = vshll.u32 %v4504, 16
        %v4548 = vrot.slane %v4546, 5
        %v4549 = vsel %vm588, %v4544, %v4548
        %v4550 = vshrl.u32 %v4504, 16
        %v4552 = vrot.slane %v4550, 4
        %v4553 = vor.u32 %v4552, %v4548
        %v4554 = vrot.slane %v4553, 4
        %v4556 = vshll.u32 %v4505, 16
        %v4558 = vrot.slane %v4556, 5
        %v4559 = vsel %vm588, %v4554, %v4558
        %v4561 = vshrl.u32 %v4506, 16
        %v4563 = vrot.slane %v4561, 4
        %v4564 = vshll.u32 %v4506, 16
        %v4566 = vrot.slane %v4564, 5
        %v4567 = vor.u32 %v4563, %v4566
        %v4568 = vrot.slane %v4567, 4
        %v4570 = vshll.u32 %v4507, 16
        %v4572 = vrot.slane %v4570, 5
        %v4573 = vsel %vm588, %v4568, %v4572
        %v4574 = vshrl.u32 %v4507, 16
        %v4576 = vrot.slane %v4574, 4
        %v4577 = vor.u32 %v4576, %v4572
        %v4578 = vrot.slane %v4577, 4
        %v4580 = vshll.u32 %v4508, 16
        %v4582 = vrot.slane %v4580, 5
        %v4583 = vsel %vm588, %v4578, %v4582
        %v4585 = vshrl.u32 %v4509, 16
        %v4587 = vrot.slane %v4585, 4
        %v4588 = vshll.u32 %v4509, 16
        %v4590 = vrot.slane %v4588, 5
        %v4591 = vor.u32 %v4587, %v4590
        %v4592 = vrot.slane %v4591, 4
        %v4594 = vshll.u32 %v4510, 16
        %v4596 = vrot.slane %v4594, 5
        %v4597 = vsel %vm588, %v4592, %v4596
        %v4598 = vshrl.u32 %v4510, 16
        %v4600 = vrot.slane %v4598, 4
        %v4601 = vor.u32 %v4600, %v4596
        %v4602 = vrot.slane %v4601, 4
        %v4604 = vshll.u32 %v4511, 16
        %v4606 = vrot.slane %v4604, 5
        %v4607 = vsel %vm588, %v4602, %v4606
        %4616 = vst [vmem:[#allocation4 + $0x10] sm:$0xf] %v4525
        %4617 = vst [vmem:[#allocation4 + $0x34] sm:$0xf] %v4535
        %4618 = vst [vmem:[#allocation4 + $0x58] sm:$0xf] %v4549
        %4619 = vst [vmem:[#allocation4 + $0x7c] sm:$0xf] %v4559
        %4620 = vst [vmem:[#allocation4 + $0xa0] sm:$0xf] %v4573
        %4621 = vst [vmem:[#allocation4 + $0xc4] sm:$0xf] %v4583
        %4622 = vst [vmem:[#allocation4 + $0xe8] sm:$0xf] %v4597
        %4623 = vst [vmem:[#allocation4 + $0x10c] sm:$0xf] %v4607
        %v4624 = vld [vmem:[%s4483] sm:$0xe]
        %v4625 = vld [vmem:[%s4483 + $0x4] sm:$0xf]
        %v4626 = vld [vmem:[%s4483 + $0x8] sm:$0x1]
        %v4627 = vld [vmem:[%s4483 + $0xc] sm:$0xe]
        %v4628 = vld [vmem:[%s4483 + $0x10] sm:$0xf]
        %v4629 = vld [vmem:[%s4483 + $0x14] sm:$0x1]
        %v4630 = vld [vmem:[%s4483 + $0x18] sm:$0xe]
        %v4631 = vld [vmem:[%s4483 + $0x1c] sm:$0xf]
        %v4632 = vld [vmem:[%s4483 + $0x20] sm:$0x1]
        %v4633 = vld [vmem:[%s4483 + $0x24] sm:$0xe]
        %v4634 = vld [vmem:[%s4483 + $0x28] sm:$0xf]
        %v4635 = vld [vmem:[%s4483 + $0x2c] sm:$0x1]
        %v4648 = vrot.slane %v4624, 5
        %v4649 = vrot.slane %v4648, 4
        %v4650 = vrot.slane %v4625, 5
        %v4651 = vsel %vm1005, %v4649, %v4650
        %v4652 = vrot.slane %v4650, 4
        %v4653 = vrot.slane %v4626, 5
        %v4654 = vsel %vm1005, %v4652, %v4653
        %v4655 = vrot.slane %v4627, 5
        %v4656 = vrot.slane %v4655, 4
        %v4657 = vrot.slane %v4628, 5
        %v4658 = vsel %vm1005, %v4656, %v4657
        %v4659 = vrot.slane %v4657, 4
        %v4660 = vrot.slane %v4629, 5
        %v4661 = vsel %vm1005, %v4659, %v4660
        %v4662 = vrot.slane %v4630, 5
        %v4663 = vrot.slane %v4662, 4
        %v4664 = vrot.slane %v4631, 5
        %v4665 = vsel %vm1005, %v4663, %v4664
        %v4666 = vrot.slane %v4664, 4
        %v4667 = vrot.slane %v4632, 5
        %v4668 = vsel %vm1005, %v4666, %v4667
        %v4669 = vrot.slane %v4633, 5
        %v4670 = vrot.slane %v4669, 4
        %v4671 = vrot.slane %v4634, 5
        %v4672 = vsel %vm1005, %v4670, %v4671
        %v4673 = vrot.slane %v4671, 4
        %v4674 = vrot.slane %v4635, 5
        %v4675 = vsel %vm1005, %v4673, %v4674
        %4684 = vst [vmem:[#allocation4 + $0x14] sm:$0xf] %v4651
        %4685 = vst [vmem:[#allocation4 + $0x38] sm:$0xf] %v4654
        %4686 = vst [vmem:[#allocation4 + $0x5c] sm:$0xf] %v4658
        %4687 = vst [vmem:[#allocation4 + $0x80] sm:$0xf] %v4661
        %4688 = vst [vmem:[#allocation4 + $0xa4] sm:$0xf] %v4665
        %4689 = vst [vmem:[#allocation4 + $0xc8] sm:$0xf] %v4668
        %4690 = vst [vmem:[#allocation4 + $0xec] sm:$0xf] %v4672
        %4691 = vst [vmem:[#allocation4 + $0x110] sm:$0xf] %v4675
        %s4692 = scalar_lea.vmem [#allocation3], 24
        %v4693 = vld [vmem:[%s4692] sm:$0xf]
        %v4694 = vld [vmem:[%s4692 + $0x4] sm:$0xf]
        %v4695 = vld [vmem:[%s4692 + $0xc] sm:$0xf]
        %v4696 = vld [vmem:[%s4692 + $0x10] sm:$0xf]
        %v4697 = vld [vmem:[%s4692 + $0x18] sm:$0xf]
        %v4698 = vld [vmem:[%s4692 + $0x1c] sm:$0xf]
        %v4699 = vld [vmem:[%s4692 + $0x24] sm:$0xf]
        %v4700 = vld [vmem:[%s4692 + $0x28] sm:$0xf]
        %4701 = vst [vmem:[#allocation4 + $0x18] sm:$0xf] %v4693
        %4702 = vst [vmem:[#allocation4 + $0x3c] sm:$0xf] %v4694
        %4703 = vst [vmem:[#allocation4 + $0x60] sm:$0xf] %v4695
        %4704 = vst [vmem:[#allocation4 + $0x84] sm:$0xf] %v4696
        %4705 = vst [vmem:[#allocation4 + $0xa8] sm:$0xf] %v4697
        %4706 = vst [vmem:[#allocation4 + $0xcc] sm:$0xf] %v4698
        %4707 = vst [vmem:[#allocation4 + $0xf0] sm:$0xf] %v4699
        %4708 = vst [vmem:[#allocation4 + $0x114] sm:$0xf] %v4700
        %v4709 = vld [vmem:[%s4692] sm:$0xf]
        %v4710 = vld [vmem:[%s4692 + $0x4] sm:$0xf]
        %v4711 = vld [vmem:[%s4692 + $0x8] sm:$0x1]
        %v4712 = vld [vmem:[%s4692 + $0xc] sm:$0xf]
        %v4713 = vld [vmem:[%s4692 + $0x10] sm:$0xf]
        %v4714 = vld [vmem:[%s4692 + $0x14] sm:$0x1]
        %v4715 = vld [vmem:[%s4692 + $0x18] sm:$0xf]
        %v4716 = vld [vmem:[%s4692 + $0x1c] sm:$0xf]
        %v4717 = vld [vmem:[%s4692 + $0x20] sm:$0x1]
        %v4718 = vld [vmem:[%s4692 + $0x24] sm:$0xf]
        %v4719 = vld [vmem:[%s4692 + $0x28] sm:$0xf]
        %v4720 = vld [vmem:[%s4692 + $0x2c] sm:$0x1]
        %v4722 = vshrl.u32 %v4709, 16
        %v4724 = vrot.slane %v4722, 4
        %v4725 = vshll.u32 %v4709, 16
        %v4727 = vrot.slane %v4725, 5
        %v4728 = vor.u32 %v4724, %v4727
        %v4729 = vrot.slane %v4728, 4
        %v4731 = vshll.u32 %v4710, 16
        %v4733 = vrot.slane %v4731, 5
        %v4734 = vsel %vm588, %v4729, %v4733
        %v4735 = vshrl.u32 %v4710, 16
        %v4737 = vrot.slane %v4735, 4
        %v4738 = vor.u32 %v4737, %v4733
        %v4739 = vrot.slane %v4738, 4
        %v4741 = vshll.u32 %v4711, 16
        %v4743 = vrot.slane %v4741, 5
        %v4744 = vsel %vm588, %v4739, %v4743
        %v4746 = vshrl.u32 %v4712, 16
        %v4748 = vrot.slane %v4746, 4
        %v4749 = vshll.u32 %v4712, 16
        %v4751 = vrot.slane %v4749, 5
        %v4752 = vor.u32 %v4748, %v4751
        %v4753 = vrot.slane %v4752, 4
        %v4755 = vshll.u32 %v4713, 16
        %v4757 = vrot.slane %v4755, 5
        %v4758 = vsel %vm588, %v4753, %v4757
        %v4759 = vshrl.u32 %v4713, 16
        %v4761 = vrot.slane %v4759, 4
        %v4762 = vor.u32 %v4761, %v4757
        %v4763 = vrot.slane %v4762, 4
        %v4765 = vshll.u32 %v4714, 16
        %v4767 = vrot.slane %v4765, 5
        %v4768 = vsel %vm588, %v4763, %v4767
        %v4770 = vshrl.u32 %v4715, 16
        %v4772 = vrot.slane %v4770, 4
        %v4773 = vshll.u32 %v4715, 16
        %v4775 = vrot.slane %v4773, 5
        %v4776 = vor.u32 %v4772, %v4775
        %v4777 = vrot.slane %v4776, 4
        %v4779 = vshll.u32 %v4716, 16
        %v4781 = vrot.slane %v4779, 5
        %v4782 = vsel %vm588, %v4777, %v4781
        %v4783 = vshrl.u32 %v4716, 16
        %v4785 = vrot.slane %v4783, 4
        %v4786 = vor.u32 %v4785, %v4781
        %v4787 = vrot.slane %v4786, 4
        %v4789 = vshll.u32 %v4717, 16
        %v4791 = vrot.slane %v4789, 5
        %v4792 = vsel %vm588, %v4787, %v4791
        %v4794 = vshrl.u32 %v4718, 16
        %v4796 = vrot.slane %v4794, 4
        %v4797 = vshll.u32 %v4718, 16
        %v4799 = vrot.slane %v4797, 5
        %v4800 = vor.u32 %v4796, %v4799
        %v4801 = vrot.slane %v4800, 4
        %v4803 = vshll.u32 %v4719, 16
        %v4805 = vrot.slane %v4803, 5
        %v4806 = vsel %vm588, %v4801, %v4805
        %v4807 = vshrl.u32 %v4719, 16
        %v4809 = vrot.slane %v4807, 4
        %v4810 = vor.u32 %v4809, %v4805
        %v4811 = vrot.slane %v4810, 4
        %v4813 = vshll.u32 %v4720, 16
        %v4815 = vrot.slane %v4813, 5
        %v4816 = vsel %vm588, %v4811, %v4815
        %4825 = vst [vmem:[#allocation4 + $0x1c] sm:$0xf] %v4734
        %4826 = vst [vmem:[#allocation4 + $0x40] sm:$0xf] %v4744
        %4827 = vst [vmem:[#allocation4 + $0x64] sm:$0xf] %v4758
        %4828 = vst [vmem:[#allocation4 + $0x88] sm:$0xf] %v4768
        %4829 = vst [vmem:[#allocation4 + $0xac] sm:$0xf] %v4782
        %4830 = vst [vmem:[#allocation4 + $0xd0] sm:$0xf] %v4792
        %4831 = vst [vmem:[#allocation4 + $0xf4] sm:$0xf] %v4806
        %4832 = vst [vmem:[#allocation4 + $0x118] sm:$0xf] %v4816
        %v4833 = vld [vmem:[%s4692] sm:$0xe]
        %v4834 = vld [vmem:[%s4692 + $0x4] sm:$0xf]
        %v4835 = vld [vmem:[%s4692 + $0x8] sm:$0x1]
        %v4836 = vld [vmem:[%s4692 + $0xc] sm:$0xe]
        %v4837 = vld [vmem:[%s4692 + $0x10] sm:$0xf]
        %v4838 = vld [vmem:[%s4692 + $0x14] sm:$0x1]
        %v4839 = vld [vmem:[%s4692 + $0x18] sm:$0xe]
        %v4840 = vld [vmem:[%s4692 + $0x1c] sm:$0xf]
        %v4841 = vld [vmem:[%s4692 + $0x20] sm:$0x1]
        %v4842 = vld [vmem:[%s4692 + $0x24] sm:$0xe]
        %v4843 = vld [vmem:[%s4692 + $0x28] sm:$0xf]
        %v4844 = vld [vmem:[%s4692 + $0x2c] sm:$0x1]
        %v4857 = vrot.slane %v4833, 5
        %v4858 = vrot.slane %v4857, 4
        %v4859 = vrot.slane %v4834, 5
        %v4860 = vsel %vm1005, %v4858, %v4859
        %v4861 = vrot.slane %v4859, 4
        %v4862 = vrot.slane %v4835, 5
        %v4863 = vsel %vm1005, %v4861, %v4862
        %v4864 = vrot.slane %v4836, 5
        %v4865 = vrot.slane %v4864, 4
        %v4866 = vrot.slane %v4837, 5
        %v4867 = vsel %vm1005, %v4865, %v4866
        %v4868 = vrot.slane %v4866, 4
        %v4869 = vrot.slane %v4838, 5
        %v4870 = vsel %vm1005, %v4868, %v4869
        %v4871 = vrot.slane %v4839, 5
        %v4872 = vrot.slane %v4871, 4
        %v4873 = vrot.slane %v4840, 5
        %v4874 = vsel %vm1005, %v4872, %v4873
        %v4875 = vrot.slane %v4873, 4
        %v4876 = vrot.slane %v4841, 5
        %v4877 = vsel %vm1005, %v4875, %v4876
        %v4878 = vrot.slane %v4842, 5
        %v4879 = vrot.slane %v4878, 4
        %v4880 = vrot.slane %v4843, 5
        %v4881 = vsel %vm1005, %v4879, %v4880
        %v4882 = vrot.slane %v4880, 4
        %v4883 = vrot.slane %v4844, 5
        %v4884 = vsel %vm1005, %v4882, %v4883
        %4893 = vst [vmem:[#allocation4 + $0x20] sm:$0xf] %v4860
        %4894 = vst [vmem:[#allocation4 + $0x44] sm:$0xf] %v4863
        %4895 = vst [vmem:[#allocation4 + $0x68] sm:$0xf] %v4867
        %4896 = vst [vmem:[#allocation4 + $0x8c] sm:$0xf] %v4870
        %4897 = vst [vmem:[#allocation4 + $0xb0] sm:$0xf] %v4874
        %4898 = vst [vmem:[#allocation4 + $0xd4] sm:$0xf] %v4877
        %4899 = vst [vmem:[#allocation4 + $0xf8] sm:$0xf] %v4881
        %4900 = vst [vmem:[#allocation4 + $0x11c] sm:$0xf] %v4884
        %v4901 = vld [vmem:[#allocation4] sm:$0xff]
        %v4902 = vld [vmem:[#allocation4 + $0x8] sm:$0xff]
        %v4903 = vld [vmem:[#allocation4 + $0x10] sm:$0xff]
        %v4904 = vld [vmem:[#allocation4 + $0x18] sm:$0xff]
        %v4905 = vld [vmem:[#allocation4 + $0x20] sm:$0xf]
        %v4906 = vld [vmem:[#allocation4 + $0x24] sm:$0xff]
        %v4907 = vld [vmem:[#allocation4 + $0x2c] sm:$0xff]
        %v4908 = vld [vmem:[#allocation4 + $0x34] sm:$0xff]
        %v4909 = vld [vmem:[#allocation4 + $0x3c] sm:$0xff]
        %v4910 = vld [vmem:[#allocation4 + $0x44] sm:$0xf]
        %v4911 = vld [vmem:[#allocation4 + $0x48] sm:$0xff]
        %v4912 = vld [vmem:[#allocation4 + $0x50] sm:$0xff]
        %v4913 = vld [vmem:[#allocation4 + $0x58] sm:$0xff]
        %v4914 = vld [vmem:[#allocation4 + $0x60] sm:$0xff]
        %v4915 = vld [vmem:[#allocation4 + $0x68] sm:$0xf]
        %v4916 = vld [vmem:[#allocation4 + $0x6c] sm:$0xff]
        %v4917 = vld [vmem:[#allocation4 + $0x74] sm:$0xff]
        %v4918 = vld [vmem:[#allocation4 + $0x7c] sm:$0xff]
        %v4919 = vld [vmem:[#allocation4 + $0x84] sm:$0xff]
        %v4920 = vld [vmem:[#allocation4 + $0x8c] sm:$0xf]
        %v4921 = vld [vmem:[#allocation4 + $0x90] sm:$0xff]
        %v4922 = vld [vmem:[#allocation4 + $0x98] sm:$0xff]
        %v4923 = vld [vmem:[#allocation4 + $0xa0] sm:$0xff]
        %v4924 = vld [vmem:[#allocation4 + $0xa8] sm:$0xff]
        %v4925 = vld [vmem:[#allocation4 + $0xb0] sm:$0xf]
        %v4926 = vld [vmem:[#allocation4 + $0xb4] sm:$0xff]
        %v4927 = vld [vmem:[#allocation4 + $0xbc] sm:$0xff]
        %v4928 = vld [vmem:[#allocation4 + $0xc4] sm:$0xff]
        %v4929 = vld [vmem:[#allocation4 + $0xcc] sm:$0xff]
        %v4930 = vld [vmem:[#allocation4 + $0xd4] sm:$0xf]
        %v4931 = vld [vmem:[#allocation4 + $0xd8] sm:$0xff]
        %v4932 = vld [vmem:[#allocation4 + $0xe0] sm:$0xff]
        %v4933 = vld [vmem:[#allocation4 + $0xe8] sm:$0xff]
        %v4934 = vld [vmem:[#allocation4 + $0xf0] sm:$0xff]
        %v4935 = vld [vmem:[#allocation4 + $0xf8] sm:$0xf]
        %v4936 = vld [vmem:[#allocation4 + $0xfc] sm:$0xff]
        %v4937 = vld [vmem:[#allocation4 + $0x104] sm:$0xff]
        %v4938 = vld [vmem:[#allocation4 + $0x10c] sm:$0xff]
        %v4939 = vld [vmem:[#allocation4 + $0x114] sm:$0xff]
        %v4940 = vld [vmem:[#allocation4 + $0x11c] sm:$0xf]
        %v4941 = vld [vmem:[#allocation5] sm:$0xf]
        %v4942 = vld [vmem:[#allocation5 + $0x4] sm:$0xf]
        %v4943 = vld [vmem:[#allocation5 + $0x8] sm:$0xf]
        %v4944 = vld [vmem:[#allocation5 + $0xc] sm:$0xf]
        %v4945 = vld [vmem:[#allocation5 + $0x10] sm:$0xf]
        %v4946 = vld [vmem:[#allocation5 + $0x14] sm:$0xf]
        %v4947 = vld [vmem:[#allocation5 + $0x18] sm:$0xf]
        %v4948 = vld [vmem:[#allocation5 + $0x1c] sm:$0xf]
        %v4949 = vld [vmem:[#allocation5 + $0x20] sm:$0xf]
        %v4950 = vld [vmem:[#allocation5 + $0x24] sm:$0xf]
        %v4951 = vld [vmem:[#allocation5 + $0x28] sm:$0xf]
        %v4952 = vld [vmem:[#allocation5 + $0x2c] sm:$0xf]
        %v4953 = vld [vmem:[#allocation5 + $0x30] sm:$0xf]
        %v4954 = vld [vmem:[#allocation5 + $0x34] sm:$0xf]
        %v4955 = vld [vmem:[#allocation5 + $0x38] sm:$0xf]
        %v4956 = vld [vmem:[#allocation5 + $0x3c] sm:$0xf]
        %v4957 = vld [vmem:[#allocation5 + $0x40] sm:$0xf]
        %v4958 = vld [vmem:[#allocation5 + $0x44] sm:$0xf]
        %v4959 = vld [vmem:[#allocation5 + $0x48] sm:$0xf]
        %v4960 = vld [vmem:[#allocation5 + $0x4c] sm:$0xf]
        %v4961 = vld [vmem:[#allocation5 + $0x50] sm:$0xf]
        %v4962 = vld [vmem:[#allocation5 + $0x54] sm:$0xf]
        %v4963 = vld [vmem:[#allocation5 + $0x58] sm:$0xf]
        %v4964 = vld [vmem:[#allocation5 + $0x5c] sm:$0xf]
        %v4965 = vld [vmem:[#allocation5 + $0x60] sm:$0xf]
        %v4966 = vld [vmem:[#allocation5 + $0x64] sm:$0xf]
        %v4967 = vld [vmem:[#allocation5 + $0x68] sm:$0xf]
        %v4968 = vld [vmem:[#allocation5 + $0x6c] sm:$0xf]
        %v4969 = vld [vmem:[#allocation5 + $0x70] sm:$0xf]
        %v4970 = vld [vmem:[#allocation5 + $0x74] sm:$0xf]
        %v4971 = vld [vmem:[#allocation5 + $0x78] sm:$0xf]
        %v4972 = vld [vmem:[#allocation5 + $0x7c] sm:$0xf]
        %v4973 = vld [vmem:[#allocation5 + $0x80] sm:$0xf]
        %v4974 = vld [vmem:[#allocation5 + $0x84] sm:$0xf]
        %v4975 = vld [vmem:[#allocation5 + $0x88] sm:$0xf]
        %v4976 = vld [vmem:[#allocation5 + $0x8c] sm:$0xf]
        %v4977 = vld [vmem:[#allocation5 + $0x90] sm:$0xf]
        %v4978 = vld [vmem:[#allocation5 + $0x94] sm:$0xf]
        %v4979 = vld [vmem:[#allocation5 + $0x98] sm:$0xf]
        %v4980 = vld [vmem:[#allocation5 + $0x9c] sm:$0xf]
        %v4981 = vld [vmem:[#allocation5 + $0xa0] sm:$0xf]
        %v4982 = vld [vmem:[#allocation5 + $0xa4] sm:$0xf]
        %v4983 = vld [vmem:[#allocation5 + $0xa8] sm:$0xf]
        %v4984 = vld [vmem:[#allocation5 + $0xac] sm:$0xf]
        %v4985 = vld [vmem:[#allocation5 + $0xb0] sm:$0xf]
        %v4986 = vld [vmem:[#allocation5 + $0xb4] sm:$0xf]
        %v4987 = vld [vmem:[#allocation5 + $0xb8] sm:$0xf]
        %v4988 = vld [vmem:[#allocation5 + $0xbc] sm:$0xf]
        %v4989 = vld [vmem:[#allocation5 + $0xc0] sm:$0xf]
        %v4990 = vld [vmem:[#allocation5 + $0xc4] sm:$0xf]
        %v4991 = vld [vmem:[#allocation5 + $0xc8] sm:$0xf]
        %v4992 = vld [vmem:[#allocation5 + $0xcc] sm:$0xf]
        %v4993 = vld [vmem:[#allocation5 + $0xd0] sm:$0xf]
        %v4994 = vld [vmem:[#allocation5 + $0xd4] sm:$0xf]
        %v4995 = vld [vmem:[#allocation5 + $0xd8] sm:$0xf]
        %v4996 = vld [vmem:[#allocation5 + $0xdc] sm:$0xf]
        %v4997 = vld [vmem:[#allocation5 + $0xe0] sm:$0xf]
        %v4998 = vld [vmem:[#allocation5 + $0xe4] sm:$0xf]
        %v4999 = vld [vmem:[#allocation5 + $0xe8] sm:$0xf]
        %v5000 = vld [vmem:[#allocation5 + $0xec] sm:$0xf]
        %v5001 = vld [vmem:[#allocation5 + $0xf0] sm:$0xf]
        %v5002 = vld [vmem:[#allocation5 + $0xf4] sm:$0xf]
        %v5003 = vld [vmem:[#allocation5 + $0xf8] sm:$0xf]
        %v5004 = vld [vmem:[#allocation5 + $0xfc] sm:$0xf]
        %v5005 = vld [vmem:[#allocation5 + $0x100] sm:$0xf]
        %v5006 = vld [vmem:[#allocation5 + $0x104] sm:$0xf]
        %v5007 = vld [vmem:[#allocation5 + $0x108] sm:$0xf]
        %v5008 = vld [vmem:[#allocation5 + $0x10c] sm:$0xf]
        %v5009 = vld [vmem:[#allocation5 + $0x110] sm:$0xf]
        %v5010 = vld [vmem:[#allocation5 + $0x114] sm:$0xf]
        %v5011 = vld [vmem:[#allocation5 + $0x118] sm:$0xf]
        %v5012 = vld [vmem:[#allocation5 + $0x11c] sm:$0xf]
        %v5013 = vld [vmem:[#allocation5 + $0x120] sm:$0xf]
        %v5014 = vld [vmem:[#allocation5 + $0x124] sm:$0xf]
        %v5015 = vld [vmem:[#allocation5 + $0x128] sm:$0xf]
        %v5016 = vld [vmem:[#allocation5 + $0x12c] sm:$0xf]
        %v5017 = vld [vmem:[#allocation5 + $0x130] sm:$0xf]
        %v5018 = vld [vmem:[#allocation5 + $0x134] sm:$0xf]
        %v5019 = vld [vmem:[#allocation5 + $0x138] sm:$0xf]
        %v5020 = vld [vmem:[#allocation5 + $0x13c] sm:$0xf]
        %v5021 = vld [vmem:[#allocation5 + $0x140] sm:$0xf]
        %v5022 = vld [vmem:[#allocation5 + $0x144] sm:$0xf]
        %v5023 = vld [vmem:[#allocation5 + $0x148] sm:$0xf]
        %v5024 = vld [vmem:[#allocation5 + $0x14c] sm:$0xf]
        %v5025 = vld [vmem:[#allocation5 + $0x150] sm:$0xf]
        %v5026 = vld [vmem:[#allocation5 + $0x154] sm:$0xf]
        %v5027 = vld [vmem:[#allocation5 + $0x158] sm:$0xf]
        %v5028 = vld [vmem:[#allocation5 + $0x15c] sm:$0xf]
        %v5029 = vld [vmem:[#allocation5 + $0x160] sm:$0xf]
        %v5030 = vld [vmem:[#allocation5 + $0x164] sm:$0xf]
        %v5031 = vld [vmem:[#allocation5 + $0x168] sm:$0xf]
        %v5032 = vld [vmem:[#allocation5 + $0x16c] sm:$0xf]
        %v5033 = vld [vmem:[#allocation5 + $0x170] sm:$0xf]
        %v5034 = vld [vmem:[#allocation5 + $0x174] sm:$0xf]
        %v5035 = vld [vmem:[#allocation5 + $0x178] sm:$0xf]
        %v5036 = vld [vmem:[#allocation5 + $0x17c] sm:$0xf]
        %v5037 = vld [vmem:[#allocation5 + $0x180] sm:$0xf]
        %v5038 = vld [vmem:[#allocation5 + $0x184] sm:$0xf]
        %v5039 = vld [vmem:[#allocation5 + $0x188] sm:$0xf]
        %v5040 = vld [vmem:[#allocation5 + $0x18c] sm:$0xf]
        %v5041 = vld [vmem:[#allocation5 + $0x190] sm:$0xf]
        %v5042 = vld [vmem:[#allocation5 + $0x194] sm:$0xf]
        %v5043 = vld [vmem:[#allocation5 + $0x198] sm:$0xf]
        %v5044 = vld [vmem:[#allocation5 + $0x19c] sm:$0xf]
        %v5045 = vld [vmem:[#allocation5 + $0x1a0] sm:$0xf]
        %v5046 = vld [vmem:[#allocation5 + $0x1a4] sm:$0xf]
        %v5047 = vld [vmem:[#allocation5 + $0x1a8] sm:$0xf]
        %v5048 = vld [vmem:[#allocation5 + $0x1ac] sm:$0xf]
        %v5049 = vld [vmem:[#allocation5 + $0x1b0] sm:$0xf]
        %v5050 = vld [vmem:[#allocation5 + $0x1b4] sm:$0xf]
        %v5051 = vld [vmem:[#allocation5 + $0x1b8] sm:$0xf]
        %v5052 = vld [vmem:[#allocation5 + $0x1bc] sm:$0xf]
        %v5053 = vld [vmem:[#allocation5 + $0x1c0] sm:$0xf]
        %v5054 = vld [vmem:[#allocation5 + $0x1c4] sm:$0xf]
        %v5055 = vld [vmem:[#allocation5 + $0x1c8] sm:$0xf]
        %v5056 = vld [vmem:[#allocation5 + $0x1cc] sm:$0xf]
        %v5057 = vld [vmem:[#allocation5 + $0x1d0] sm:$0xf]
        %v5058 = vld [vmem:[#allocation5 + $0x1d4] sm:$0xf]
        %v5059 = vld [vmem:[#allocation5 + $0x1d8] sm:$0xf]
        %v5060 = vld [vmem:[#allocation5 + $0x1dc] sm:$0xf]
        %v5061 = vld [vmem:[#allocation5 + $0x1e0] sm:$0xf]
        %v5062 = vld [vmem:[#allocation5 + $0x1e4] sm:$0xf]
        %v5063 = vld [vmem:[#allocation5 + $0x1e8] sm:$0xf]
        %v5064 = vld [vmem:[#allocation5 + $0x1ec] sm:$0xf]
        %v5065 = vld [vmem:[#allocation5 + $0x1f0] sm:$0xf]
        %v5066 = vld [vmem:[#allocation5 + $0x1f4] sm:$0xf]
        %v5067 = vld [vmem:[#allocation5 + $0x1f8] sm:$0xf]
        %v5068 = vld [vmem:[#allocation5 + $0x1fc] sm:$0xf]
        %v5069 = vld [vmem:[#allocation5 + $0x200] sm:$0xf]
        %v5070 = vld [vmem:[#allocation5 + $0x204] sm:$0xf]
        %v5071 = vld [vmem:[#allocation5 + $0x208] sm:$0xf]
        %v5072 = vld [vmem:[#allocation5 + $0x20c] sm:$0xf]
        %v5073 = vld [vmem:[#allocation5 + $0x210] sm:$0xf]
        %v5074 = vld [vmem:[#allocation5 + $0x214] sm:$0xf]
        %v5075 = vld [vmem:[#allocation5 + $0x218] sm:$0xf]
        %v5076 = vld [vmem:[#allocation5 + $0x21c] sm:$0xf]
        %v5077 = vld [vmem:[#allocation5 + $0x220] sm:$0xf]
        %v5078 = vld [vmem:[#allocation5 + $0x224] sm:$0xf]
        %v5079 = vld [vmem:[#allocation5 + $0x228] sm:$0xf]
        %v5080 = vld [vmem:[#allocation5 + $0x22c] sm:$0xf]
        %v5081 = vld [vmem:[#allocation5 + $0x230] sm:$0xf]
        %v5082 = vld [vmem:[#allocation5 + $0x234] sm:$0xf]
        %v5083 = vld [vmem:[#allocation5 + $0x238] sm:$0xf]
        %v5084 = vld [vmem:[#allocation5 + $0x23c] sm:$0xf]
        %v5125 = vunpack.c.l.b16 %v4901
        %v5126 = vunpack.c.h.b16 %v4901
        %v5127 = vunpack.c.l.b16 %v4902
        %v5128 = vunpack.c.h.b16 %v4902
        %v5129 = vunpack.c.l.b16 %v4903
        %v5130 = vunpack.c.h.b16 %v4903
        %v5131 = vunpack.c.l.b16 %v4904
        %v5132 = vunpack.c.h.b16 %v4904
        %v5133 = vunpack.c.l.b16 %v4905
        %v5134 = vunpack.c.l.b16 %v4906
        %v5135 = vunpack.c.h.b16 %v4906
        %v5136 = vunpack.c.l.b16 %v4907
        %v5137 = vunpack.c.h.b16 %v4907
        %v5138 = vunpack.c.l.b16 %v4908
        %v5139 = vunpack.c.h.b16 %v4908
        %v5140 = vunpack.c.l.b16 %v4909
        %v5141 = vunpack.c.h.b16 %v4909
        %v5142 = vunpack.c.l.b16 %v4910
        %v5143 = vunpack.c.l.b16 %v4911
        %v5144 = vunpack.c.h.b16 %v4911
        %v5145 = vunpack.c.l.b16 %v4912
        %v5146 = vunpack.c.h.b16 %v4912
        %v5147 = vunpack.c.l.b16 %v4913
        %v5148 = vunpack.c.h.b16 %v4913
        %v5149 = vunpack.c.l.b16 %v4914
        %v5150 = vunpack.c.h.b16 %v4914
        %v5151 = vunpack.c.l.b16 %v4915
        %v5152 = vunpack.c.l.b16 %v4916
        %v5153 = vunpack.c.h.b16 %v4916
        %v5154 = vunpack.c.l.b16 %v4917
        %v5155 = vunpack.c.h.b16 %v4917
        %v5156 = vunpack.c.l.b16 %v4918
        %v5157 = vunpack.c.h.b16 %v4918
        %v5158 = vunpack.c.l.b16 %v4919
        %v5159 = vunpack.c.h.b16 %v4919
        %v5160 = vunpack.c.l.b16 %v4920
        %v5161 = vunpack.c.l.b16 %v4921
        %v5162 = vunpack.c.h.b16 %v4921
        %v5163 = vunpack.c.l.b16 %v4922
        %v5164 = vunpack.c.h.b16 %v4922
        %v5165 = vunpack.c.l.b16 %v4923
        %v5166 = vunpack.c.h.b16 %v4923
        %v5167 = vunpack.c.l.b16 %v4924
        %v5168 = vunpack.c.h.b16 %v4924
        %v5169 = vunpack.c.l.b16 %v4925
        %v5170 = vunpack.c.l.b16 %v4926
        %v5171 = vunpack.c.h.b16 %v4926
        %v5172 = vunpack.c.l.b16 %v4927
        %v5173 = vunpack.c.h.b16 %v4927
        %v5174 = vunpack.c.l.b16 %v4928
        %v5175 = vunpack.c.h.b16 %v4928
        %v5176 = vunpack.c.l.b16 %v4929
        %v5177 = vunpack.c.h.b16 %v4929
        %v5178 = vunpack.c.l.b16 %v4930
        %v5179 = vunpack.c.l.b16 %v4931
        %v5180 = vunpack.c.h.b16 %v4931
        %v5181 = vunpack.c.l.b16 %v4932
        %v5182 = vunpack.c.h.b16 %v4932
        %v5183 = vunpack.c.l.b16 %v4933
        %v5184 = vunpack.c.h.b16 %v4933
        %v5185 = vunpack.c.l.b16 %v4934
        %v5186 = vunpack.c.h.b16 %v4934
        %v5187 = vunpack.c.l.b16 %v4935
        %v5188 = vunpack.c.l.b16 %v4936
        %v5189 = vunpack.c.h.b16 %v4936
        %v5190 = vunpack.c.l.b16 %v4937
        %v5191 = vunpack.c.h.b16 %v4937
        %v5192 = vunpack.c.l.b16 %v4938
        %v5193 = vunpack.c.h.b16 %v4938
        %v5194 = vunpack.c.l.b16 %v4939
        %v5195 = vunpack.c.h.b16 %v4939
        %v5196 = vunpack.c.l.b16 %v4940
        %v5197 = vpack.c.b16 %v5134, %v5125
        %v5198 = vpack.c.b16 %v5135, %v5126
        %v5199 = vpack.c.b16 %v5136, %v5127
        %v5200 = vpack.c.b16 %v5137, %v5128
        %v5201 = vpack.c.b16 %v5138, %v5129
        %v5202 = vpack.c.b16 %v5139, %v5130
        %v5203 = vpack.c.b16 %v5140, %v5131
        %v5204 = vpack.c.b16 %v5141, %v5132
        %v5205 = vpack.c.b16 %v5142, %v5133
        %v5206 = vpack.c.b16 %v5152, %v5143
        %v5207 = vpack.c.b16 %v5153, %v5144
        %v5208 = vpack.c.b16 %v5154, %v5145
        %v5209 = vpack.c.b16 %v5155, %v5146
        %v5210 = vpack.c.b16 %v5156, %v5147
        %v5211 = vpack.c.b16 %v5157, %v5148
        %v5212 = vpack.c.b16 %v5158, %v5149
        %v5213 = vpack.c.b16 %v5159, %v5150
        %v5214 = vpack.c.b16 %v5160, %v5151
        %v5215 = vpack.c.b16 %v5170, %v5161
        %v5216 = vpack.c.b16 %v5171, %v5162
        %v5217 = vpack.c.b16 %v5172, %v5163
        %v5218 = vpack.c.b16 %v5173, %v5164
        %v5219 = vpack.c.b16 %v5174, %v5165
        %v5220 = vpack.c.b16 %v5175, %v5166
        %v5221 = vpack.c.b16 %v5176, %v5167
        %v5222 = vpack.c.b16 %v5177, %v5168
        %v5223 = vpack.c.b16 %v5178, %v5169
        %v5224 = vpack.c.b16 %v5188, %v5179
        %v5225 = vpack.c.b16 %v5189, %v5180
        %v5226 = vpack.c.b16 %v5190, %v5181
        %v5227 = vpack.c.b16 %v5191, %v5182
        %v5228 = vpack.c.b16 %v5192, %v5183
        %v5229 = vpack.c.b16 %v5193, %v5184
        %v5230 = vpack.c.b16 %v5194, %v5185
        %v5231 = vpack.c.b16 %v5195, %v5186
        %v5232 = vpack.c.b16 %v5196, %v5187
        %v5413 = vunpack.c.l.b16 %v4941
        %v5414 = vunpack.c.l.b16 %v4942
        %v5415 = vunpack.c.l.b16 %v4943
        %v5416 = vunpack.c.l.b16 %v4944
        %v5417 = vunpack.c.l.b16 %v4945
        %v5418 = vunpack.c.l.b16 %v4946
        %v5419 = vunpack.c.l.b16 %v4947
        %v5420 = vunpack.c.l.b16 %v4948
        %v5421 = vunpack.c.l.b16 %v4949
        %v5422 = vunpack.c.l.b16 %v4950
        %v5423 = vunpack.c.l.b16 %v4951
        %v5424 = vunpack.c.l.b16 %v4952
        %v5425 = vunpack.c.l.b16 %v4953
        %v5426 = vunpack.c.l.b16 %v4954
        %v5427 = vunpack.c.l.b16 %v4955
        %v5428 = vunpack.c.l.b16 %v4956
        %v5429 = vunpack.c.l.b16 %v4957
        %v5430 = vunpack.c.l.b16 %v4958
        %v5431 = vunpack.c.l.b16 %v4959
        %v5432 = vunpack.c.l.b16 %v4960
        %v5433 = vunpack.c.l.b16 %v4961
        %v5434 = vunpack.c.l.b16 %v4962
        %v5435 = vunpack.c.l.b16 %v4963
        %v5436 = vunpack.c.l.b16 %v4964
        %v5437 = vunpack.c.l.b16 %v4965
        %v5438 = vunpack.c.l.b16 %v4966
        %v5439 = vunpack.c.l.b16 %v4967
        %v5440 = vunpack.c.l.b16 %v4968
        %v5441 = vunpack.c.l.b16 %v4969
        %v5442 = vunpack.c.l.b16 %v4970
        %v5443 = vunpack.c.l.b16 %v4971
        %v5444 = vunpack.c.l.b16 %v4972
        %v5445 = vunpack.c.l.b16 %v4973
        %v5446 = vunpack.c.l.b16 %v4974
        %v5447 = vunpack.c.l.b16 %v4975
        %v5448 = vunpack.c.l.b16 %v4976
        %v5449 = vunpack.c.l.b16 %v4977
        %v5450 = vunpack.c.l.b16 %v4978
        %v5451 = vunpack.c.l.b16 %v4979
        %v5452 = vunpack.c.l.b16 %v4980
        %v5453 = vunpack.c.l.b16 %v4981
        %v5454 = vunpack.c.l.b16 %v4982
        %v5455 = vunpack.c.l.b16 %v4983
        %v5456 = vunpack.c.l.b16 %v4984
        %v5457 = vunpack.c.l.b16 %v4985
        %v5458 = vunpack.c.l.b16 %v4986
        %v5459 = vunpack.c.l.b16 %v4987
        %v5460 = vunpack.c.l.b16 %v4988
        %v5461 = vunpack.c.l.b16 %v4989
        %v5462 = vunpack.c.l.b16 %v4990
        %v5463 = vunpack.c.l.b16 %v4991
        %v5464 = vunpack.c.l.b16 %v4992
        %v5465 = vunpack.c.l.b16 %v4993
        %v5466 = vunpack.c.l.b16 %v4994
        %v5467 = vunpack.c.l.b16 %v4995
        %v5468 = vunpack.c.l.b16 %v4996
        %v5469 = vunpack.c.l.b16 %v4997
        %v5470 = vunpack.c.l.b16 %v4998
        %v5471 = vunpack.c.l.b16 %v4999
        %v5472 = vunpack.c.l.b16 %v5000
        %v5473 = vunpack.c.l.b16 %v5001
        %v5474 = vunpack.c.l.b16 %v5002
        %v5475 = vunpack.c.l.b16 %v5003
        %v5476 = vunpack.c.l.b16 %v5004
        %v5477 = vunpack.c.l.b16 %v5005
        %v5478 = vunpack.c.l.b16 %v5006
        %v5479 = vunpack.c.l.b16 %v5007
        %v5480 = vunpack.c.l.b16 %v5008
        %v5481 = vunpack.c.l.b16 %v5009
        %v5482 = vunpack.c.l.b16 %v5010
        %v5483 = vunpack.c.l.b16 %v5011
        %v5484 = vunpack.c.l.b16 %v5012
        %v5485 = vunpack.c.l.b16 %v5013
        %v5486 = vunpack.c.l.b16 %v5014
        %v5487 = vunpack.c.l.b16 %v5015
        %v5488 = vunpack.c.l.b16 %v5016
        %v5489 = vunpack.c.l.b16 %v5017
        %v5490 = vunpack.c.l.b16 %v5018
        %v5491 = vunpack.c.l.b16 %v5019
        %v5492 = vunpack.c.l.b16 %v5020
        %v5493 = vunpack.c.l.b16 %v5021
        %v5494 = vunpack.c.l.b16 %v5022
        %v5495 = vunpack.c.l.b16 %v5023
        %v5496 = vunpack.c.l.b16 %v5024
        %v5497 = vunpack.c.l.b16 %v5025
        %v5498 = vunpack.c.l.b16 %v5026
        %v5499 = vunpack.c.l.b16 %v5027
        %v5500 = vunpack.c.l.b16 %v5028
        %v5501 = vunpack.c.l.b16 %v5029
        %v5502 = vunpack.c.l.b16 %v5030
        %v5503 = vunpack.c.l.b16 %v5031
        %v5504 = vunpack.c.l.b16 %v5032
        %v5505 = vunpack.c.l.b16 %v5033
        %v5506 = vunpack.c.l.b16 %v5034
        %v5507 = vunpack.c.l.b16 %v5035
        %v5508 = vunpack.c.l.b16 %v5036
        %v5509 = vunpack.c.l.b16 %v5037
        %v5510 = vunpack.c.l.b16 %v5038
        %v5511 = vunpack.c.l.b16 %v5039
        %v5512 = vunpack.c.l.b16 %v5040
        %v5513 = vunpack.c.l.b16 %v5041
        %v5514 = vunpack.c.l.b16 %v5042
        %v5515 = vunpack.c.l.b16 %v5043
        %v5516 = vunpack.c.l.b16 %v5044
        %v5517 = vunpack.c.l.b16 %v5045
        %v5518 = vunpack.c.l.b16 %v5046
        %v5519 = vunpack.c.l.b16 %v5047
        %v5520 = vunpack.c.l.b16 %v5048
        %v5521 = vunpack.c.l.b16 %v5049
        %v5522 = vunpack.c.l.b16 %v5050
        %v5523 = vunpack.c.l.b16 %v5051
        %v5524 = vunpack.c.l.b16 %v5052
        %v5525 = vunpack.c.l.b16 %v5053
        %v5526 = vunpack.c.l.b16 %v5054
        %v5527 = vunpack.c.l.b16 %v5055
        %v5528 = vunpack.c.l.b16 %v5056
        %v5529 = vunpack.c.l.b16 %v5057
        %v5530 = vunpack.c.l.b16 %v5058
        %v5531 = vunpack.c.l.b16 %v5059
        %v5532 = vunpack.c.l.b16 %v5060
        %v5533 = vunpack.c.l.b16 %v5061
        %v5534 = vunpack.c.l.b16 %v5062
        %v5535 = vunpack.c.l.b16 %v5063
        %v5536 = vunpack.c.l.b16 %v5064
        %v5537 = vunpack.c.l.b16 %v5065
        %v5538 = vunpack.c.l.b16 %v5066
        %v5539 = vunpack.c.l.b16 %v5067
        %v5540 = vunpack.c.l.b16 %v5068
        %v5541 = vunpack.c.l.b16 %v5069
        %v5542 = vunpack.c.l.b16 %v5070
        %v5543 = vunpack.c.l.b16 %v5071
        %v5544 = vunpack.c.l.b16 %v5072
        %v5545 = vunpack.c.l.b16 %v5073
        %v5546 = vunpack.c.l.b16 %v5074
        %v5547 = vunpack.c.l.b16 %v5075
        %v5548 = vunpack.c.l.b16 %v5076
        %v5549 = vunpack.c.l.b16 %v5077
        %v5550 = vunpack.c.l.b16 %v5078
        %v5551 = vunpack.c.l.b16 %v5079
        %v5552 = vunpack.c.l.b16 %v5080
        %v5553 = vunpack.c.l.b16 %v5081
        %v5554 = vunpack.c.l.b16 %v5082
        %v5555 = vunpack.c.l.b16 %v5083
        %v5556 = vunpack.c.l.b16 %v5084
        %v5557 = vpack.c.b16 %v5414, %v5413
        %v5558 = vpack.c.b16 %v5416, %v5415
        %v5559 = vpack.c.b16 %v5418, %v5417
        %v5560 = vpack.c.b16 %v5420, %v5419
        %v5561 = vpack.c.b16 %v5422, %v5421
        %v5562 = vpack.c.b16 %v5424, %v5423
        %v5563 = vpack.c.b16 %v5426, %v5425
        %v5564 = vpack.c.b16 %v5428, %v5427
        %v5565 = vpack.c.b16 %v5430, %v5429
        %v5566 = vpack.c.b16 %v5432, %v5431
        %v5567 = vpack.c.b16 %v5434, %v5433
        %v5568 = vpack.c.b16 %v5436, %v5435
        %v5569 = vpack.c.b16 %v5438, %v5437
        %v5570 = vpack.c.b16 %v5440, %v5439
        %v5571 = vpack.c.b16 %v5442, %v5441
        %v5572 = vpack.c.b16 %v5444, %v5443
        %v5573 = vpack.c.b16 %v5446, %v5445
        %v5574 = vpack.c.b16 %v5448, %v5447
        %v5575 = vpack.c.b16 %v5450, %v5449
        %v5576 = vpack.c.b16 %v5452, %v5451
        %v5577 = vpack.c.b16 %v5454, %v5453
        %v5578 = vpack.c.b16 %v5456, %v5455
        %v5579 = vpack.c.b16 %v5458, %v5457
        %v5580 = vpack.c.b16 %v5460, %v5459
        %v5581 = vpack.c.b16 %v5462, %v5461
        %v5582 = vpack.c.b16 %v5464, %v5463
        %v5583 = vpack.c.b16 %v5466, %v5465
        %v5584 = vpack.c.b16 %v5468, %v5467
        %v5585 = vpack.c.b16 %v5470, %v5469
        %v5586 = vpack.c.b16 %v5472, %v5471
        %v5587 = vpack.c.b16 %v5474, %v5473
        %v5588 = vpack.c.b16 %v5476, %v5475
        %v5589 = vpack.c.b16 %v5478, %v5477
        %v5590 = vpack.c.b16 %v5480, %v5479
        %v5591 = vpack.c.b16 %v5482, %v5481
        %v5592 = vpack.c.b16 %v5484, %v5483
        %v5593 = vpack.c.b16 %v5486, %v5485
        %v5594 = vpack.c.b16 %v5488, %v5487
        %v5595 = vpack.c.b16 %v5490, %v5489
        %v5596 = vpack.c.b16 %v5492, %v5491
        %v5597 = vpack.c.b16 %v5494, %v5493
        %v5598 = vpack.c.b16 %v5496, %v5495
        %v5599 = vpack.c.b16 %v5498, %v5497
        %v5600 = vpack.c.b16 %v5500, %v5499
        %v5601 = vpack.c.b16 %v5502, %v5501
        %v5602 = vpack.c.b16 %v5504, %v5503
        %v5603 = vpack.c.b16 %v5506, %v5505
        %v5604 = vpack.c.b16 %v5508, %v5507
        %v5605 = vpack.c.b16 %v5510, %v5509
        %v5606 = vpack.c.b16 %v5512, %v5511
        %v5607 = vpack.c.b16 %v5514, %v5513
        %v5608 = vpack.c.b16 %v5516, %v5515
        %v5609 = vpack.c.b16 %v5518, %v5517
        %v5610 = vpack.c.b16 %v5520, %v5519
        %v5611 = vpack.c.b16 %v5522, %v5521
        %v5612 = vpack.c.b16 %v5524, %v5523
        %v5613 = vpack.c.b16 %v5526, %v5525
        %v5614 = vpack.c.b16 %v5528, %v5527
        %v5615 = vpack.c.b16 %v5530, %v5529
        %v5616 = vpack.c.b16 %v5532, %v5531
        %v5617 = vpack.c.b16 %v5534, %v5533
        %v5618 = vpack.c.b16 %v5536, %v5535
        %v5619 = vpack.c.b16 %v5538, %v5537
        %v5620 = vpack.c.b16 %v5540, %v5539
        %v5621 = vpack.c.b16 %v5542, %v5541
        %v5622 = vpack.c.b16 %v5544, %v5543
        %v5623 = vpack.c.b16 %v5546, %v5545
        %v5624 = vpack.c.b16 %v5548, %v5547
        %v5625 = vpack.c.b16 %v5550, %v5549
        %v5626 = vpack.c.b16 %v5552, %v5551
        %v5627 = vpack.c.b16 %v5554, %v5553
        %v5628 = vpack.c.b16 %v5556, %v5555
        %5701 = vmatprep.subr.bf16.mxu0 0
        %5702 = vmatpush1.bf16.msra.mxu0 %v5564
        %5703 = vmatprep.subr.bf16.mxu0 0
        %5704 = vmatpush1.bf16.msra.mxu0 %v5563
        %5705 = vmatprep.subr.bf16.mxu0 0
        %5706 = vmatpush1.bf16.msra.mxu0 %v5562
        %5707 = vmatprep.subr.bf16.mxu0 0
        %5708 = vmatpush1.bf16.msra.mxu0 %v5561
        %5709 = vmatprep.subr.bf16.mxu0 0
        %5710 = vmatpush1.bf16.msra.mxu0 %v5560
        %5711 = vmatprep.subr.bf16.mxu0 0
        %5712 = vmatpush1.bf16.msra.mxu0 %v5559
        %5713 = vmatprep.subr.bf16.mxu0 0
        %5714 = vmatpush1.bf16.msra.mxu0 %v5558
        %5715 = vmatprep.subr.bf16.mxu0 0
        %5716 = vmatpush1.bf16.msra.mxu0 %v5557
        %5717 = vmatprep.subr.bf16.mxu0 0
        %5718 = vmatpush2.bf16.msra.mxu0 %v5572
        %5719 = vmatprep.subr.bf16.mxu0 0
        %5720 = vmatpush2.bf16.msra.mxu0 %v5571
        %5721 = vmatprep.subr.bf16.mxu0 0
        %5722 = vmatpush2.bf16.msra.mxu0 %v5570
        %5723 = vmatprep.subr.bf16.mxu0 0
        %5724 = vmatpush2.bf16.msra.mxu0 %v5569
        %5725 = vmatprep.subr.bf16.mxu0 0
        %5726 = vmatpush2.bf16.msra.mxu0 %v5568
        %5727 = vmatprep.subr.bf16.mxu0 0
        %5728 = vmatpush2.bf16.msra.mxu0 %v5567
        %5729 = vmatprep.subr.bf16.mxu0 0
        %5730 = vmatpush2.bf16.msra.mxu0 %v5566
        %5731 = vmatprep.subr.bf16.mxu0 0
        %5732 = vmatpush2.bf16.msra.mxu0 %v5565
        %5733 = vmatprep.mubr.bf16.mxu0 %v5198
        %5734 = vmatmul.mubr.bf16.gmra.mxu0 %v5197
        %v5735 = vpop.f32.mrf.mxu0
        %v5736 = vadd.f32 0.0, %v5735
        %v5737 = vpop.f32.mrf.mxu0
        %v5738 = vpop.f32.mrf.mxu0
        %v5739 = vadd.f32 0.0, %v5738
        %v5740 = vpop.f32.mrf.mxu0
        %5741 = vmatprep.mubr.bf16.mxu0 %v5207
        %5742 = vmatmul.mubr.bf16.gmra.mxu0 %v5206
        %v5743 = vpop.f32.mrf.mxu0
        %v5744 = vadd.f32 0.0, %v5743
        %v5745 = vpop.f32.mrf.mxu0
        %v5746 = vpop.f32.mrf.mxu0
        %v5747 = vadd.f32 0.0, %v5746
        %v5748 = vpop.f32.mrf.mxu0
        %5749 = vmatprep.mubr.bf16.mxu0 %v5216
        %5750 = vmatmul.mubr.bf16.gmra.mxu0 %v5215
        %v5751 = vpop.f32.mrf.mxu0
        %v5752 = vadd.f32 0.0, %v5751
        %v5753 = vpop.f32.mrf.mxu0
        %v5754 = vpop.f32.mrf.mxu0
        %v5755 = vadd.f32 0.0, %v5754
        %v5756 = vpop.f32.mrf.mxu0
        %5757 = vmatprep.mubr.bf16.mxu0 %v5225
        %5758 = vmatmul.mubr.bf16.gmra.mxu0 %v5224
        %v5759 = vpop.f32.mrf.mxu0
        %v5760 = vadd.f32 0.0, %v5759
        %v5761 = vpop.f32.mrf.mxu0
        %v5762 = vpop.f32.mrf.mxu0
        %v5763 = vadd.f32 0.0, %v5762
        %v5764 = vpop.f32.mrf.mxu0
        %5765 = vdwg.mxu0
        %5766 = vmatprep.subr.bf16.mxu0 0
        %5767 = vmatpush1.bf16.msra.mxu0 %v5580
        %5768 = vmatprep.subr.bf16.mxu0 0
        %5769 = vmatpush1.bf16.msra.mxu0 %v5579
        %5770 = vmatprep.subr.bf16.mxu0 0
        %5771 = vmatpush1.bf16.msra.mxu0 %v5578
        %5772 = vmatprep.subr.bf16.mxu0 0
        %5773 = vmatpush1.bf16.msra.mxu0 %v5577
        %5774 = vmatprep.subr.bf16.mxu0 0
        %5775 = vmatpush1.bf16.msra.mxu0 %v5576
        %5776 = vmatprep.subr.bf16.mxu0 0
        %5777 = vmatpush1.bf16.msra.mxu0 %v5575
        %5778 = vmatprep.subr.bf16.mxu0 0
        %5779 = vmatpush1.bf16.msra.mxu0 %v5574
        %5780 = vmatprep.subr.bf16.mxu0 0
        %5781 = vmatpush1.bf16.msra.mxu0 %v5573
        %5782 = vmatprep.subr.bf16.mxu0 0
        %5783 = vmatpush2.bf16.msra.mxu0 %v5588
        %5784 = vmatprep.subr.bf16.mxu0 0
        %5785 = vmatpush2.bf16.msra.mxu0 %v5587
        %5786 = vmatprep.subr.bf16.mxu0 0
        %5787 = vmatpush2.bf16.msra.mxu0 %v5586
        %5788 = vmatprep.subr.bf16.mxu0 0
        %5789 = vmatpush2.bf16.msra.mxu0 %v5585
        %5790 = vmatprep.subr.bf16.mxu0 0
        %5791 = vmatpush2.bf16.msra.mxu0 %v5584
        %5792 = vmatprep.subr.bf16.mxu0 0
        %5793 = vmatpush2.bf16.msra.mxu0 %v5583
        %5794 = vmatprep.subr.bf16.mxu0 0
        %5795 = vmatpush2.bf16.msra.mxu0 %v5582
        %5796 = vmatprep.subr.bf16.mxu0 0
        %5797 = vmatpush2.bf16.msra.mxu0 %v5581
        %5798 = vmatprep.mubr.bf16.mxu0 %v5200
        %5799 = vmatmul.mubr.bf16.gmra.mxu0 %v5199
        %v5800 = vpop.f32.mrf.mxu0
        %v5801 = vadd.f32 %v5736, %v5800
        %v5802 = vpop.f32.mrf.mxu0
        %v5803 = vpop.f32.mrf.mxu0
        %v5804 = vadd.f32 %v5739, %v5803
        %v5805 = vpop.f32.mrf.mxu0
        %5806 = vmatprep.mubr.bf16.mxu0 %v5209
        %5807 = vmatmul.mubr.bf16.gmra.mxu0 %v5208
        %v5808 = vpop.f32.mrf.mxu0
        %v5809 = vadd.f32 %v5744, %v5808
        %v5810 = vpop.f32.mrf.mxu0
        %v5811 = vpop.f32.mrf.mxu0
        %v5812 = vadd.f32 %v5747, %v5811
        %v5813 = vpop.f32.mrf.mxu0
        %5814 = vmatprep.mubr.bf16.mxu0 %v5218
        %5815 = vmatmul.mubr.bf16.gmra.mxu0 %v5217
        %v5816 = vpop.f32.mrf.mxu0
        %v5817 = vadd.f32 %v5752, %v5816
        %v5818 = vpop.f32.mrf.mxu0
        %v5819 = vpop.f32.mrf.mxu0
        %v5820 = vadd.f32 %v5755, %v5819
        %v5821 = vpop.f32.mrf.mxu0
        %5822 = vmatprep.mubr.bf16.mxu0 %v5227
        %5823 = vmatmul.mubr.bf16.gmra.mxu0 %v5226
        %v5824 = vpop.f32.mrf.mxu0
        %v5825 = vadd.f32 %v5760, %v5824
        %v5826 = vpop.f32.mrf.mxu0
        %v5827 = vpop.f32.mrf.mxu0
        %v5828 = vadd.f32 %v5763, %v5827
        %v5829 = vpop.f32.mrf.mxu0
        %5830 = vdwg.mxu0
        %5831 = vmatprep.subr.bf16.mxu0 0
        %5832 = vmatpush1.bf16.msra.mxu0 %v5596
        %5833 = vmatprep.subr.bf16.mxu0 0
        %5834 = vmatpush1.bf16.msra.mxu0 %v5595
        %5835 = vmatprep.subr.bf16.mxu0 0
        %5836 = vmatpush1.bf16.msra.mxu0 %v5594
        %5837 = vmatprep.subr.bf16.mxu0 0
        %5838 = vmatpush1.bf16.msra.mxu0 %v5593
        %5839 = vmatprep.subr.bf16.mxu0 0
        %5840 = vmatpush1.bf16.msra.mxu0 %v5592
        %5841 = vmatprep.subr.bf16.mxu0 0
        %5842 = vmatpush1.bf16.msra.mxu0 %v5591
        %5843 = vmatprep.subr.bf16.mxu0 0
        %5844 = vmatpush1.bf16.msra.mxu0 %v5590
        %5845 = vmatprep.subr.bf16.mxu0 0
        %5846 = vmatpush1.bf16.msra.mxu0 %v5589
        %5847 = vmatprep.subr.bf16.mxu0 0
        %5848 = vmatpush2.bf16.msra.mxu0 %v5604
        %5849 = vmatprep.subr.bf16.mxu0 0
        %5850 = vmatpush2.bf16.msra.mxu0 %v5603
        %5851 = vmatprep.subr.bf16.mxu0 0
        %5852 = vmatpush2.bf16.msra.mxu0 %v5602
        %5853 = vmatprep.subr.bf16.mxu0 0
        %5854 = vmatpush2.bf16.msra.mxu0 %v5601
        %5855 = vmatprep.subr.bf16.mxu0 0
        %5856 = vmatpush2.bf16.msra.mxu0 %v5600
        %5857 = vmatprep.subr.bf16.mxu0 0
        %5858 = vmatpush2.bf16.msra.mxu0 %v5599
        %5859 = vmatprep.subr.bf16.mxu0 0
        %5860 = vmatpush2.bf16.msra.mxu0 %v5598
        %5861 = vmatprep.subr.bf16.mxu0 0
        %5862 = vmatpush2.bf16.msra.mxu0 %v5597
        %5863 = vmatprep.mubr.bf16.mxu0 %v5202
        %5864 = vmatmul.mubr.bf16.gmra.mxu0 %v5201
        %v5865 = vpop.f32.mrf.mxu0
        %v5866 = vadd.f32 %v5801, %v5865
        %v5867 = vpop.f32.mrf.mxu0
        %v5868 = vpop.f32.mrf.mxu0
        %v5869 = vadd.f32 %v5804, %v5868
        %v5870 = vpop.f32.mrf.mxu0
        %5871 = vmatprep.mubr.bf16.mxu0 %v5211
        %5872 = vmatmul.mubr.bf16.gmra.mxu0 %v5210
        %v5873 = vpop.f32.mrf.mxu0
        %v5874 = vadd.f32 %v5809, %v5873
        %v5875 = vpop.f32.mrf.mxu0
        %v5876 = vpop.f32.mrf.mxu0
        %v5877 = vadd.f32 %v5812, %v5876
        %v5878 = vpop.f32.mrf.mxu0
        %5879 = vmatprep.mubr.bf16.mxu0 %v5220
        %5880 = vmatmul.mubr.bf16.gmra.mxu0 %v5219
        %v5881 = vpop.f32.mrf.mxu0
        %v5882 = vadd.f32 %v5817, %v5881
        %v5883 = vpop.f32.mrf.mxu0
        %v5884 = vpop.f32.mrf.mxu0
        %v5885 = vadd.f32 %v5820, %v5884
        %v5886 = vpop.f32.mrf.mxu0
        %5887 = vmatprep.mubr.bf16.mxu0 %v5229
        %5888 = vmatmul.mubr.bf16.gmra.mxu0 %v5228
        %v5889 = vpop.f32.mrf.mxu0
        %v5890 = vadd.f32 %v5825, %v5889
        %v5891 = vpop.f32.mrf.mxu0
        %v5892 = vpop.f32.mrf.mxu0
        %v5893 = vadd.f32 %v5828, %v5892
        %v5894 = vpop.f32.mrf.mxu0
        %5895 = vdwg.mxu0
        %5896 = vmatprep.subr.bf16.mxu0 0
        %5897 = vmatpush1.bf16.msra.mxu0 %v5612
        %5898 = vmatprep.subr.bf16.mxu0 0
        %5899 = vmatpush1.bf16.msra.mxu0 %v5611
        %5900 = vmatprep.subr.bf16.mxu0 0
        %5901 = vmatpush1.bf16.msra.mxu0 %v5610
        %5902 = vmatprep.subr.bf16.mxu0 0
        %5903 = vmatpush1.bf16.msra.mxu0 %v5609
        %5904 = vmatprep.subr.bf16.mxu0 0
        %5905 = vmatpush1.bf16.msra.mxu0 %v5608
        %5906 = vmatprep.subr.bf16.mxu0 0
        %5907 = vmatpush1.bf16.msra.mxu0 %v5607
        %5908 = vmatprep.subr.bf16.mxu0 0
        %5909 = vmatpush1.bf16.msra.mxu0 %v5606
        %5910 = vmatprep.subr.bf16.mxu0 0
        %5911 = vmatpush1.bf16.msra.mxu0 %v5605
        %5912 = vmatprep.subr.bf16.mxu0 0
        %5913 = vmatpush2.bf16.msra.mxu0 %v5620
        %5914 = vmatprep.subr.bf16.mxu0 0
        %5915 = vmatpush2.bf16.msra.mxu0 %v5619
        %5916 = vmatprep.subr.bf16.mxu0 0
        %5917 = vmatpush2.bf16.msra.mxu0 %v5618
        %5918 = vmatprep.subr.bf16.mxu0 0
        %5919 = vmatpush2.bf16.msra.mxu0 %v5617
        %5920 = vmatprep.subr.bf16.mxu0 0
        %5921 = vmatpush2.bf16.msra.mxu0 %v5616
        %5922 = vmatprep.subr.bf16.mxu0 0
        %5923 = vmatpush2.bf16.msra.mxu0 %v5615
        %5924 = vmatprep.subr.bf16.mxu0 0
        %5925 = vmatpush2.bf16.msra.mxu0 %v5614
        %5926 = vmatprep.subr.bf16.mxu0 0
        %5927 = vmatpush2.bf16.msra.mxu0 %v5613
        %5928 = vmatprep.mubr.bf16.mxu0 %v5204
        %5929 = vmatmul.mubr.bf16.gmra.mxu0 %v5203
        %v5930 = vpop.f32.mrf.mxu0
        %v5931 = vadd.f32 %v5866, %v5930
        %v5932 = vpop.f32.mrf.mxu0
        %v5933 = vpop.f32.mrf.mxu0
        %v5934 = vadd.f32 %v5869, %v5933
        %v5935 = vpop.f32.mrf.mxu0
        %5936 = vmatprep.mubr.bf16.mxu0 %v5213
        %5937 = vmatmul.mubr.bf16.gmra.mxu0 %v5212
        %v5938 = vpop.f32.mrf.mxu0
        %v5939 = vadd.f32 %v5874, %v5938
        %v5940 = vpop.f32.mrf.mxu0
        %v5941 = vpop.f32.mrf.mxu0
        %v5942 = vadd.f32 %v5877, %v5941
        %v5943 = vpop.f32.mrf.mxu0
        %5944 = vmatprep.mubr.bf16.mxu0 %v5222
        %5945 = vmatmul.mubr.bf16.gmra.mxu0 %v5221
        %v5946 = vpop.f32.mrf.mxu0
        %v5947 = vadd.f32 %v5882, %v5946
        %v5948 = vpop.f32.mrf.mxu0
        %v5949 = vpop.f32.mrf.mxu0
        %v5950 = vadd.f32 %v5885, %v5949
        %v5951 = vpop.f32.mrf.mxu0
        %5952 = vmatprep.mubr.bf16.mxu0 %v5231
        %5953 = vmatmul.mubr.bf16.gmra.mxu0 %v5230
        %v5954 = vpop.f32.mrf.mxu0
        %v5955 = vadd.f32 %v5890, %v5954
        %v5956 = vpop.f32.mrf.mxu0
        %v5957 = vpop.f32.mrf.mxu0
        %v5958 = vadd.f32 %v5893, %v5957
        %v5959 = vpop.f32.mrf.mxu0
        %5960 = vdwg.mxu0
        %5961 = vmatprep.subr.bf16.mxu0 0
        %5962 = vmatpush1.bf16.msra.mxu0 %v5628
        %5963 = vmatprep.subr.bf16.mxu0 0
        %5964 = vmatpush1.bf16.msra.mxu0 %v5627
        %5965 = vmatprep.subr.bf16.mxu0 0
        %5966 = vmatpush1.bf16.msra.mxu0 %v5626
        %5967 = vmatprep.subr.bf16.mxu0 0
        %5968 = vmatpush1.bf16.msra.mxu0 %v5625
        %5969 = vmatprep.subr.bf16.mxu0 0
        %5970 = vmatpush1.bf16.msra.mxu0 %v5624
        %5971 = vmatprep.subr.bf16.mxu0 0
        %5972 = vmatpush1.bf16.msra.mxu0 %v5623
        %5973 = vmatprep.subr.bf16.mxu0 0
        %5974 = vmatpush1.bf16.msra.mxu0 %v5622
        %5975 = vmatprep.subr.bf16.mxu0 0
        %5976 = vmatpush1.bf16.msra.mxu0 %v5621
        %5977 = vmatprep.subr.bf16.mxu0 0
        %5978 = vmatpush2.bf16.msra.mxu0 0
        %5979 = vmatprep.subr.bf16.mxu0 0
        %5980 = vmatpush2.bf16.msra.mxu0 0
        %5981 = vmatprep.subr.bf16.mxu0 0
        %5982 = vmatpush2.bf16.msra.mxu0 0
        %5983 = vmatprep.subr.bf16.mxu0 0
        %5984 = vmatpush2.bf16.msra.mxu0 0
        %5985 = vmatprep.subr.bf16.mxu0 0
        %5986 = vmatpush2.bf16.msra.mxu0 0
        %5987 = vmatprep.subr.bf16.mxu0 0
        %5988 = vmatpush2.bf16.msra.mxu0 0
        %5989 = vmatprep.subr.bf16.mxu0 0
        %5990 = vmatpush2.bf16.msra.mxu0 0
        %5991 = vmatprep.subr.bf16.mxu0 0
        %5992 = vmatpush2.bf16.msra.mxu0 0
        %5993 = vmatprep.mubr.bf16.mxu0 0
        %5994 = vmatmul.mubr.bf16.gmra.mxu0 %v5205
        %v5995 = vpop.f32.mrf.mxu0
        %v5996 = vadd.f32 %v5931, %v5995
        %v5997 = vpop.f32.mrf.mxu0
        %v5998 = vpop.f32.mrf.mxu0
        %v5999 = vadd.f32 %v5934, %v5998
        %v6000 = vpop.f32.mrf.mxu0
        %6001 = vmatprep.mubr.bf16.mxu0 0
        %6002 = vmatmul.mubr.bf16.gmra.mxu0 %v5214
        %v6003 = vpop.f32.mrf.mxu0
        %v6004 = vadd.f32 %v5939, %v6003
        %v6005 = vpop.f32.mrf.mxu0
        %v6006 = vpop.f32.mrf.mxu0
        %v6007 = vadd.f32 %v5942, %v6006
        %v6008 = vpop.f32.mrf.mxu0
        %6009 = vmatprep.mubr.bf16.mxu0 0
        %6010 = vmatmul.mubr.bf16.gmra.mxu0 %v5223
        %v6011 = vpop.f32.mrf.mxu0
        %v6012 = vadd.f32 %v5947, %v6011
        %v6013 = vpop.f32.mrf.mxu0
        %v6014 = vpop.f32.mrf.mxu0
        %v6015 = vadd.f32 %v5950, %v6014
        %v6016 = vpop.f32.mrf.mxu0
        %6017 = vmatprep.mubr.bf16.mxu0 0
        %6018 = vmatmul.mubr.bf16.gmra.mxu0 %v5232
        %v6019 = vpop.f32.mrf.mxu0
        %v6020 = vadd.f32 %v5955, %v6019
        %v6021 = vpop.f32.mrf.mxu0
        %v6022 = vpop.f32.mrf.mxu0
        %v6023 = vadd.f32 %v5958, %v6022
        %v6024 = vpop.f32.mrf.mxu0
        %6025 = vdwg.mxu0
        %v6026 = vld [vmem:[%s6] sm:$0x1]
        %v6028 = vlaneseq
        %v6029 = vshrl.u32 %v6028, 7
        %v6030 = vsub.s32 0, %v6029
        %v6031 = vrot.slane %v6026, %v6030
        %v6033 = vmul.f32 %v5996, %v6031
        %v6034 = vmul.f32 %v5999, %v6031
        %v6035 = vmul.f32 %v6004, %v6031
        %v6036 = vmul.f32 %v6007, %v6031
        %v6037 = vmul.f32 %v6012, %v6031
        %v6038 = vmul.f32 %v6015, %v6031
        %v6039 = vmul.f32 %v6020, %v6031
        %v6040 = vmul.f32 %v6023, %v6031
        %v6041 = vld [vmem:[%s7] sm:$0x1]
        %v6043 = vlaneseq
        %v6044 = vshrl.u32 %v6043, 7
        %v6045 = vsub.s32 0, %v6044
        %v6046 = vrot.slane %v6041, %v6045
        %v6048 = vadd.f32 %v6033, %v6046
        %v6049 = vadd.f32 %v6034, %v6046
        %v6050 = vadd.f32 %v6035, %v6046
        %v6051 = vadd.f32 %v6036, %v6046
        %v6052 = vadd.f32 %v6037, %v6046
        %v6053 = vadd.f32 %v6038, %v6046
        %v6054 = vadd.f32 %v6039, %v6046
        %v6055 = vadd.f32 %v6040, %v6046
        %v6056 = vmax.f32 %v6048, 0.0
        %v6057 = vmax.f32 %v6049, 0.0
        %v6058 = vmax.f32 %v6050, 0.0
        %v6059 = vmax.f32 %v6051, 0.0
        %v6060 = vmax.f32 %v6052, 0.0
        %v6061 = vmax.f32 %v6053, 0.0
        %v6062 = vmax.f32 %v6054, 0.0
        %v6063 = vmax.f32 %v6055, 0.0
        %6064 = vst [vmem:[%s342] sm:$0xff] %v6056
        %6065 = vst [vmem:[%s342 + $0x8] sm:$0xff] %v6057
        %6066 = vst [vmem:[%s342 + $0x10] sm:$0xff] %v6058
        %6067 = vst [vmem:[%s342 + $0x18] sm:$0xff] %v6059
        %6068 = vst [vmem:[%s342 + $0x20] sm:$0xff] %v6060
        %6069 = vst [vmem:[%s342 + $0x28] sm:$0xff] %v6061
        %6070 = vst [vmem:[%s342 + $0x30] sm:$0xff] %v6062
        %6071 = vst [vmem:[%s342 + $0x38] sm:$0xff] %v6063
        %s6072 = sand.u32 %s223, 1
        %s6073 = scalar_lea.sflag [#allocation7], %s6072
        %s6074 = sand.u32 %s223, 1
        %s6075 = smul.addr %s6074, 64
        %s6076 = scalar_lea.vmem [#allocation8], %s6075
        // Predicated region
        $region65: #{tpu_custom_call.1} parent=51 // pred_check
          %p6077 = pneg %p233
        $region66: #{tpu_custom_call.1} parent=51 // pred_check_branch
          %6079 = sbr.rel (%p6077) target = $region68
        $region67: #{tpu_custom_call.1} parent=51 // pred_region
          %s6080 = smul.u32 4, %s28
          %s6082 = ssub.s32 1024, 1024
          %6083 = vsyncadd %s6073, %s6082
          %s6084 = smul.addr %s6080, 2
          %s6085 = smul.addr %s27, 32
          %s6086 = sadd.s32 %s6084, %s6085
          %s6087 = smul.addr %s6086, 128
          %s6088 = scalar_lea.hbm %s8, %s6087
          %s6089 = sshll.u32 %s6076, 4
          %s6090 = int_to_ptr.vmem [resolvable:$true] %s6089
          %6095 = dma.vmem_to_hbm [thread:$0]  %s6090, 1024, %s6088, %s6073, 128, 128, 8
        $region68: #{tpu_custom_call.1} parent=51 // pred_fallthru
          _
      $region52: #{tpu_custom_call.1} parent=5 // pred_fallthru
        _
      %p6096 = scmp.le.s32.totalorder 2, %s18
      // Predicated region
      $region69: #{tpu_custom_call.1} parent=5 // pred_check
        %p6097 = pneg %p6096
      $region70: #{tpu_custom_call.1} parent=5 // pred_check_branch
        %6099 = sbr.rel (%p6097) target = $region72
      $region71: #{tpu_custom_call.1} parent=5 // pred_region
        %s6100 = ssub.s32 %s18, 2
        // Predicated region
        $region73: #{tpu_custom_call.1} parent=71 // pred_check
          %p6101 = pneg %p239
        $region74: #{tpu_custom_call.1} parent=71 // pred_check_branch
          %6103 = sbr.rel (%p6101) target = $region76
        $region75: #{tpu_custom_call.1} parent=71 // pred_region
          %s6104 = sand.u32 %s224, 1
          %s6105 = scalar_lea.sflag [#allocation7], %s6104
          %s6106 = sand.u32 %s224, 1
          %s6107 = smul.addr %s6106, 64
          %s6108 = scalar_lea.vmem [#allocation8], %s6107
          %6109 = dma.done %s6105, 1024
        $region76: #{tpu_custom_call.1} parent=71 // pred_fallthru
          _
      $region72: #{tpu_custom_call.1} parent=5 // pred_fallthru
        _
    $region6: #{tpu_custom_call.1} parent=1 // loop_footer
      %s22 = sadd.s32 1, %s18
    $region7: #{tpu_custom_call.1} parent=1 // loop_footer_branch
      %17 = sbr.rel target = $region3
    $region8: #{tpu_custom_call.1} parent=1 // loop_exit
      _
    %6110 = vsyncpa [#allocation6], 1
    %s6111 = scalar_lea.sflag [#allocation6], 1
    %6112 = vsyncpa %s6111, 1
    %6113 = vsyncpa [#allocation7], 1
    %s6114 = scalar_lea.sflag [#allocation7], 1
    %6115 = vsyncpa %s6114, 1

</llo_original>
